<compile_context>
chip_gen: v7x
topology: tpu7x:2x2x1
jax: 0.10.0
libtpu: 0.0.40
codegen_flags: <defaults>
</compile_context>

<pallas_src>
import jax
import jax.numpy as jnp
from jax.experimental import pallas as pl
from jax.experimental.pallas import tpu as pltpu

EPS = 1e-5
LANE = 128
VMEM_LIMIT = 48 << 20   # <= v7x's 64 MiB/TC physical VMEM; comfortable on v5e/v6e too.
STATS_TM = 1024         # row tile for the lane-packed BN1 stats kernel


# ------------------------------ small helpers ------------------------------ #
def _round_up(x, m):
    return (x + m - 1) // m * m


def _pad_rows(a, rows):
    if a.shape[0] == rows:
        return a
    return jnp.pad(a, ((0, rows - a.shape[0]),) + ((0, 0),) * (a.ndim - 1))


# --------------------------- BN statistics kernel --------------------------- #
def bn_scale_shift(x2d, gamma, beta, count):
    """Training-mode BatchNorm stats folded into a per-channel affine:
    scale = gamma * rsqrt(var + eps), shift = beta - mean * scale.

    The (M, C) input is lane-packed to (M*C/128, 128) whenever C divides 128 so the
    reduction uses all 128 lanes with unmasked stores (perf review: lane-dense BN for
    tiny channel counts).  The kernel only emits per-tile partial sums; the tiny
    finalisation (channel-group fold, mean/var, affine) runs in JAX."""
    m, c = x2d.shape
    pack = (c <= LANE) and (LANE % c == 0)
    if pack:
        g = LANE // c
        mp = _round_up(m, g)
        xw = _pad_rows(x2d, mp).reshape(mp // g, LANE)   # lane l <-> channel l % c
    else:
        xw = x2d                                          # fallback: masked lanes
    rows, width = xw.shape
    tm = min(STATS_TM, _round_up(rows, 8))
    rows_p = _round_up(rows, tm)
    xw = _pad_rows(xw, rows_p)                            # zero rows add 0 to sum/sumsq
    nt = rows_p // tm

    def kernel(x_ref, o_ref):
        x = x_ref[...].astype(jnp.float32)
        o_ref[0, 0:1, :] = jnp.sum(x, axis=0, keepdims=True)
        o_ref[0, 1:2, :] = jnp.sum(x * x, axis=0, keepdims=True)

    part = pl.pallas_call(
        kernel,
        out_shape=jax.ShapeDtypeStruct((nt, 2, width), jnp.float32),
        grid=(nt,),
        in_specs=[pl.BlockSpec((tm, width), lambda i: (i, 0))],
        out_specs=pl.BlockSpec((1, 2, width), lambda i: (i, 0, 0)),
        compiler_params=pltpu.CompilerParams(
            dimension_semantics=("parallel",), vmem_limit_bytes=VMEM_LIMIT),
    )(xw)

    tot = jnp.sum(part, axis=0)                           # (2, width)
    if pack:
        tot = tot.reshape(2, LANE // c, c).sum(axis=1)    # fold the 128/C channel groups
    mean = tot[0] / count
    # TODO(synk): single-pass E[x^2]-E[x]^2 cancels when |mean| >> std; use an offset or
    # Welford update for non-toy activation scales.
    var = tot[1] / count - mean * mean
    scale = gamma.reshape(-1).astype(jnp.float32) * jax.lax.rsqrt(var + EPS)
    shift = beta.reshape(-1).astype(jnp.float32) - mean * scale
    return scale, shift


def bn_finalize_from_stats(stats, gamma, beta, count, width):
    """scale/shift from the per-tile (sum, sumsq) stats emitted by the conv1 epilogue."""
    tot = jnp.sum(stats, axis=0)                          # (2, width)
    mean = tot[0] / count
    var = tot[1] / count - mean * mean
    g = jnp.pad(gamma.reshape(-1).astype(jnp.float32), (0, width - gamma.size))
    b = jnp.pad(beta.reshape(-1).astype(jnp.float32), (0, width - beta.size))
    scale = g * jax.lax.rsqrt(var + EPS)                  # zero-padded cols -> scale 0
    shift = b - mean * scale                              #                  -> shift 0
    return scale, shift


# ------------------------- fused BN+ReLU+conv kernel ------------------------- #
def conv3x3_fused(phases, mask_phases, scale, shift, w_taps, *, stride, hout, wout,
                  shortcut=None, emit_stats=False, out_halo=False,
                  out_dtype=jnp.bfloat16):
    """Fused BN-apply + ReLU + 3x3 conv (+ optional shortcut tap, + optional BN-stats
    epilogue) for one pre-activation ResNet conv.

      phases[p]      (N, Hp_p, Wp_p, Cin)  pre-activation input, space-to-batch phase p
                                           (stride*stride phases; stride 1 -> padded x)
      mask_phases[p] (1, Hp_p, Wp_p, 1)    1.0 on the interior / 0.0 on the zero halo
      scale, shift   (1, 1, Cin) f32       BN affine applied to every tap window
      w_taps         (9, Cin, Cout_pad)    bf16 conv weights, tap-major
      shortcut       optional (x_sc (N,hout,wout,Csc), scale_sc, shift_sc, w_sc):
                     out += relu(bn(x_sc)) @ w_sc  (1x1 projection / identity shortcut)

    Grid = batch ("parallel"); each step keeps the whole spatial plane in VMEM, forms
    the 9 taps with contiguous static slices and runs 9 accumulated MXU matmuls with
    bf16 operands and f32 accumulation.  No im2col tensor ever touches HBM."""
    npf = len(phases)
    assert npf == stride * stride
    n, _, _, cin = phases[0].shape
    cpad = w_taps.shape[-1]
    has_sc = shortcut is not None

    def kernel(*refs):
        it = iter(refs)
        ph = [next(it) for _ in range(npf)]
        mph = [next(it) for _ in range(npf)]
        s_ref, b_ref, w_ref = next(it), next(it), next(it)
        if has_sc:
            scx_ref, scs_ref, scb_ref, scw_ref = next(it), next(it), next(it), next(it)
        o_ref = next(it)
        st_ref = next(it) if emit_stats else None

        s_vec = s_ref[...]                               # (1, 1, Cin) broadcast
        b_vec = b_ref[...]
        acc = jnp.zeros((hout * wout, cpad), jnp.float32)
        for dy in range(3):
            for dx in range(3):
                p = (dy % stride) * stride + (dx % stride)
                oy, ox = dy // stride, dx // stride
                win = ph[p][0, oy:oy + hout, ox:ox + wout, :].astype(jnp.float32)
                msk = mph[p][0, oy:oy + hout, ox:ox + wout, :]
                # BN + ReLU fused into the tap load; mask zeroes the padding halo
                # (relu(bn(0)) is generally nonzero, the real conv pads *after* relu).
                act = jnp.maximum(win * s_vec + b_vec, 0.0) * msk
                acc += jnp.dot(act.reshape(hout * wout, cin).astype(jnp.bfloat16),
                               w_ref[dy * 3 + dx],
                               preferred_element_type=jnp.float32)
        if has_sc:  # shortcut = relu(bn1(centre-tap window)) @ w_sc  (one extra tap)
            sx = scx_ref[0].astype(jnp.float32)
            sact = jnp.maximum(sx * scs_ref[...] + scb_ref[...], 0.0)
            acc += jnp.dot(sact.reshape(hout * wout, sx.shape[-1]).astype(jnp.bfloat16),
                           scw_ref[...], preferred_element_type=jnp.float32)
        if emit_stats:  # next BN's statistics, fused into this conv's epilogue
            st_ref[0, 0:1, :] = jnp.sum(acc, axis=0, keepdims=True)
            st_ref[0, 1:2, :] = jnp.sum(acc * acc, axis=0, keepdims=True)
        res = acc.astype(o_ref.dtype).reshape(hout, wout, cpad)
        if out_halo:    # write a zero-halo padded output -> next conv needs no pad pass
            o_ref[...] = jnp.zeros_like(o_ref)
            o_ref[0, 1:1 + hout, 1:1 + wout, :] = res
        else:
            o_ref[0] = res

    args, in_specs = [], []
    for p in phases:
        args.append(p)
        in_specs.append(pl.BlockSpec((1,) + p.shape[1:], lambda i: (i, 0, 0, 0)))
    for m in mask_phases:
        args.append(m)
        in_specs.append(pl.BlockSpec(m.shape, lambda i: (0, 0, 0, 0)))
    args += [scale, shift, w_taps]
    in_specs += [pl.BlockSpec(scale.shape, lambda i: (0, 0, 0)),
                 pl.BlockSpec(shift.shape, lambda i: (0, 0, 0)),
                 pl.BlockSpec(w_taps.shape, lambda i: (0, 0, 0))]
    if has_sc:
        scx, scs, scb, scw = shortcut
        args += [scx, scs, scb, scw]
        in_specs += [pl.BlockSpec((1,) + scx.shape[1:], lambda i: (i, 0, 0, 0)),
                     pl.BlockSpec(scs.shape, lambda i: (0, 0, 0)),
                     pl.BlockSpec(scb.shape, lambda i: (0, 0, 0)),
                     pl.BlockSpec(scw.shape, lambda i: (0, 0))]

    hp_out, wp_out = (hout + 2, wout + 2) if out_halo else (hout, wout)
    out_spec = pl.BlockSpec((1, hp_out, wp_out, cpad), lambda i: (i, 0, 0, 0))
    out_sds = jax.ShapeDtypeStruct((n, hp_out, wp_out, cpad), out_dtype)
    if emit_stats:
        out_shape = (out_sds, jax.ShapeDtypeStruct((n, 2, cpad), jnp.float32))
        out_specs = (out_spec, pl.BlockSpec((1, 2, cpad), lambda i: (i, 0, 0)))
    else:
        out_shape, out_specs = out_sds, out_spec

    return pl.pallas_call(
        kernel,
        out_shape=out_shape,
        grid=(n,),
        in_specs=in_specs,
        out_specs=out_specs,
        compiler_params=pltpu.CompilerParams(
            dimension_semantics=("parallel",), vmem_limit_bytes=VMEM_LIMIT),
    )(*args)


# --------------------------------- forward ---------------------------------- #
def _block_forward(x_nchw, params, stride):
    n, cin, h, w = x_nchw.shape
    planes = params["w1"].shape[0]
    has_proj = params["w_sc"] is not None
    hout = (h + 2 - 3) // stride + 1
    wout = (w + 2 - 3) // stride + 1
    cpad = _round_up(planes, LANE)                 # lane-dense output width, both convs

    x = jnp.transpose(x_nchw, (0, 2, 3, 1)).astype(jnp.float32)      # NCHW -> NHWC

    # BN1 scale/shift (lane-packed stats kernel; single pass over x).
    scale1, shift1 = bn_scale_shift(x.reshape(-1, cin), params["g1"], params["b1"],
                                    n * h * w)
    s1 = scale1.reshape(1, 1, cin)
    b1 = shift1.reshape(1, 1, cin)

    # Pad + space-to-batch phase split of the conv1 input (one HBM pass, no 9x im2col).
    x_pad = jnp.pad(x, ((0, 0), (1, 1), (1, 1), (0, 0)))
    mask = jnp.pad(jnp.ones((1, h, w, 1), jnp.float32),
                   ((0, 0), (1, 1), (1, 1), (0, 0)))
    phases = [x_pad[:, py::stride, px::stride, :]
              for py in range(stride) for px in range(stride)]
    mphases = [mask[:, py::stride, px::stride, :]
               for py in range(stride) for px in range(stride)]

    # conv1: BN1+ReLU fused into the tap load, BN2 stats fused into the epilogue,
    # output written straight into a zero-halo padded bf16 NHWC buffer.
    w1t = jnp.transpose(params["w1"], (2, 3, 1, 0)).reshape(9, cin, planes)
    w1t = jnp.pad(w1t, ((0, 0), (0, 0), (0, cpad - planes))).astype(jnp.bfloat16)
    out1_pad, stats2 = conv3x3_fused(
        phases, mphases, s1, b1, w1t, stride=stride, hout=hout, wout=wout,
        emit_stats=True, out_halo=True, out_dtype=jnp.bfloat16)

    # BN2 scale/shift from conv1's fused statistics (tiny finalize in JAX).
    scale2, shift2 = bn_finalize_from_stats(stats2, params["g2"], params["b2"],
                                            n * hout * wout, cpad)
    s2 = scale2.reshape(1, 1, cpad)
    b2 = shift2.reshape(1, 1, cpad)

    # conv2: BN2+ReLU fused into the tap load; the shortcut (1x1 stride-s projection or
    # identity) is the centre-tap phase of the conv1 input, added as one extra matmul.
    w2t = jnp.transpose(params["w2"], (2, 3, 1, 0)).reshape(9, planes, planes)
    w2t = jnp.pad(w2t,
                  ((0, 0), (0, cpad - planes), (0, cpad - planes))).astype(jnp.bfloat16)

    cidx = (1 % stride) * stride + (1 % stride)
    oy, ox = 1 // stride, 1 // stride
    x_centre = phases[cidx][:, oy:oy + hout, ox:ox + wout, :]
    if has_proj:
        w_sc = params["w_sc"].reshape(planes, cin).T                  # (cin, planes)
    else:
        w_sc = jnp.eye(cin, dtype=jnp.float32)                        # identity shortcut
    w_sc = jnp.pad(w_sc, ((0, 0), (0, cpad - planes))).astype(jnp.bfloat16)

    mask2 = jnp.pad(jnp.ones((1, hout, wout, 1), jnp.float32),
                    ((0, 0), (1, 1), (1, 1), (0, 0)))
    out = conv3x3_fused(
        [out1_pad], [mask2], s2, b2, w2t, stride=1, hout=hout, wout=wout,
        shortcut=(x_centre, s1, b1, w_sc),
        emit_stats=False, out_halo=False, out_dtype=jnp.float32)

    return jnp.transpose(out[..., :planes], (0, 3, 1, 2))             # NHWC -> NCHW


block_forward = jax.jit(_block_forward, static_argnames=("stride",))


# --------------------------- pure-JAX reference ----------------------------- #
def reference_forward(x_nchw, params, stride):
    def bn_relu_ref(x, g, b):
        mean = x.mean(axis=(0, 2, 3), keepdims=True)
        var = ((x - mean) ** 2).mean(axis=(0, 2, 3), keepdims=True)
        y = (x - mean) * jax.lax.rsqrt(var + EPS) * g.reshape(1, -1, 1, 1) \
            + b.reshape(1, -1, 1, 1)
        return jnp.maximum(y, 0.0)

    def conv(x, w, s, p):
        return jax.lax.conv_general_dilated(
            x, w, (s, s), [(p, p), (p, p)],
            dimension_numbers=("NCHW", "OIHW", "NCHW"),
            precision=jax.lax.Precision.HIGHEST)

    a1 = bn_relu_ref(x_nchw, params["g1"], params["b1"])
    shortcut = conv(a1, params["w_sc"], stride, 0) if params["w_sc"] is not None else a1
    out1 = conv(a1, params["w1"], stride, 1)
    a2 = bn_relu_ref(out1, params["g2"], params["b2"])
    return conv(a2, params["w2"], 1, 1) + shortcut


if __name__ == "__main__":
    # Block(in_planes=4, planes=8, stride=2, track=False) on x: (2, 4, 16, 16)
    N, in_planes, planes, H, W, stride = 2, 4, 8, 16, 16, 2
    key = jax.random.PRNGKey(0)
    ks = jax.random.split(key, 8)
    params = {
        "g1": 0.5 + jax.random.uniform(ks[0], (1, in_planes), jnp.float32),
        "b1": 0.1 * jax.random.normal(ks[1], (1, in_planes), jnp.float32),
        "w1": 0.1 * jax.random.normal(ks[2], (planes, in_planes, 3, 3), jnp.float32),
        "g2": 0.5 + jax.random.uniform(ks[3], (1, planes), jnp.float32),
        "b2": 0.1 * jax.random.normal(ks[4], (1, planes), jnp.float32),
        "w2": 0.1 * jax.random.normal(ks[5], (planes, planes, 3, 3), jnp.float32),
        "w_sc": (0.1 * jax.random.normal(ks[6], (planes, in_planes, 1, 1), jnp.float32)
                 if (stride != 1 or in_planes != planes) else None),
    }
    x = jax.random.normal(ks[7], (N, in_planes, H, W), jnp.float32)

    out = jax.block_until_ready(block_forward(x, params, stride=stride))
    ref = jax.block_until_ready(reference_forward(x, params, stride))

    assert out.shape == (N, planes, H // stride, W // stride), out.shape
    # Tolerance sized for bf16 MXU operands *and* bf16 inter-kernel activations (per the
    # perf review) versus an f32 HIGHEST-precision reference.
    err = float(jnp.max(jnp.abs(out - ref)))
    assert jnp.allclose(out, ref, atol=3e-2, rtol=3e-2), f"max abs err {err}"
    print("KERNEL_OK")
</pallas_src>

<mosaic_0001>
module attributes {stable_mosaic.version = 11 : i64} {
  func.func @kernel(%arg0: i32, %arg1: memref<16x128xf32, #tpu.memory_space<vmem>>, %arg2: memref<1x2x128xf32, #tpu.memory_space<vmem>>) attributes {dimension_semantics = [#tpu.dimension_semantics<parallel>], iteration_bounds = array<i64: 1>, scalar_prefetch = 0 : i64, scratch_operands = 0 : i64, tpu.core_type = #tpu.core_type<tc>, window_params = [{transform_indices = @transform_0, window_bounds = array<i64: 16, 128>}, {transform_indices = @transform_1, window_bounds = array<i64: 1, 2, 128>}]} {
    %c0 = arith.constant 0 : index
    %c0_0 = arith.constant 0 : index
    %0 = vector.load %arg1[%c0, %c0_0] : memref<16x128xf32, #tpu.memory_space<vmem>>, vector<16x128xf32>
    %cst = arith.constant dense<0.000000e+00> : vector<128xf32>
    %1 = vector.multi_reduction <add>, %0, %cst [0] : vector<16x128xf32> to vector<128xf32>
    %2 = vector.shape_cast %1 : vector<128xf32> to vector<1x128xf32>
    %c0_1 = arith.constant 0 : index
    %c0_2 = arith.constant 0 : index
    %c0_3 = arith.constant 0 : index
    %3 = vector.load %arg2[%c0_1, %c0_2, %c0_3] : memref<1x2x128xf32, #tpu.memory_space<vmem>>, vector<1x1x128xf32>
    %4 = vector.shape_cast %3 : vector<1x1x128xf32> to vector<1x128xf32>
    %5 = vector.shape_cast %2 : vector<1x128xf32> to vector<1x1x128xf32>
    tpu.vector_store %arg2[%c0_1, %c0_2, %c0_3], %5 {strides = array<i32>} : memref<1x2x128xf32, #tpu.memory_space<vmem>>, vector<1x1x128xf32>,
    %6 = arith.mulf %0, %0 : vector<16x128xf32>
    %cst_4 = arith.constant dense<0.000000e+00> : vector<128xf32>
    %7 = vector.multi_reduction <add>, %6, %cst_4 [0] : vector<16x128xf32> to vector<128xf32>
    %8 = vector.shape_cast %7 : vector<128xf32> to vector<1x128xf32>
    %c0_5 = arith.constant 0 : index
    %c1 = arith.constant 1 : index
    %c0_6 = arith.constant 0 : index
    %9 = vector.load %arg2[%c0_5, %c1, %c0_6] : memref<1x2x128xf32, #tpu.memory_space<vmem>>, vector<1x1x128xf32>
    %10 = vector.shape_cast %9 : vector<1x1x128xf32> to vector<1x128xf32>
    %11 = vector.shape_cast %8 : vector<1x128xf32> to vector<1x1x128xf32>
    tpu.vector_store %arg2[%c0_5, %c1, %c0_6], %11 {strides = array<i32>} : memref<1x2x128xf32, #tpu.memory_space<vmem>>, vector<1x1x128xf32>,
    return
  }
  func.func @transform_0(%arg0: i32) -> (i32, i32) {
    %c0_i32 = arith.constant 0 : i32
    %c0_i32_0 = arith.constant 0 : i32
    return %arg0, %c0_i32 : i32, i32
  }
  func.func @transform_1(%arg0: i32) -> (i32, i32, i32) {
    %c0_i32 = arith.constant 0 : i32
    %c0_i32_0 = arith.constant 0 : i32
    %c0_i32_1 = arith.constant 0 : i32
    return %arg0, %c0_i32, %c0_i32_0 : i32, i32, i32
  }
}

module attributes {stable_mosaic.version = 11 : i64} {
  func.func @kernel(%arg0: i32, %arg1: memref<1x9x9x4xf32, #tpu.memory_space<vmem>>, %arg2: memref<1x9x9x4xf32, #tpu.memory_space<vmem>>, %arg3: memref<1x9x9x4xf32, #tpu.memory_space<vmem>>, %arg4: memref<1x9x9x4xf32, #tpu.memory_space<vmem>>, %arg5: memref<1x9x9x1xf32, #tpu.memory_space<vmem>>, %arg6: memref<1x9x9x1xf32, #tpu.memory_space<vmem>>, %arg7: memref<1x9x9x1xf32, #tpu.memory_space<vmem>>, %arg8: memref<1x9x9x1xf32, #tpu.memory_space<vmem>>, %arg9: memref<1x1x4xf32, #tpu.memory_space<vmem>>, %arg10: memref<1x1x4xf32, #tpu.memory_space<vmem>>, %arg11: memref<9x4x128xbf16, #tpu.memory_space<vmem>>, %arg12: memref<1x10x10x128xbf16, #tpu.memory_space<vmem>>, %arg13: memref<1x2x128xf32, #tpu.memory_space<vmem>>) attributes {dimension_semantics = [#tpu.dimension_semantics<parallel>], iteration_bounds = array<i64: 2>, scalar_prefetch = 0 : i64, scratch_operands = 0 : i64, tpu.core_type = #tpu.core_type<tc>, window_params = [{transform_indices = @transform_0, window_bounds = array<i64: 1, 9, 9, 4>}, {transform_indices = @transform_1, window_bounds = array<i64: 1, 9, 9, 4>}, {transform_indices = @transform_2, window_bounds = array<i64: 1, 9, 9, 4>}, {transform_indices = @transform_3, window_bounds = array<i64: 1, 9, 9, 4>}, {pipeline_mode = #tpu.pipeline_mode<synchronous>, transform_indices = @transform_4, window_bounds = array<i64: 1, 9, 9, 1>}, {pipeline_mode = #tpu.pipeline_mode<synchronous>, transform_indices = @transform_5, window_bounds = array<i64: 1, 9, 9, 1>}, {pipeline_mode = #tpu.pipeline_mode<synchronous>, transform_indices = @transform_6, window_bounds = array<i64: 1, 9, 9, 1>}, {pipeline_mode = #tpu.pipeline_mode<synchronous>, transform_indices = @transform_7, window_bounds = array<i64: 1, 9, 9, 1>}, {pipeline_mode = #tpu.pipeline_mode<synchronous>, transform_indices = @transform_8, window_bounds = array<i64: 1, 1, 4>}, {pipeline_mode = #tpu.pipeline_mode<synchronous>, transform_indices = @transform_9, window_bounds = array<i64: 1, 1, 4>}, {pipeline_mode = #tpu.pipeline_mode<synchronous>, transform_indices = @transform_10, window_bounds = array<i64: 9, 4, 128>}, {transform_indices = @transform_11, window_bounds = array<i64: 1, 10, 10, 128>}, {transform_indices = @transform_12, window_bounds = array<i64: 1, 2, 128>}]} {
    %c0 = arith.constant 0 : index
    %c0_0 = arith.constant 0 : index
    %c0_1 = arith.constant 0 : index
    %0 = vector.load %arg9[%c0, %c0_0, %c0_1] : memref<1x1x4xf32, #tpu.memory_space<vmem>>, vector<1x1x4xf32>
    %c0_2 = arith.constant 0 : index
    %c0_3 = arith.constant 0 : index
    %c0_4 = arith.constant 0 : index
    %1 = vector.load %arg10[%c0_2, %c0_3, %c0_4] : memref<1x1x4xf32, #tpu.memory_space<vmem>>, vector<1x1x4xf32>
    %cst = arith.constant 0.000000e+00 : f32
    %2 = vector.broadcast %cst : f32 to vector<64x128xf32>
    %c0_5 = arith.constant 0 : index
    %c0_6 = arith.constant 0 : index
    %c0_7 = arith.constant 0 : index
    %c0_8 = arith.constant 0 : index
    %3 = vector.load %arg1[%c0_5, %c0_6, %c0_7, %c0_8] : memref<1x9x9x4xf32, #tpu.memory_space<vmem>>, vector<1x8x8x4xf32>
    %4 = vector.shape_cast %3 : vector<1x8x8x4xf32> to vector<8x8x4xf32>
    %c0_9 = arith.constant 0 : index
    %c0_10 = arith.constant 0 : index
    %c0_11 = arith.constant 0 : index
    %c0_12 = arith.constant 0 : index
    %5 = vector.load %arg5[%c0_9, %c0_10, %c0_11, %c0_12] : memref<1x9x9x1xf32, #tpu.memory_space<vmem>>, vector<1x8x8x1xf32>
    %6 = vector.shape_cast %5 : vector<1x8x8x1xf32> to vector<8x8x1xf32>
    %7 = vector.broadcast %0 : vector<1x1x4xf32> to vector<8x8x4xf32>
    %8 = arith.mulf %4, %7 : vector<8x8x4xf32>
    %9 = vector.broadcast %1 : vector<1x1x4xf32> to vector<8x8x4xf32>
    %10 = arith.addf %8, %9 : vector<8x8x4xf32>
    %cst_13 = arith.constant 0.000000e+00 : f32
    %11 = vector.broadcast %cst_13 : f32 to vector<8x8x4xf32>
    %12 = arith.maximumf %10, %11 : vector<8x8x4xf32>
    %13 = vector.broadcast %6 : vector<8x8x1xf32> to vector<8x8x4xf32>
    %14 = arith.mulf %12, %13 : vector<8x8x4xf32>
    %15 = vector.shape_cast %14 : vector<8x8x4xf32> to vector<64x4xf32>
    %16 = arith.truncf %15 : vector<64x4xf32> to vector<64x4xbf16>
    %c0_14 = arith.constant 0 : index
    %c0_15 = arith.constant 0 : index
    %c0_16 = arith.constant 0 : index
    %17 = vector.load %arg11[%c0_14, %c0_15, %c0_16] : memref<9x4x128xbf16, #tpu.memory_space<vmem>>, vector<1x4x128xbf16>
    %18 = vector.shape_cast %17 : vector<1x4x128xbf16> to vector<4x128xbf16>
    %cst_17 = arith.constant dense<0.000000e+00> : vector<64x128xf32>
    %19 = tpu.matmul %16, %18, %cst_17 {dimension_numbers = #tpu.dot_dimension_numbers<[1], [0], [0], [1], [0, 0, 1, 1], [], []>} : vector<64x4xbf16>, vector<4x128xbf16>, vector<64x128xf32> -> vector<64x128xf32>
    %20 = arith.addf %2, %19 : vector<64x128xf32>
    %c0_18 = arith.constant 0 : index
    %c0_19 = arith.constant 0 : index
    %c0_20 = arith.constant 0 : index
    %c0_21 = arith.constant 0 : index
    %21 = vector.load %arg2[%c0_18, %c0_19, %c0_20, %c0_21] : memref<1x9x9x4xf32, #tpu.memory_space<vmem>>, vector<1x8x8x4xf32>
    %22 = vector.shape_cast %21 : vector<1x8x8x4xf32> to vector<8x8x4xf32>
    %c0_22 = arith.constant 0 : index
    %c0_23 = arith.constant 0 : index
    %c0_24 = arith.constant 0 : index
    %c0_25 = arith.constant 0 : index
    %23 = vector.load %arg6[%c0_22, %c0_23, %c0_24, %c0_25] : memref<1x9x9x1xf32, #tpu.memory_space<vmem>>, vector<1x8x8x1xf32>
    %24 = vector.shape_cast %23 : vector<1x8x8x1xf32> to vector<8x8x1xf32>
    %25 = vector.broadcast %0 : vector<1x1x4xf32> to vector<8x8x4xf32>
    %26 = arith.mulf %22, %25 : vector<8x8x4xf32>
    %27 = vector.broadcast %1 : vector<1x1x4xf32> to vector<8x8x4xf32>
    %28 = arith.addf %26, %27 : vector<8x8x4xf32>
    %cst_26 = arith.constant 0.000000e+00 : f32
    %29 = vector.broadcast %cst_26 : f32 to vector<8x8x4xf32>
    %30 = arith.maximumf %28, %29 : vector<8x8x4xf32>
    %31 = vector.broadcast %24 : vector<8x8x1xf32> to vector<8x8x4xf32>
    %32 = arith.mulf %30, %31 : vector<8x8x4xf32>
    %33 = vector.shape_cast %32 : vector<8x8x4xf32> to vector<64x4xf32>
    %34 = arith.truncf %33 : vector<64x4xf32> to vector<64x4xbf16>
    %c1 = arith.constant 1 : index
    %c0_27 = arith.constant 0 : index
    %c0_28 = arith.constant 0 : index
    %35 = vector.load %arg11[%c1, %c0_27, %c0_28] : memref<9x4x128xbf16, #tpu.memory_space<vmem>>, vector<1x4x128xbf16>
    %36 = vector.shape_cast %35 : vector<1x4x128xbf16> to vector<4x128xbf16>
    %cst_29 = arith.constant dense<0.000000e+00> : vector<64x128xf32>
    %37 = tpu.matmul %34, %36, %cst_29 {dimension_numbers = #tpu.dot_dimension_numbers<[1], [0], [0], [1], [0, 0, 1, 1], [], []>} : vector<64x4xbf16>, vector<4x128xbf16>, vector<64x128xf32> -> vector<64x128xf32>
    %38 = arith.addf %20, %37 : vector<64x128xf32>
    %c0_30 = arith.constant 0 : index
    %c0_31 = arith.constant 0 : index
    %c1_32 = arith.constant 1 : index
    %c0_33 = arith.constant 0 : index
    %39 = vector.load %arg1[%c0_30, %c0_31, %c1_32, %c0_33] : memref<1x9x9x4xf32, #tpu.memory_space<vmem>>, vector<1x8x8x4xf32>
    %40 = vector.shape_cast %39 : vector<1x8x8x4xf32> to vector<8x8x4xf32>
    %c0_34 = arith.constant 0 : index
    %c0_35 = arith.constant 0 : index
    %c1_36 = arith.constant 1 : index
    %c0_37 = arith.constant 0 : index
    %41 = vector.load %arg5[%c0_34, %c0_35, %c1_36, %c0_37] : memref<1x9x9x1xf32, #tpu.memory_space<vmem>>, vector<1x8x8x1xf32>
    %42 = vector.shape_cast %41 : vector<1x8x8x1xf32> to vector<8x8x1xf32>
    %43 = vector.broadcast %0 : vector<1x1x4xf32> to vector<8x8x4xf32>
    %44 = arith.mulf %40, %43 : vector<8x8x4xf32>
    %45 = vector.broadcast %1 : vector<1x1x4xf32> to vector<8x8x4xf32>
    %46 = arith.addf %44, %45 : vector<8x8x4xf32>
    %cst_38 = arith.constant 0.000000e+00 : f32
    %47 = vector.broadcast %cst_38 : f32 to vector<8x8x4xf32>
    %48 = arith.maximumf %46, %47 : vector<8x8x4xf32>
    %49 = vector.broadcast %42 : vector<8x8x1xf32> to vector<8x8x4xf32>
    %50 = arith.mulf %48, %49 : vector<8x8x4xf32>
    %51 = vector.shape_cast %50 : vector<8x8x4xf32> to vector<64x4xf32>
    %52 = arith.truncf %51 : vector<64x4xf32> to vector<64x4xbf16>
    %c2 = arith.constant 2 : index
    %c0_39 = arith.constant 0 : index
    %c0_40 = arith.constant 0 : index
    %53 = vector.load %arg11[%c2, %c0_39, %c0_40] : memref<9x4x128xbf16, #tpu.memory_space<vmem>>, vector<1x4x128xbf16>
    %54 = vector.shape_cast %53 : vector<1x4x128xbf16> to vector<4x128xbf16>
    %cst_41 = arith.constant dense<0.000000e+00> : vector<64x128xf32>
    %55 = tpu.matmul %52, %54, %cst_41 {dimension_numbers = #tpu.dot_dimension_numbers<[1], [0], [0], [1], [0, 0, 1, 1], [], []>} : vector<64x4xbf16>, vector<4x128xbf16>, vector<64x128xf32> -> vector<64x128xf32>
    %56 = arith.addf %38, %55 : vector<64x128xf32>
    %c0_42 = arith.constant 0 : index
    %c0_43 = arith.constant 0 : index
    %c0_44 = arith.constant 0 : index
    %c0_45 = arith.constant 0 : index
    %57 = vector.load %arg3[%c0_42, %c0_43, %c0_44, %c0_45] : memref<1x9x9x4xf32, #tpu.memory_space<vmem>>, vector<1x8x8x4xf32>
    %58 = vector.shape_cast %57 : vector<1x8x8x4xf32> to vector<8x8x4xf32>
    %c0_46 = arith.constant 0 : index
    %c0_47 = arith.constant 0 : index
    %c0_48 = arith.constant 0 : index
    %c0_49 = arith.constant 0 : index
    %59 = vector.load %arg7[%c0_46, %c0_47, %c0_48, %c0_49] : memref<1x9x9x1xf32, #tpu.memory_space<vmem>>, vector<1x8x8x1xf32>
    %60 = vector.shape_cast %59 : vector<1x8x8x1xf32> to vector<8x8x1xf32>
    %61 = vector.broadcast %0 : vector<1x1x4xf32> to vector<8x8x4xf32>
    %62 = arith.mulf %58, %61 : vector<8x8x4xf32>
    %63 = vector.broadcast %1 : vector<1x1x4xf32> to vector<8x8x4xf32>
    %64 = arith.addf %62, %63 : vector<8x8x4xf32>
    %cst_50 = arith.constant 0.000000e+00 : f32
    %65 = vector.broadcast %cst_50 : f32 to vector<8x8x4xf32>
    %66 = arith.maximumf %64, %65 : vector<8x8x4xf32>
    %67 = vector.broadcast %60 : vector<8x8x1xf32> to vector<8x8x4xf32>
    %68 = arith.mulf %66, %67 : vector<8x8x4xf32>
    %69 = vector.shape_cast %68 : vector<8x8x4xf32> to vector<64x4xf32>
    %70 = arith.truncf %69 : vector<64x4xf32> to vector<64x4xbf16>
    %c3 = arith.constant 3 : index
    %c0_51 = arith.constant 0 : index
    %c0_52 = arith.constant 0 : index
    %71 = vector.load %arg11[%c3, %c0_51, %c0_52] : memref<9x4x128xbf16, #tpu.memory_space<vmem>>, vector<1x4x128xbf16>
    %72 = vector.shape_cast %71 : vector<1x4x128xbf16> to vector<4x128xbf16>
    %cst_53 = arith.constant dense<0.000000e+00> : vector<64x128xf32>
    %73 = tpu.matmul %70, %72, %cst_53 {dimension_numbers = #tpu.dot_dimension_numbers<[1], [0], [0], [1], [0, 0, 1, 1], [], []>} : vector<64x4xbf16>, vector<4x128xbf16>, vector<64x128xf32> -> vector<64x128xf32>
    %74 = arith.addf %56, %73 : vector<64x128xf32>
    %c0_54 = arith.constant 0 : index
    %c0_55 = arith.constant 0 : index
    %c0_56 = arith.constant 0 : index
    %c0_57 = arith.constant 0 : index
    %75 = vector.load %arg4[%c0_54, %c0_55, %c0_56, %c0_57] : memref<1x9x9x4xf32, #tpu.memory_space<vmem>>, vector<1x8x8x4xf32>
    %76 = vector.shape_cast %75 : vector<1x8x8x4xf32> to vector<8x8x4xf32>
    %c0_58 = arith.constant 0 : index
    %c0_59 = arith.constant 0 : index
    %c0_60 = arith.constant 0 : index
    %c0_61 = arith.constant 0 : index
    %77 = vector.load %arg8[%c0_58, %c0_59, %c0_60, %c0_61] : memref<1x9x9x1xf32, #tpu.memory_space<vmem>>, vector<1x8x8x1xf32>
    %78 = vector.shape_cast %77 : vector<1x8x8x1xf32> to vector<8x8x1xf32>
    %79 = vector.broadcast %0 : vector<1x1x4xf32> to vector<8x8x4xf32>
    %80 = arith.mulf %76, %79 : vector<8x8x4xf32>
    %81 = vector.broadcast %1 : vector<1x1x4xf32> to vector<8x8x4xf32>
    %82 = arith.addf %80, %81 : vector<8x8x4xf32>
    %cst_62 = arith.constant 0.000000e+00 : f32
    %83 = vector.broadcast %cst_62 : f32 to vector<8x8x4xf32>
    %84 = arith.maximumf %82, %83 : vector<8x8x4xf32>
    %85 = vector.broadcast %78 : vector<8x8x1xf32> to vector<8x8x4xf32>
    %86 = arith.mulf %84, %85 : vector<8x8x4xf32>
    %87 = vector.shape_cast %86 : vector<8x8x4xf32> to vector<64x4xf32>
    %88 = arith.truncf %87 : vector<64x4xf32> to vector<64x4xbf16>
    %c4 = arith.constant 4 : index
    %c0_63 = arith.constant 0 : index
    %c0_64 = arith.constant 0 : index
    %89 = vector.load %arg11[%c4, %c0_63, %c0_64] : memref<9x4x128xbf16, #tpu.memory_space<vmem>>, vector<1x4x128xbf16>
    %90 = vector.shape_cast %89 : vector<1x4x128xbf16> to vector<4x128xbf16>
    %cst_65 = arith.constant dense<0.000000e+00> : vector<64x128xf32>
    %91 = tpu.matmul %88, %90, %cst_65 {dimension_numbers = #tpu.dot_dimension_numbers<[1], [0], [0], [1], [0, 0, 1, 1], [], []>} : vector<64x4xbf16>, vector<4x128xbf16>, vector<64x128xf32> -> vector<64x128xf32>
    %92 = arith.addf %74, %91 : vector<64x128xf32>
    %c0_66 = arith.constant 0 : index
    %c0_67 = arith.constant 0 : index
    %c1_68 = arith.constant 1 : index
    %c0_69 = arith.constant 0 : index
    %93 = vector.load %arg3[%c0_66, %c0_67, %c1_68, %c0_69] : memref<1x9x9x4xf32, #tpu.memory_space<vmem>>, vector<1x8x8x4xf32>
    %94 = vector.shape_cast %93 : vector<1x8x8x4xf32> to vector<8x8x4xf32>
    %c0_70 = arith.constant 0 : index
    %c0_71 = arith.constant 0 : index
    %c1_72 = arith.constant 1 : index
    %c0_73 = arith.constant 0 : index
    %95 = vector.load %arg7[%c0_70, %c0_71, %c1_72, %c0_73] : memref<1x9x9x1xf32, #tpu.memory_space<vmem>>, vector<1x8x8x1xf32>
    %96 = vector.shape_cast %95 : vector<1x8x8x1xf32> to vector<8x8x1xf32>
    %97 = vector.broadcast %0 : vector<1x1x4xf32> to vector<8x8x4xf32>
    %98 = arith.mulf %94, %97 : vector<8x8x4xf32>
    %99 = vector.broadcast %1 : vector<1x1x4xf32> to vector<8x8x4xf32>
    %100 = arith.addf %98, %99 : vector<8x8x4xf32>
    %cst_74 = arith.constant 0.000000e+00 : f32
    %101 = vector.broadcast %cst_74 : f32 to vector<8x8x4xf32>
    %102 = arith.maximumf %100, %101 : vector<8x8x4xf32>
    %103 = vector.broadcast %96 : vector<8x8x1xf32> to vector<8x8x4xf32>
    %104 = arith.mulf %102, %103 : vector<8x8x4xf32>
    %105 = vector.shape_cast %104 : vector<8x8x4xf32> to vector<64x4xf32>
    %106 = arith.truncf %105 : vector<64x4xf32> to vector<64x4xbf16>
    %c5 = arith.constant 5 : index
    %c0_75 = arith.constant 0 : index
    %c0_76 = arith.constant 0 : index
    %107 = vector.load %arg11[%c5, %c0_75, %c0_76] : memref<9x4x128xbf16, #tpu.memory_space<vmem>>, vector<1x4x128xbf16>
    %108 = vector.shape_cast %107 : vector<1x4x128xbf16> to vector<4x128xbf16>
    %cst_77 = arith.constant dense<0.000000e+00> : vector<64x128xf32>
    %109 = tpu.matmul %106, %108, %cst_77 {dimension_numbers = #tpu.dot_dimension_numbers<[1], [0], [0], [1], [0, 0, 1, 1], [], []>} : vector<64x4xbf16>, vector<4x128xbf16>, vector<64x128xf32> -> vector<64x128xf32>
    %110 = arith.addf %92, %109 : vector<64x128xf32>
    %c0_78 = arith.constant 0 : index
    %c1_79 = arith.constant 1 : index
    %c0_80 = arith.constant 0 : index
    %c0_81 = arith.constant 0 : index
    %111 = vector.load %arg1[%c0_78, %c1_79, %c0_80, %c0_81] : memref<1x9x9x4xf32, #tpu.memory_space<vmem>>, vector<1x8x8x4xf32>
    %112 = vector.shape_cast %111 : vector<1x8x8x4xf32> to vector<8x8x4xf32>
    %c0_82 = arith.constant 0 : index
    %c1_83 = arith.constant 1 : index
    %c0_84 = arith.constant 0 : index
    %c0_85 = arith.constant 0 : index
    %113 = vector.load %arg5[%c0_82, %c1_83, %c0_84, %c0_85] : memref<1x9x9x1xf32, #tpu.memory_space<vmem>>, vector<1x8x8x1xf32>
    %114 = vector.shape_cast %113 : vector<1x8x8x1xf32> to vector<8x8x1xf32>
    %115 = vector.broadcast %0 : vector<1x1x4xf32> to vector<8x8x4xf32>
    %116 = arith.mulf %112, %115 : vector<8x8x4xf32>
    %117 = vector.broadcast %1 : vector<1x1x4xf32> to vector<8x8x4xf32>
    %118 = arith.addf %116, %117 : vector<8x8x4xf32>
    %cst_86 = arith.constant 0.000000e+00 : f32
    %119 = vector.broadcast %cst_86 : f32 to vector<8x8x4xf32>
    %120 = arith.maximumf %118, %119 : vector<8x8x4xf32>
    %121 = vector.broadcast %114 : vector<8x8x1xf32> to vector<8x8x4xf32>
    %122 = arith.mulf %120, %121 : vector<8x8x4xf32>
    %123 = vector.shape_cast %122 : vector<8x8x4xf32> to vector<64x4xf32>
    %124 = arith.truncf %123 : vector<64x4xf32> to vector<64x4xbf16>
    %c6 = arith.constant 6 : index
    %c0_87 = arith.constant 0 : index
    %c0_88 = arith.constant 0 : index
    %125 = vector.load %arg11[%c6, %c0_87, %c0_88] : memref<9x4x128xbf16, #tpu.memory_space<vmem>>, vector<1x4x128xbf16>
    %126 = vector.shape_cast %125 : vector<1x4x128xbf16> to vector<4x128xbf16>
    %cst_89 = arith.constant dense<0.000000e+00> : vector<64x128xf32>
    %127 = tpu.matmul %124, %126, %cst_89 {dimension_numbers = #tpu.dot_dimension_numbers<[1], [0], [0], [1], [0, 0, 1, 1], [], []>} : vector<64x4xbf16>, vector<4x128xbf16>, vector<64x128xf32> -> vector<64x128xf32>
    %128 = arith.addf %110, %127 : vector<64x128xf32>
    %c0_90 = arith.constant 0 : index
    %c1_91 = arith.constant 1 : index
    %c0_92 = arith.constant 0 : index
    %c0_93 = arith.constant 0 : index
    %129 = vector.load %arg2[%c0_90, %c1_91, %c0_92, %c0_93] : memref<1x9x9x4xf32, #tpu.memory_space<vmem>>, vector<1x8x8x4xf32>
    %130 = vector.shape_cast %129 : vector<1x8x8x4xf32> to vector<8x8x4xf32>
    %c0_94 = arith.constant 0 : index
    %c1_95 = arith.constant 1 : index
    %c0_96 = arith.constant 0 : index
    %c0_97 = arith.constant 0 : index
    %131 = vector.load %arg6[%c0_94, %c1_95, %c0_96, %c0_97] : memref<1x9x9x1xf32, #tpu.memory_space<vmem>>, vector<1x8x8x1xf32>
    %132 = vector.shape_cast %131 : vector<1x8x8x1xf32> to vector<8x8x1xf32>
    %133 = vector.broadcast %0 : vector<1x1x4xf32> to vector<8x8x4xf32>
    %134 = arith.mulf %130, %133 : vector<8x8x4xf32>
    %135 = vector.broadcast %1 : vector<1x1x4xf32> to vector<8x8x4xf32>
    %136 = arith.addf %134, %135 : vector<8x8x4xf32>
    %cst_98 = arith.constant 0.000000e+00 : f32
    %137 = vector.broadcast %cst_98 : f32 to vector<8x8x4xf32>
    %138 = arith.maximumf %136, %137 : vector<8x8x4xf32>
    %139 = vector.broadcast %132 : vector<8x8x1xf32> to vector<8x8x4xf32>
    %140 = arith.mulf %138, %139 : vector<8x8x4xf32>
    %141 = vector.shape_cast %140 : vector<8x8x4xf32> to vector<64x4xf32>
    %142 = arith.truncf %141 : vector<64x4xf32> to vector<64x4xbf16>
    %c7 = arith.constant 7 : index
    %c0_99 = arith.constant 0 : index
    %c0_100 = arith.constant 0 : index
    %143 = vector.load %arg11[%c7, %c0_99, %c0_100] : memref<9x4x128xbf16, #tpu.memory_space<vmem>>, vector<1x4x128xbf16>
    %144 = vector.shape_cast %143 : vector<1x4x128xbf16> to vector<4x128xbf16>
    %cst_101 = arith.constant dense<0.000000e+00> : vector<64x128xf32>
    %145 = tpu.matmul %142, %144, %cst_101 {dimension_numbers = #tpu.dot_dimension_numbers<[1], [0], [0], [1], [0, 0, 1, 1], [], []>} : vector<64x4xbf16>, vector<4x128xbf16>, vector<64x128xf32> -> vector<64x128xf32>
    %146 = arith.addf %128, %145 : vector<64x128xf32>
    %c0_102 = arith.constant 0 : index
    %c1_103 = arith.constant 1 : index
    %c1_104 = arith.constant 1 : index
    %c0_105 = arith.constant 0 : index
    %147 = vector.load %arg1[%c0_102, %c1_103, %c1_104, %c0_105] : memref<1x9x9x4xf32, #tpu.memory_space<vmem>>, vector<1x8x8x4xf32>
    %148 = vector.shape_cast %147 : vector<1x8x8x4xf32> to vector<8x8x4xf32>
    %c0_106 = arith.constant 0 : index
    %c1_107 = arith.constant 1 : index
    %c1_108 = arith.constant 1 : index
    %c0_109 = arith.constant 0 : index
    %149 = vector.load %arg5[%c0_106, %c1_107, %c1_108, %c0_109] : memref<1x9x9x1xf32, #tpu.memory_space<vmem>>, vector<1x8x8x1xf32>
    %150 = vector.shape_cast %149 : vector<1x8x8x1xf32> to vector<8x8x1xf32>
    %151 = vector.broadcast %0 : vector<1x1x4xf32> to vector<8x8x4xf32>
    %152 = arith.mulf %148, %151 : vector<8x8x4xf32>
    %153 = vector.broadcast %1 : vector<1x1x4xf32> to vector<8x8x4xf32>
    %154 = arith.addf %152, %153 : vector<8x8x4xf32>
    %cst_110 = arith.constant 0.000000e+00 : f32
    %155 = vector.broadcast %cst_110 : f32 to vector<8x8x4xf32>
    %156 = arith.maximumf %154, %155 : vector<8x8x4xf32>
    %157 = vector.broadcast %150 : vector<8x8x1xf32> to vector<8x8x4xf32>
    %158 = arith.mulf %156, %157 : vector<8x8x4xf32>
    %159 = vector.shape_cast %158 : vector<8x8x4xf32> to vector<64x4xf32>
    %160 = arith.truncf %159 : vector<64x4xf32> to vector<64x4xbf16>
    %c8 = arith.constant 8 : index
    %c0_111 = arith.constant 0 : index
    %c0_112 = arith.constant 0 : index
    %161 = vector.load %arg11[%c8, %c0_111, %c0_112] : memref<9x4x128xbf16, #tpu.memory_space<vmem>>, vector<1x4x128xbf16>
    %162 = vector.shape_cast %161 : vector<1x4x128xbf16> to vector<4x128xbf16>
    %cst_113 = arith.constant dense<0.000000e+00> : vector<64x128xf32>
    %163 = tpu.matmul %160, %162, %cst_113 {dimension_numbers = #tpu.dot_dimension_numbers<[1], [0], [0], [1], [0, 0, 1, 1], [], []>} : vector<64x4xbf16>, vector<4x128xbf16>, vector<64x128xf32> -> vector<64x128xf32>
    %164 = arith.addf %146, %163 : vector<64x128xf32>
    %cst_114 = arith.constant dense<0.000000e+00> : vector<128xf32>
    %165 = vector.multi_reduction <add>, %164, %cst_114 [0] : vector<64x128xf32> to vector<128xf32>
    %166 = vector.shape_cast %165 : vector<128xf32> to vector<1x128xf32>
    %c0_115 = arith.constant 0 : index
    %c0_116 = arith.constant 0 : index
    %c0_117 = arith.constant 0 : index
    %167 = vector.load %arg13[%c0_115, %c0_116, %c0_117] : memref<1x2x128xf32, #tpu.memory_space<vmem>>, vector<1x1x128xf32>
    %168 = vector.shape_cast %167 : vector<1x1x128xf32> to vector<1x128xf32>
    %169 = vector.shape_cast %166 : vector<1x128xf32> to vector<1x1x128xf32>
    tpu.vector_store %arg13[%c0_115, %c0_116, %c0_117], %169 {strides = array<i32>} : memref<1x2x128xf32, #tpu.memory_space<vmem>>, vector<1x1x128xf32>,
    %170 = arith.mulf %164, %164 : vector<64x128xf32>
    %cst_118 = arith.constant dense<0.000000e+00> : vector<128xf32>
    %171 = vector.multi_reduction <add>, %170, %cst_118 [0] : vector<64x128xf32> to vector<128xf32>
    %172 = vector.shape_cast %171 : vector<128xf32> to vector<1x128xf32>
    %c0_119 = arith.constant 0 : index
    %c1_120 = arith.constant 1 : index
    %c0_121 = arith.constant 0 : index
    %173 = vector.load %arg13[%c0_119, %c1_120, %c0_121] : memref<1x2x128xf32, #tpu.memory_space<vmem>>, vector<1x1x128xf32>
    %174 = vector.shape_cast %173 : vector<1x1x128xf32> to vector<1x128xf32>
    %175 = vector.shape_cast %172 : vector<1x128xf32> to vector<1x1x128xf32>
    tpu.vector_store %arg13[%c0_119, %c1_120, %c0_121], %175 {strides = array<i32>} : memref<1x2x128xf32, #tpu.memory_space<vmem>>, vector<1x1x128xf32>,
    %176 = arith.truncf %164 : vector<64x128xf32> to vector<64x128xbf16>
    %177 = vector.shape_cast %176 : vector<64x128xbf16> to vector<8x8x128xbf16>
    %cst_122 = arith.constant 0.000000e+00 : bf16
    %178 = vector.broadcast %cst_122 : bf16 to vector<1x10x10x128xbf16>
    %c0_123 = arith.constant 0 : index
    %c0_124 = arith.constant 0 : index
    %c0_125 = arith.constant 0 : index
    %c0_126 = arith.constant 0 : index
    %179 = vector.load %arg12[%c0_123, %c0_124, %c0_125, %c0_126] : memref<1x10x10x128xbf16, #tpu.memory_space<vmem>>, vector<1x10x10x128xbf16>
    tpu.vector_store %arg12[%c0_123, %c0_124, %c0_125, %c0_126], %178 {strides = array<i32>} : memref<1x10x10x128xbf16, #tpu.memory_space<vmem>>, vector<1x10x10x128xbf16>,
    %c0_127 = arith.constant 0 : index
    %c1_128 = arith.constant 1 : index
    %c1_129 = arith.constant 1 : index
    %c0_130 = arith.constant 0 : index
    %180 = vector.load %arg12[%c0_127, %c1_128, %c1_129, %c0_130] : memref<1x10x10x128xbf16, #tpu.memory_space<vmem>>, vector<1x8x8x128xbf16>
    %181 = vector.shape_cast %180 : vector<1x8x8x128xbf16> to vector<8x8x128xbf16>
    %182 = vector.shape_cast %177 : vector<8x8x128xbf16> to vector<1x8x8x128xbf16>
    tpu.vector_store %arg12[%c0_127, %c1_128, %c1_129, %c0_130], %182 {strides = array<i32>} : memref<1x10x10x128xbf16, #tpu.memory_space<vmem>>, vector<1x8x8x128xbf16>,
    return
  }
  func.func @transform_0(%arg0: i32) -> (i32, i32, i32, i32) {
    %c0_i32 = arith.constant 0 : i32
    %c0_i32_0 = arith.constant 0 : i32
    %c0_i32_1 = arith.constant 0 : i32
    %c0_i32_2 = arith.constant 0 : i32
    return %arg0, %c0_i32, %c0_i32_0, %c0_i32_1 : i32, i32, i32, i32
  }
  func.func @transform_1(%arg0: i32) -> (i32, i32, i32, i32) {
    %c0_i32 = arith.constant 0 : i32
    %c0_i32_0 = arith.constant 0 : i32
    %c0_i32_1 = arith.constant 0 : i32
    %c0_i32_2 = arith.constant 0 : i32
    return %arg0, %c0_i32, %c0_i32_0, %c0_i32_1 : i32, i32, i32, i32
  }
  func.func @transform_2(%arg0: i32) -> (i32, i32, i32, i32) {
    %c0_i32 = arith.constant 0 : i32
    %c0_i32_0 = arith.constant 0 : i32
    %c0_i32_1 = arith.constant 0 : i32
    %c0_i32_2 = arith.constant 0 : i32
    return %arg0, %c0_i32, %c0_i32_0, %c0_i32_1 : i32, i32, i32, i32
  }
  func.func @transform_3(%arg0: i32) -> (i32, i32, i32, i32) {
    %c0_i32 = arith.constant 0 : i32
    %c0_i32_0 = arith.constant 0 : i32
    %c0_i32_1 = arith.constant 0 : i32
    %c0_i32_2 = arith.constant 0 : i32
    return %arg0, %c0_i32, %c0_i32_0, %c0_i32_1 : i32, i32, i32, i32
  }
  func.func @transform_4(%arg0: i32) -> (i32, i32, i32, i32) {
    %c0_i32 = arith.constant 0 : i32
    %c0_i32_0 = arith.constant 0 : i32
    %c0_i32_1 = arith.constant 0 : i32
    %c0_i32_2 = arith.constant 0 : i32
    %c0_i32_3 = arith.constant 0 : i32
    return %c0_i32, %c0_i32_0, %c0_i32_1, %c0_i32_2 : i32, i32, i32, i32
  }
  func.func @transform_5(%arg0: i32) -> (i32, i32, i32, i32) {
    %c0_i32 = arith.constant 0 : i32
    %c0_i32_0 = arith.constant 0 : i32
    %c0_i32_1 = arith.constant 0 : i32
    %c0_i32_2 = arith.constant 0 : i32
    %c0_i32_3 = arith.constant 0 : i32
    return %c0_i32, %c0_i32_0, %c0_i32_1, %c0_i32_2 : i32, i32, i32, i32
  }
  func.func @transform_6(%arg0: i32) -> (i32, i32, i32, i32) {
    %c0_i32 = arith.constant 0 : i32
    %c0_i32_0 = arith.constant 0 : i32
    %c0_i32_1 = arith.constant 0 : i32
    %c0_i32_2 = arith.constant 0 : i32
    %c0_i32_3 = arith.constant 0 : i32
    return %c0_i32, %c0_i32_0, %c0_i32_1, %c0_i32_2 : i32, i32, i32, i32
  }
  func.func @transform_7(%arg0: i32) -> (i32, i32, i32, i32) {
    %c0_i32 = arith.constant 0 : i32
    %c0_i32_0 = arith.constant 0 : i32
    %c0_i32_1 = arith.constant 0 : i32
    %c0_i32_2 = arith.constant 0 : i32
    %c0_i32_3 = arith.constant 0 : i32
    return %c0_i32, %c0_i32_0, %c0_i32_1, %c0_i32_2 : i32, i32, i32, i32
  }
  func.func @transform_8(%arg0: i32) -> (i32, i32, i32) {
    %c0_i32 = arith.constant 0 : i32
    %c0_i32_0 = arith.constant 0 : i32
    %c0_i32_1 = arith.constant 0 : i32
    %c0_i32_2 = arith.constant 0 : i32
    return %c0_i32, %c0_i32_0, %c0_i32_1 : i32, i32, i32
  }
  func.func @transform_9(%arg0: i32) -> (i32, i32, i32) {
    %c0_i32 = arith.constant 0 : i32
    %c0_i32_0 = arith.constant 0 : i32
    %c0_i32_1 = arith.constant 0 : i32
    %c0_i32_2 = arith.constant 0 : i32
    return %c0_i32, %c0_i32_0, %c0_i32_1 : i32, i32, i32
  }
  func.func @transform_10(%arg0: i32) -> (i32, i32, i32) {
    %c0_i32 = arith.constant 0 : i32
    %c0_i32_0 = arith.constant 0 : i32
    %c0_i32_1 = arith.constant 0 : i32
    %c0_i32_2 = arith.constant 0 : i32
    return %c0_i32, %c0_i32_0, %c0_i32_1 : i32, i32, i32
  }
  func.func @transform_11(%arg0: i32) -> (i32, i32, i32, i32) {
    %c0_i32 = arith.constant 0 : i32
    %c0_i32_0 = arith.constant 0 : i32
    %c0_i32_1 = arith.constant 0 : i32
    %c0_i32_2 = arith.constant 0 : i32
    return %arg0, %c0_i32, %c0_i32_0, %c0_i32_1 : i32, i32, i32, i32
  }
  func.func @transform_12(%arg0: i32) -> (i32, i32, i32) {
    %c0_i32 = arith.constant 0 : i32
    %c0_i32_0 = arith.constant 0 : i32
    %c0_i32_1 = arith.constant 0 : i32
    return %arg0, %c0_i32, %c0_i32_0 : i32, i32, i32
  }
}

module attributes {stable_mosaic.version = 11 : i64} {
  func.func @kernel(%arg0: i32, %arg1: memref<1x10x10x128xbf16, #tpu.memory_space<vmem>>, %arg2: memref<1x10x10x1xf32, #tpu.memory_space<vmem>>, %arg3: memref<1x1x128xf32, #tpu.memory_space<vmem>>, %arg4: memref<1x1x128xf32, #tpu.memory_space<vmem>>, %arg5: memref<9x128x128xbf16, #tpu.memory_space<vmem>>, %arg6: memref<1x8x8x4xf32, #tpu.memory_space<vmem>>, %arg7: memref<1x1x4xf32, #tpu.memory_space<vmem>>, %arg8: memref<1x1x4xf32, #tpu.memory_space<vmem>>, %arg9: memref<4x128xbf16, #tpu.memory_space<vmem>>, %arg10: memref<1x8x8x128xf32, #tpu.memory_space<vmem>>) attributes {dimension_semantics = [#tpu.dimension_semantics<parallel>], iteration_bounds = array<i64: 2>, scalar_prefetch = 0 : i64, scratch_operands = 0 : i64, tpu.core_type = #tpu.core_type<tc>, window_params = [{transform_indices = @transform_0, window_bounds = array<i64: 1, 10, 10, 128>}, {pipeline_mode = #tpu.pipeline_mode<synchronous>, transform_indices = @transform_1, window_bounds = array<i64: 1, 10, 10, 1>}, {pipeline_mode = #tpu.pipeline_mode<synchronous>, transform_indices = @transform_2, window_bounds = array<i64: 1, 1, 128>}, {pipeline_mode = #tpu.pipeline_mode<synchronous>, transform_indices = @transform_3, window_bounds = array<i64: 1, 1, 128>}, {pipeline_mode = #tpu.pipeline_mode<synchronous>, transform_indices = @transform_4, window_bounds = array<i64: 9, 128, 128>}, {transform_indices = @transform_5, window_bounds = array<i64: 1, 8, 8, 4>}, {pipeline_mode = #tpu.pipeline_mode<synchronous>, transform_indices = @transform_6, window_bounds = array<i64: 1, 1, 4>}, {pipeline_mode = #tpu.pipeline_mode<synchronous>, transform_indices = @transform_7, window_bounds = array<i64: 1, 1, 4>}, {pipeline_mode = #tpu.pipeline_mode<synchronous>, transform_indices = @transform_8, window_bounds = array<i64: 4, 128>}, {transform_indices = @transform_9, window_bounds = array<i64: 1, 8, 8, 128>}]} {
    %c0 = arith.constant 0 : index
    %c0_0 = arith.constant 0 : index
    %c0_1 = arith.constant 0 : index
    %0 = vector.load %arg3[%c0, %c0_0, %c0_1] : memref<1x1x128xf32, #tpu.memory_space<vmem>>, vector<1x1x128xf32>
    %c0_2 = arith.constant 0 : index
    %c0_3 = arith.constant 0 : index
    %c0_4 = arith.constant 0 : index
    %1 = vector.load %arg4[%c0_2, %c0_3, %c0_4] : memref<1x1x128xf32, #tpu.memory_space<vmem>>, vector<1x1x128xf32>
    %cst = arith.constant 0.000000e+00 : f32
    %2 = vector.broadcast %cst : f32 to vector<64x128xf32>
    %c0_5 = arith.constant 0 : index
    %c0_6 = arith.constant 0 : index
    %c0_7 = arith.constant 0 : index
    %c0_8 = arith.constant 0 : index
    %3 = vector.load %arg1[%c0_5, %c0_6, %c0_7, %c0_8] : memref<1x10x10x128xbf16, #tpu.memory_space<vmem>>, vector<1x8x8x128xbf16>
    %4 = vector.shape_cast %3 : vector<1x8x8x128xbf16> to vector<8x8x128xbf16>
    %5 = arith.extf %4 : vector<8x8x128xbf16> to vector<8x8x128xf32>
    %c0_9 = arith.constant 0 : index
    %c0_10 = arith.constant 0 : index
    %c0_11 = arith.constant 0 : index
    %c0_12 = arith.constant 0 : index
    %6 = vector.load %arg2[%c0_9, %c0_10, %c0_11, %c0_12] : memref<1x10x10x1xf32, #tpu.memory_space<vmem>>, vector<1x8x8x1xf32>
    %7 = vector.shape_cast %6 : vector<1x8x8x1xf32> to vector<8x8x1xf32>
    %8 = vector.broadcast %0 : vector<1x1x128xf32> to vector<8x8x128xf32>
    %9 = arith.mulf %5, %8 : vector<8x8x128xf32>
    %10 = vector.broadcast %1 : vector<1x1x128xf32> to vector<8x8x128xf32>
    %11 = arith.addf %9, %10 : vector<8x8x128xf32>
    %cst_13 = arith.constant 0.000000e+00 : f32
    %12 = vector.broadcast %cst_13 : f32 to vector<8x8x128xf32>
    %13 = arith.maximumf %11, %12 : vector<8x8x128xf32>
    %14 = vector.broadcast %7 : vector<8x8x1xf32> to vector<8x8x128xf32>
    %15 = arith.mulf %13, %14 : vector<8x8x128xf32>
    %16 = vector.shape_cast %15 : vector<8x8x128xf32> to vector<64x128xf32>
    %17 = arith.truncf %16 : vector<64x128xf32> to vector<64x128xbf16>
    %c0_14 = arith.constant 0 : index
    %c0_15 = arith.constant 0 : index
    %c0_16 = arith.constant 0 : index
    %18 = vector.load %arg5[%c0_14, %c0_15, %c0_16] : memref<9x128x128xbf16, #tpu.memory_space<vmem>>, vector<1x128x128xbf16>
    %19 = vector.shape_cast %18 : vector<1x128x128xbf16> to vector<128x128xbf16>
    %cst_17 = arith.constant dense<0.000000e+00> : vector<64x128xf32>
    %20 = tpu.matmul %17, %19, %cst_17 {dimension_numbers = #tpu.dot_dimension_numbers<[1], [0], [0], [1], [0, 0, 1, 1], [], []>} : vector<64x128xbf16>, vector<128x128xbf16>, vector<64x128xf32> -> vector<64x128xf32>
    %21 = arith.addf %2, %20 : vector<64x128xf32>
    %c0_18 = arith.constant 0 : index
    %c0_19 = arith.constant 0 : index
    %c1 = arith.constant 1 : index
    %c0_20 = arith.constant 0 : index
    %22 = vector.load %arg1[%c0_18, %c0_19, %c1, %c0_20] : memref<1x10x10x128xbf16, #tpu.memory_space<vmem>>, vector<1x8x8x128xbf16>
    %23 = vector.shape_cast %22 : vector<1x8x8x128xbf16> to vector<8x8x128xbf16>
    %24 = arith.extf %23 : vector<8x8x128xbf16> to vector<8x8x128xf32>
    %c0_21 = arith.constant 0 : index
    %c0_22 = arith.constant 0 : index
    %c1_23 = arith.constant 1 : index
    %c0_24 = arith.constant 0 : index
    %25 = vector.load %arg2[%c0_21, %c0_22, %c1_23, %c0_24] : memref<1x10x10x1xf32, #tpu.memory_space<vmem>>, vector<1x8x8x1xf32>
    %26 = vector.shape_cast %25 : vector<1x8x8x1xf32> to vector<8x8x1xf32>
    %27 = vector.broadcast %0 : vector<1x1x128xf32> to vector<8x8x128xf32>
    %28 = arith.mulf %24, %27 : vector<8x8x128xf32>
    %29 = vector.broadcast %1 : vector<1x1x128xf32> to vector<8x8x128xf32>
    %30 = arith.addf %28, %29 : vector<8x8x128xf32>
    %cst_25 = arith.constant 0.000000e+00 : f32
    %31 = vector.broadcast %cst_25 : f32 to vector<8x8x128xf32>
    %32 = arith.maximumf %30, %31 : vector<8x8x128xf32>
    %33 = vector.broadcast %26 : vector<8x8x1xf32> to vector<8x8x128xf32>
    %34 = arith.mulf %32, %33 : vector<8x8x128xf32>
    %35 = vector.shape_cast %34 : vector<8x8x128xf32> to vector<64x128xf32>
    %36 = arith.truncf %35 : vector<64x128xf32> to vector<64x128xbf16>
    %c1_26 = arith.constant 1 : index
    %c0_27 = arith.constant 0 : index
    %c0_28 = arith.constant 0 : index
    %37 = vector.load %arg5[%c1_26, %c0_27, %c0_28] : memref<9x128x128xbf16, #tpu.memory_space<vmem>>, vector<1x128x128xbf16>
    %38 = vector.shape_cast %37 : vector<1x128x128xbf16> to vector<128x128xbf16>
    %cst_29 = arith.constant dense<0.000000e+00> : vector<64x128xf32>
    %39 = tpu.matmul %36, %38, %cst_29 {dimension_numbers = #tpu.dot_dimension_numbers<[1], [0], [0], [1], [0, 0, 1, 1], [], []>} : vector<64x128xbf16>, vector<128x128xbf16>, vector<64x128xf32> -> vector<64x128xf32>
    %40 = arith.addf %21, %39 : vector<64x128xf32>
    %c0_30 = arith.constant 0 : index
    %c0_31 = arith.constant 0 : index
    %c2 = arith.constant 2 : index
    %c0_32 = arith.constant 0 : index
    %41 = vector.load %arg1[%c0_30, %c0_31, %c2, %c0_32] : memref<1x10x10x128xbf16, #tpu.memory_space<vmem>>, vector<1x8x8x128xbf16>
    %42 = vector.shape_cast %41 : vector<1x8x8x128xbf16> to vector<8x8x128xbf16>
    %43 = arith.extf %42 : vector<8x8x128xbf16> to vector<8x8x128xf32>
    %c0_33 = arith.constant 0 : index
    %c0_34 = arith.constant 0 : index
    %c2_35 = arith.constant 2 : index
    %c0_36 = arith.constant 0 : index
    %44 = vector.load %arg2[%c0_33, %c0_34, %c2_35, %c0_36] : memref<1x10x10x1xf32, #tpu.memory_space<vmem>>, vector<1x8x8x1xf32>
    %45 = vector.shape_cast %44 : vector<1x8x8x1xf32> to vector<8x8x1xf32>
    %46 = vector.broadcast %0 : vector<1x1x128xf32> to vector<8x8x128xf32>
    %47 = arith.mulf %43, %46 : vector<8x8x128xf32>
    %48 = vector.broadcast %1 : vector<1x1x128xf32> to vector<8x8x128xf32>
    %49 = arith.addf %47, %48 : vector<8x8x128xf32>
    %cst_37 = arith.constant 0.000000e+00 : f32
    %50 = vector.broadcast %cst_37 : f32 to vector<8x8x128xf32>
    %51 = arith.maximumf %49, %50 : vector<8x8x128xf32>
    %52 = vector.broadcast %45 : vector<8x8x1xf32> to vector<8x8x128xf32>
    %53 = arith.mulf %51, %52 : vector<8x8x128xf32>
    %54 = vector.shape_cast %53 : vector<8x8x128xf32> to vector<64x128xf32>
    %55 = arith.truncf %54 : vector<64x128xf32> to vector<64x128xbf16>
    %c2_38 = arith.constant 2 : index
    %c0_39 = arith.constant 0 : index
    %c0_40 = arith.constant 0 : index
    %56 = vector.load %arg5[%c2_38, %c0_39, %c0_40] : memref<9x128x128xbf16, #tpu.memory_space<vmem>>, vector<1x128x128xbf16>
    %57 = vector.shape_cast %56 : vector<1x128x128xbf16> to vector<128x128xbf16>
    %cst_41 = arith.constant dense<0.000000e+00> : vector<64x128xf32>
    %58 = tpu.matmul %55, %57, %cst_41 {dimension_numbers = #tpu.dot_dimension_numbers<[1], [0], [0], [1], [0, 0, 1, 1], [], []>} : vector<64x128xbf16>, vector<128x128xbf16>, vector<64x128xf32> -> vector<64x128xf32>
    %59 = arith.addf %40, %58 : vector<64x128xf32>
    %c0_42 = arith.constant 0 : index
    %c1_43 = arith.constant 1 : index
    %c0_44 = arith.constant 0 : index
    %c0_45 = arith.constant 0 : index
    %60 = vector.load %arg1[%c0_42, %c1_43, %c0_44, %c0_45] : memref<1x10x10x128xbf16, #tpu.memory_space<vmem>>, vector<1x8x8x128xbf16>
    %61 = vector.shape_cast %60 : vector<1x8x8x128xbf16> to vector<8x8x128xbf16>
    %62 = arith.extf %61 : vector<8x8x128xbf16> to vector<8x8x128xf32>
    %c0_46 = arith.constant 0 : index
    %c1_47 = arith.constant 1 : index
    %c0_48 = arith.constant 0 : index
    %c0_49 = arith.constant 0 : index
    %63 = vector.load %arg2[%c0_46, %c1_47, %c0_48, %c0_49] : memref<1x10x10x1xf32, #tpu.memory_space<vmem>>, vector<1x8x8x1xf32>
    %64 = vector.shape_cast %63 : vector<1x8x8x1xf32> to vector<8x8x1xf32>
    %65 = vector.broadcast %0 : vector<1x1x128xf32> to vector<8x8x128xf32>
    %66 = arith.mulf %62, %65 : vector<8x8x128xf32>
    %67 = vector.broadcast %1 : vector<1x1x128xf32> to vector<8x8x128xf32>
    %68 = arith.addf %66, %67 : vector<8x8x128xf32>
    %cst_50 = arith.constant 0.000000e+00 : f32
    %69 = vector.broadcast %cst_50 : f32 to vector<8x8x128xf32>
    %70 = arith.maximumf %68, %69 : vector<8x8x128xf32>
    %71 = vector.broadcast %64 : vector<8x8x1xf32> to vector<8x8x128xf32>
    %72 = arith.mulf %70, %71 : vector<8x8x128xf32>
    %73 = vector.shape_cast %72 : vector<8x8x128xf32> to vector<64x128xf32>
    %74 = arith.truncf %73 : vector<64x128xf32> to vector<64x128xbf16>
    %c3 = arith.constant 3 : index
    %c0_51 = arith.constant 0 : index
    %c0_52 = arith.constant 0 : index
    %75 = vector.load %arg5[%c3, %c0_51, %c0_52] : memref<9x128x128xbf16, #tpu.memory_space<vmem>>, vector<1x128x128xbf16>
    %76 = vector.shape_cast %75 : vector<1x128x128xbf16> to vector<128x128xbf16>
    %cst_53 = arith.constant dense<0.000000e+00> : vector<64x128xf32>
    %77 = tpu.matmul %74, %76, %cst_53 {dimension_numbers = #tpu.dot_dimension_numbers<[1], [0], [0], [1], [0, 0, 1, 1], [], []>} : vector<64x128xbf16>, vector<128x128xbf16>, vector<64x128xf32> -> vector<64x128xf32>
    %78 = arith.addf %59, %77 : vector<64x128xf32>
    %c0_54 = arith.constant 0 : index
    %c1_55 = arith.constant 1 : index
    %c1_56 = arith.constant 1 : index
    %c0_57 = arith.constant 0 : index
    %79 = vector.load %arg1[%c0_54, %c1_55, %c1_56, %c0_57] : memref<1x10x10x128xbf16, #tpu.memory_space<vmem>>, vector<1x8x8x128xbf16>
    %80 = vector.shape_cast %79 : vector<1x8x8x128xbf16> to vector<8x8x128xbf16>
    %81 = arith.extf %80 : vector<8x8x128xbf16> to vector<8x8x128xf32>
    %c0_58 = arith.constant 0 : index
    %c1_59 = arith.constant 1 : index
    %c1_60 = arith.constant 1 : index
    %c0_61 = arith.constant 0 : index
    %82 = vector.load %arg2[%c0_58, %c1_59, %c1_60, %c0_61] : memref<1x10x10x1xf32, #tpu.memory_space<vmem>>, vector<1x8x8x1xf32>
    %83 = vector.shape_cast %82 : vector<1x8x8x1xf32> to vector<8x8x1xf32>
    %84 = vector.broadcast %0 : vector<1x1x128xf32> to vector<8x8x128xf32>
    %85 = arith.mulf %81, %84 : vector<8x8x128xf32>
    %86 = vector.broadcast %1 : vector<1x1x128xf32> to vector<8x8x128xf32>
    %87 = arith.addf %85, %86 : vector<8x8x128xf32>
    %cst_62 = arith.constant 0.000000e+00 : f32
    %88 = vector.broadcast %cst_62 : f32 to vector<8x8x128xf32>
    %89 = arith.maximumf %87, %88 : vector<8x8x128xf32>
    %90 = vector.broadcast %83 : vector<8x8x1xf32> to vector<8x8x128xf32>
    %91 = arith.mulf %89, %90 : vector<8x8x128xf32>
    %92 = vector.shape_cast %91 : vector<8x8x128xf32> to vector<64x128xf32>
    %93 = arith.truncf %92 : vector<64x128xf32> to vector<64x128xbf16>
    %c4 = arith.constant 4 : index
    %c0_63 = arith.constant 0 : index
    %c0_64 = arith.constant 0 : index
    %94 = vector.load %arg5[%c4, %c0_63, %c0_64] : memref<9x128x128xbf16, #tpu.memory_space<vmem>>, vector<1x128x128xbf16>
    %95 = vector.shape_cast %94 : vector<1x128x128xbf16> to vector<128x128xbf16>
    %cst_65 = arith.constant dense<0.000000e+00> : vector<64x128xf32>
    %96 = tpu.matmul %93, %95, %cst_65 {dimension_numbers = #tpu.dot_dimension_numbers<[1], [0], [0], [1], [0, 0, 1, 1], [], []>} : vector<64x128xbf16>, vector<128x128xbf16>, vector<64x128xf32> -> vector<64x128xf32>
    %97 = arith.addf %78, %96 : vector<64x128xf32>
    %c0_66 = arith.constant 0 : index
    %c1_67 = arith.constant 1 : index
    %c2_68 = arith.constant 2 : index
    %c0_69 = arith.constant 0 : index
    %98 = vector.load %arg1[%c0_66, %c1_67, %c2_68, %c0_69] : memref<1x10x10x128xbf16, #tpu.memory_space<vmem>>, vector<1x8x8x128xbf16>
    %99 = vector.shape_cast %98 : vector<1x8x8x128xbf16> to vector<8x8x128xbf16>
    %100 = arith.extf %99 : vector<8x8x128xbf16> to vector<8x8x128xf32>
    %c0_70 = arith.constant 0 : index
    %c1_71 = arith.constant 1 : index
    %c2_72 = arith.constant 2 : index
    %c0_73 = arith.constant 0 : index
    %101 = vector.load %arg2[%c0_70, %c1_71, %c2_72, %c0_73] : memref<1x10x10x1xf32, #tpu.memory_space<vmem>>, vector<1x8x8x1xf32>
    %102 = vector.shape_cast %101 : vector<1x8x8x1xf32> to vector<8x8x1xf32>
    %103 = vector.broadcast %0 : vector<1x1x128xf32> to vector<8x8x128xf32>
    %104 = arith.mulf %100, %103 : vector<8x8x128xf32>
    %105 = vector.broadcast %1 : vector<1x1x128xf32> to vector<8x8x128xf32>
    %106 = arith.addf %104, %105 : vector<8x8x128xf32>
    %cst_74 = arith.constant 0.000000e+00 : f32
    %107 = vector.broadcast %cst_74 : f32 to vector<8x8x128xf32>
    %108 = arith.maximumf %106, %107 : vector<8x8x128xf32>
    %109 = vector.broadcast %102 : vector<8x8x1xf32> to vector<8x8x128xf32>
    %110 = arith.mulf %108, %109 : vector<8x8x128xf32>
    %111 = vector.shape_cast %110 : vector<8x8x128xf32> to vector<64x128xf32>
    %112 = arith.truncf %111 : vector<64x128xf32> to vector<64x128xbf16>
    %c5 = arith.constant 5 : index
    %c0_75 = arith.constant 0 : index
    %c0_76 = arith.constant 0 : index
    %113 = vector.load %arg5[%c5, %c0_75, %c0_76] : memref<9x128x128xbf16, #tpu.memory_space<vmem>>, vector<1x128x128xbf16>
    %114 = vector.shape_cast %113 : vector<1x128x128xbf16> to vector<128x128xbf16>
    %cst_77 = arith.constant dense<0.000000e+00> : vector<64x128xf32>
    %115 = tpu.matmul %112, %114, %cst_77 {dimension_numbers = #tpu.dot_dimension_numbers<[1], [0], [0], [1], [0, 0, 1, 1], [], []>} : vector<64x128xbf16>, vector<128x128xbf16>, vector<64x128xf32> -> vector<64x128xf32>
    %116 = arith.addf %97, %115 : vector<64x128xf32>
    %c0_78 = arith.constant 0 : index
    %c2_79 = arith.constant 2 : index
    %c0_80 = arith.constant 0 : index
    %c0_81 = arith.constant 0 : index
    %117 = vector.load %arg1[%c0_78, %c2_79, %c0_80, %c0_81] : memref<1x10x10x128xbf16, #tpu.memory_space<vmem>>, vector<1x8x8x128xbf16>
    %118 = vector.shape_cast %117 : vector<1x8x8x128xbf16> to vector<8x8x128xbf16>
    %119 = arith.extf %118 : vector<8x8x128xbf16> to vector<8x8x128xf32>
    %c0_82 = arith.constant 0 : index
    %c2_83 = arith.constant 2 : index
    %c0_84 = arith.constant 0 : index
    %c0_85 = arith.constant 0 : index
    %120 = vector.load %arg2[%c0_82, %c2_83, %c0_84, %c0_85] : memref<1x10x10x1xf32, #tpu.memory_space<vmem>>, vector<1x8x8x1xf32>
    %121 = vector.shape_cast %120 : vector<1x8x8x1xf32> to vector<8x8x1xf32>
    %122 = vector.broadcast %0 : vector<1x1x128xf32> to vector<8x8x128xf32>
    %123 = arith.mulf %119, %122 : vector<8x8x128xf32>
    %124 = vector.broadcast %1 : vector<1x1x128xf32> to vector<8x8x128xf32>
    %125 = arith.addf %123, %124 : vector<8x8x128xf32>
    %cst_86 = arith.constant 0.000000e+00 : f32
    %126 = vector.broadcast %cst_86 : f32 to vector<8x8x128xf32>
    %127 = arith.maximumf %125, %126 : vector<8x8x128xf32>
    %128 = vector.broadcast %121 : vector<8x8x1xf32> to vector<8x8x128xf32>
    %129 = arith.mulf %127, %128 : vector<8x8x128xf32>
    %130 = vector.shape_cast %129 : vector<8x8x128xf32> to vector<64x128xf32>
    %131 = arith.truncf %130 : vector<64x128xf32> to vector<64x128xbf16>
    %c6 = arith.constant 6 : index
    %c0_87 = arith.constant 0 : index
    %c0_88 = arith.constant 0 : index
    %132 = vector.load %arg5[%c6, %c0_87, %c0_88] : memref<9x128x128xbf16, #tpu.memory_space<vmem>>, vector<1x128x128xbf16>
    %133 = vector.shape_cast %132 : vector<1x128x128xbf16> to vector<128x128xbf16>
    %cst_89 = arith.constant dense<0.000000e+00> : vector<64x128xf32>
    %134 = tpu.matmul %131, %133, %cst_89 {dimension_numbers = #tpu.dot_dimension_numbers<[1], [0], [0], [1], [0, 0, 1, 1], [], []>} : vector<64x128xbf16>, vector<128x128xbf16>, vector<64x128xf32> -> vector<64x128xf32>
    %135 = arith.addf %116, %134 : vector<64x128xf32>
    %c0_90 = arith.constant 0 : index
    %c2_91 = arith.constant 2 : index
    %c1_92 = arith.constant 1 : index
    %c0_93 = arith.constant 0 : index
    %136 = vector.load %arg1[%c0_90, %c2_91, %c1_92, %c0_93] : memref<1x10x10x128xbf16, #tpu.memory_space<vmem>>, vector<1x8x8x128xbf16>
    %137 = vector.shape_cast %136 : vector<1x8x8x128xbf16> to vector<8x8x128xbf16>
    %138 = arith.extf %137 : vector<8x8x128xbf16> to vector<8x8x128xf32>
    %c0_94 = arith.constant 0 : index
    %c2_95 = arith.constant 2 : index
    %c1_96 = arith.constant 1 : index
    %c0_97 = arith.constant 0 : index
    %139 = vector.load %arg2[%c0_94, %c2_95, %c1_96, %c0_97] : memref<1x10x10x1xf32, #tpu.memory_space<vmem>>, vector<1x8x8x1xf32>
    %140 = vector.shape_cast %139 : vector<1x8x8x1xf32> to vector<8x8x1xf32>
    %141 = vector.broadcast %0 : vector<1x1x128xf32> to vector<8x8x128xf32>
    %142 = arith.mulf %138, %141 : vector<8x8x128xf32>
    %143 = vector.broadcast %1 : vector<1x1x128xf32> to vector<8x8x128xf32>
    %144 = arith.addf %142, %143 : vector<8x8x128xf32>
    %cst_98 = arith.constant 0.000000e+00 : f32
    %145 = vector.broadcast %cst_98 : f32 to vector<8x8x128xf32>
    %146 = arith.maximumf %144, %145 : vector<8x8x128xf32>
    %147 = vector.broadcast %140 : vector<8x8x1xf32> to vector<8x8x128xf32>
    %148 = arith.mulf %146, %147 : vector<8x8x128xf32>
    %149 = vector.shape_cast %148 : vector<8x8x128xf32> to vector<64x128xf32>
    %150 = arith.truncf %149 : vector<64x128xf32> to vector<64x128xbf16>
    %c7 = arith.constant 7 : index
    %c0_99 = arith.constant 0 : index
    %c0_100 = arith.constant 0 : index
    %151 = vector.load %arg5[%c7, %c0_99, %c0_100] : memref<9x128x128xbf16, #tpu.memory_space<vmem>>, vector<1x128x128xbf16>
    %152 = vector.shape_cast %151 : vector<1x128x128xbf16> to vector<128x128xbf16>
    %cst_101 = arith.constant dense<0.000000e+00> : vector<64x128xf32>
    %153 = tpu.matmul %150, %152, %cst_101 {dimension_numbers = #tpu.dot_dimension_numbers<[1], [0], [0], [1], [0, 0, 1, 1], [], []>} : vector<64x128xbf16>, vector<128x128xbf16>, vector<64x128xf32> -> vector<64x128xf32>
    %154 = arith.addf %135, %153 : vector<64x128xf32>
    %c0_102 = arith.constant 0 : index
    %c2_103 = arith.constant 2 : index
    %c2_104 = arith.constant 2 : index
    %c0_105 = arith.constant 0 : index
    %155 = vector.load %arg1[%c0_102, %c2_103, %c2_104, %c0_105] : memref<1x10x10x128xbf16, #tpu.memory_space<vmem>>, vector<1x8x8x128xbf16>
    %156 = vector.shape_cast %155 : vector<1x8x8x128xbf16> to vector<8x8x128xbf16>
    %157 = arith.extf %156 : vector<8x8x128xbf16> to vector<8x8x128xf32>
    %c0_106 = arith.constant 0 : index
    %c2_107 = arith.constant 2 : index
    %c2_108 = arith.constant 2 : index
    %c0_109 = arith.constant 0 : index
    %158 = vector.load %arg2[%c0_106, %c2_107, %c2_108, %c0_109] : memref<1x10x10x1xf32, #tpu.memory_space<vmem>>, vector<1x8x8x1xf32>
    %159 = vector.shape_cast %158 : vector<1x8x8x1xf32> to vector<8x8x1xf32>
    %160 = vector.broadcast %0 : vector<1x1x128xf32> to vector<8x8x128xf32>
    %161 = arith.mulf %157, %160 : vector<8x8x128xf32>
    %162 = vector.broadcast %1 : vector<1x1x128xf32> to vector<8x8x128xf32>
    %163 = arith.addf %161, %162 : vector<8x8x128xf32>
    %cst_110 = arith.constant 0.000000e+00 : f32
    %164 = vector.broadcast %cst_110 : f32 to vector<8x8x128xf32>
    %165 = arith.maximumf %163, %164 : vector<8x8x128xf32>
    %166 = vector.broadcast %159 : vector<8x8x1xf32> to vector<8x8x128xf32>
    %167 = arith.mulf %165, %166 : vector<8x8x128xf32>
    %168 = vector.shape_cast %167 : vector<8x8x128xf32> to vector<64x128xf32>
    %169 = arith.truncf %168 : vector<64x128xf32> to vector<64x128xbf16>
    %c8 = arith.constant 8 : index
    %c0_111 = arith.constant 0 : index
    %c0_112 = arith.constant 0 : index
    %170 = vector.load %arg5[%c8, %c0_111, %c0_112] : memref<9x128x128xbf16, #tpu.memory_space<vmem>>, vector<1x128x128xbf16>
    %171 = vector.shape_cast %170 : vector<1x128x128xbf16> to vector<128x128xbf16>
    %cst_113 = arith.constant dense<0.000000e+00> : vector<64x128xf32>
    %172 = tpu.matmul %169, %171, %cst_113 {dimension_numbers = #tpu.dot_dimension_numbers<[1], [0], [0], [1], [0, 0, 1, 1], [], []>} : vector<64x128xbf16>, vector<128x128xbf16>, vector<64x128xf32> -> vector<64x128xf32>
    %173 = arith.addf %154, %172 : vector<64x128xf32>
    %c0_114 = arith.constant 0 : index
    %c0_115 = arith.constant 0 : index
    %c0_116 = arith.constant 0 : index
    %c0_117 = arith.constant 0 : index
    %174 = vector.load %arg6[%c0_114, %c0_115, %c0_116, %c0_117] : memref<1x8x8x4xf32, #tpu.memory_space<vmem>>, vector<1x8x8x4xf32>
    %175 = vector.shape_cast %174 : vector<1x8x8x4xf32> to vector<8x8x4xf32>
    %c0_118 = arith.constant 0 : index
    %c0_119 = arith.constant 0 : index
    %c0_120 = arith.constant 0 : index
    %176 = vector.load %arg7[%c0_118, %c0_119, %c0_120] : memref<1x1x4xf32, #tpu.memory_space<vmem>>, vector<1x1x4xf32>
    %177 = vector.broadcast %176 : vector<1x1x4xf32> to vector<8x8x4xf32>
    %178 = arith.mulf %175, %177 : vector<8x8x4xf32>
    %c0_121 = arith.constant 0 : index
    %c0_122 = arith.constant 0 : index
    %c0_123 = arith.constant 0 : index
    %179 = vector.load %arg8[%c0_121, %c0_122, %c0_123] : memref<1x1x4xf32, #tpu.memory_space<vmem>>, vector<1x1x4xf32>
    %180 = vector.broadcast %179 : vector<1x1x4xf32> to vector<8x8x4xf32>
    %181 = arith.addf %178, %180 : vector<8x8x4xf32>
    %cst_124 = arith.constant 0.000000e+00 : f32
    %182 = vector.broadcast %cst_124 : f32 to vector<8x8x4xf32>
    %183 = arith.maximumf %181, %182 : vector<8x8x4xf32>
    %184 = vector.shape_cast %183 : vector<8x8x4xf32> to vector<64x4xf32>
    %185 = arith.truncf %184 : vector<64x4xf32> to vector<64x4xbf16>
    %c0_125 = arith.constant 0 : index
    %c0_126 = arith.constant 0 : index
    %186 = vector.load %arg9[%c0_125, %c0_126] : memref<4x128xbf16, #tpu.memory_space<vmem>>, vector<4x128xbf16>
    %cst_127 = arith.constant dense<0.000000e+00> : vector<64x128xf32>
    %187 = tpu.matmul %185, %186, %cst_127 {dimension_numbers = #tpu.dot_dimension_numbers<[1], [0], [0], [1], [0, 0, 1, 1], [], []>} : vector<64x4xbf16>, vector<4x128xbf16>, vector<64x128xf32> -> vector<64x128xf32>
    %188 = arith.addf %173, %187 : vector<64x128xf32>
    %189 = vector.shape_cast %188 : vector<64x128xf32> to vector<8x8x128xf32>
    %c0_128 = arith.constant 0 : index
    %c0_129 = arith.constant 0 : index
    %c0_130 = arith.constant 0 : index
    %c0_131 = arith.constant 0 : index
    %190 = vector.load %arg10[%c0_128, %c0_129, %c0_130, %c0_131] : memref<1x8x8x128xf32, #tpu.memory_space<vmem>>, vector<1x8x8x128xf32>
    %191 = vector.shape_cast %190 : vector<1x8x8x128xf32> to vector<8x8x128xf32>
    %192 = vector.shape_cast %189 : vector<8x8x128xf32> to vector<1x8x8x128xf32>
    tpu.vector_store %arg10[%c0_128, %c0_129, %c0_130, %c0_131], %192 {strides = array<i32>} : memref<1x8x8x128xf32, #tpu.memory_space<vmem>>, vector<1x8x8x128xf32>,
    return
  }
  func.func @transform_0(%arg0: i32) -> (i32, i32, i32, i32) {
    %c0_i32 = arith.constant 0 : i32
    %c0_i32_0 = arith.constant 0 : i32
    %c0_i32_1 = arith.constant 0 : i32
    %c0_i32_2 = arith.constant 0 : i32
    return %arg0, %c0_i32, %c0_i32_0, %c0_i32_1 : i32, i32, i32, i32
  }
  func.func @transform_1(%arg0: i32) -> (i32, i32, i32, i32) {
    %c0_i32 = arith.constant 0 : i32
    %c0_i32_0 = arith.constant 0 : i32
    %c0_i32_1 = arith.constant 0 : i32
    %c0_i32_2 = arith.constant 0 : i32
    %c0_i32_3 = arith.constant 0 : i32
    return %c0_i32, %c0_i32_0, %c0_i32_1, %c0_i32_2 : i32, i32, i32, i32
  }
  func.func @transform_2(%arg0: i32) -> (i32, i32, i32) {
    %c0_i32 = arith.constant 0 : i32
    %c0_i32_0 = arith.constant 0 : i32
    %c0_i32_1 = arith.constant 0 : i32
    %c0_i32_2 = arith.constant 0 : i32
    return %c0_i32, %c0_i32_0, %c0_i32_1 : i32, i32, i32
  }
  func.func @transform_3(%arg0: i32) -> (i32, i32, i32) {
    %c0_i32 = arith.constant 0 : i32
    %c0_i32_0 = arith.constant 0 : i32
    %c0_i32_1 = arith.constant 0 : i32
    %c0_i32_2 = arith.constant 0 : i32
    return %c0_i32, %c0_i32_0, %c0_i32_1 : i32, i32, i32
  }
  func.func @transform_4(%arg0: i32) -> (i32, i32, i32) {
    %c0_i32 = arith.constant 0 : i32
    %c0_i32_0 = arith.constant 0 : i32
    %c0_i32_1 = arith.constant 0 : i32
    %c0_i32_2 = arith.constant 0 : i32
    return %c0_i32, %c0_i32_0, %c0_i32_1 : i32, i32, i32
  }
  func.func @transform_5(%arg0: i32) -> (i32, i32, i32, i32) {
    %c0_i32 = arith.constant 0 : i32
    %c0_i32_0 = arith.constant 0 : i32
    %c0_i32_1 = arith.constant 0 : i32
    %c0_i32_2 = arith.constant 0 : i32
    return %arg0, %c0_i32, %c0_i32_0, %c0_i32_1 : i32, i32, i32, i32
  }
  func.func @transform_6(%arg0: i32) -> (i32, i32, i32) {
    %c0_i32 = arith.constant 0 : i32
    %c0_i32_0 = arith.constant 0 : i32
    %c0_i32_1 = arith.constant 0 : i32
    %c0_i32_2 = arith.constant 0 : i32
    return %c0_i32, %c0_i32_0, %c0_i32_1 : i32, i32, i32
  }
  func.func @transform_7(%arg0: i32) -> (i32, i32, i32) {
    %c0_i32 = arith.constant 0 : i32
    %c0_i32_0 = arith.constant 0 : i32
    %c0_i32_1 = arith.constant 0 : i32
    %c0_i32_2 = arith.constant 0 : i32
    return %c0_i32, %c0_i32_0, %c0_i32_1 : i32, i32, i32
  }
  func.func @transform_8(%arg0: i32) -> (i32, i32) {
    %c0_i32 = arith.constant 0 : i32
    %c0_i32_0 = arith.constant 0 : i32
    %c0_i32_1 = arith.constant 0 : i32
    return %c0_i32, %c0_i32_0 : i32, i32
  }
  func.func @transform_9(%arg0: i32) -> (i32, i32, i32, i32) {
    %c0_i32 = arith.constant 0 : i32
    %c0_i32_0 = arith.constant 0 : i32
    %c0_i32_1 = arith.constant 0 : i32
    %c0_i32_2 = arith.constant 0 : i32
    return %arg0, %c0_i32, %c0_i32_0, %c0_i32_1 : i32, i32, i32, i32
  }
}

</mosaic_0001>

<llo_original>
// kernel: _block_forward.3
$region0: #{_block_forward.3}
  #allocation0 [shape = 'u32[]', space=smem, size = 0x4, offset = 0x4, fixed_abs, tag = 'smem constant byte address 0x4 - core index']
  #allocation1 [shape = 'u32[144,128]{1,0:T(1,128)}', space=vmem, size = 0x12000, scoped, tag = 'internal scratch']
  %s0 = inlined_call_operand.vmem [shape: f32[16,128], index: 0, kind: input, shape index: {}]
  %s1 = inlined_call_operand.vmem [shape: f32[1,2,128], index: 1, kind: output, shape index: {}]
  %s2 = sld [smem:[#allocation0]]
  $region14: #{_block_forward.3} parent=0
    _
  %s4 = ssub.s32 1, %s2
  %s5 = scalar_select 0, %s4, %s2
  // Predicated region
  $region2: #{_block_forward.3} parent=0 // pred_check
    _
  $region3: #{_block_forward.3} parent=0 // pred_check_branch
    %7 = sbr.rel (0) target = $region5
  $region4: #{_block_forward.3} parent=0 // pred_region
    _
  $region5: #{_block_forward.3} parent=0 // pred_fallthru
    _
  %v8 = vld [vmem:[%s0] sm:$0xff]
  %v9 = vld [vmem:[%s0 + $0x8] sm:$0xff]
  %v10 = vadd.f32 %v8, %v9
  %v11 = vrot.slane %v10, 4
  %v12 = vadd.f32 %v10, %v11
  %v13 = vrot.slane %v12, 2
  %v14 = vadd.f32 %v12, %v13
  %v15 = vrot.slane %v14, 1
  %v16 = vadd.f32 %v14, %v15
  %17 = vst [vmem:[%s1] sm:$0x1] %v16
  %v18 = vmul.f32 %v8, %v8
  %v19 = vmul.f32 %v9, %v9
  %v20 = vadd.f32 %v18, %v19
  %v21 = vrot.slane %v20, 4
  %v22 = vadd.f32 %v20, %v21
  %v23 = vrot.slane %v22, 2
  %v24 = vadd.f32 %v22, %v23
  %v25 = vrot.slane %v24, 1
  %v26 = vadd.f32 %v24, %v25
  %27 = vst [vmem:[%s1 + $0x1] sm:$0x1] %v26
  // Predicated region
  $region6: #{_block_forward.3} parent=0 // pred_check
    _
  $region7: #{_block_forward.3} parent=0 // pred_check_branch
    %29 = sbr.rel (0) target = $region9
  $region8: #{_block_forward.3} parent=0 // pred_region
    _
  $region9: #{_block_forward.3} parent=0 // pred_fallthru
    _
  // Predicated region
  $region10: #{_block_forward.3} parent=0 // pred_check
    _
  $region11: #{_block_forward.3} parent=0 // pred_check_branch
    %31 = sbr.rel (0) target = $region13
  $region12: #{_block_forward.3} parent=0 // pred_region
    _
  $region13: #{_block_forward.3} parent=0 // pred_fallthru
    _

// kernel: _block_forward.4
$region0: #{_block_forward.4}
  #allocation0 [shape = 'u32[]', space=smem, size = 0x4, offset = 0x4, fixed_abs, tag = 'smem constant byte address 0x4 - core index']
  #allocation1 [shape = 'u32[144,128]{1,0:T(1,128)}', space=vmem, size = 0x12000, scoped, tag = 'internal scratch']
  %s0 = inlined_call_operand.vmem [shape: f32[2,9,9,4], index: 0, kind: input, shape index: {}]
  %s1 = inlined_call_operand.vmem [shape: f32[2,9,9,4], index: 1, kind: input, shape index: {}]
  %s2 = inlined_call_operand.vmem [shape: f32[2,9,9,4], index: 2, kind: input, shape index: {}]
  %s3 = inlined_call_operand.vmem [shape: f32[2,9,9,4], index: 3, kind: input, shape index: {}]
  %s4 = inlined_call_operand.vmem [shape: f32[1,9,9,1], index: 4, kind: input, shape index: {}]
  %s5 = inlined_call_operand.vmem [shape: f32[1,9,9,1], index: 5, kind: input, shape index: {}]
  %s6 = inlined_call_operand.vmem [shape: f32[1,9,9,1], index: 6, kind: input, shape index: {}]
  %s7 = inlined_call_operand.vmem [shape: f32[1,9,9,1], index: 7, kind: input, shape index: {}]
  %s8 = inlined_call_operand.vmem [shape: f32[1,1,4], index: 8, kind: input, shape index: {}]
  %s9 = inlined_call_operand.vmem [shape: f32[1,1,4], index: 9, kind: input, shape index: {}]
  %s10 = inlined_call_operand.vmem [shape: bf16[9,4,128], index: 10, kind: input, shape index: {}]
  %s11 = inlined_call_operand.vmem [shape: bf16[2,10,10,128], index: 11, kind: output, shape index: {0}]
  %s12 = inlined_call_operand.vmem [shape: f32[2,2,128], index: 12, kind: output, shape index: {1}]
  %13 = xla_tuple %s11, %s12
  %s14 = sld [smem:[#allocation0]]
  $region85: #{_block_forward.4} parent=0
    _
  %s16 = ssub.s32 1, %s14
  %s17 = scalar_select 0, %s16, %s14
  loop: start=0, step=1, limit=4
  $region2: #{_block_forward.4} parent=0 // loop_pre_header
    _
  $region3: #{_block_forward.4} parent=0 // loop_header
    %s19 = sphi 0, %s23
    %p20 = scmp.ge.s32.totalorder %s19, 4
    %s29 = sphi 0, %s31
    %s32 = sphi 0, %s29
    %s33 = sphi 0, %s32
    %s49 = sphi 0, %s33
    %s55 = sphi 0, %s57
    %s58 = sphi 0, %s55
    %s59 = sphi 0, %s58
    %s75 = sphi 0, %s59
    %s81 = sphi 0, %s83
    %s84 = sphi 0, %s81
    %s85 = sphi 0, %s84
    %s101 = sphi 0, %s85
    %s107 = sphi 0, %s109
    %s110 = sphi 0, %s107
    %s111 = sphi 0, %s110
    %s127 = sphi 0, %s111
    %s131 = sphi 0, %s131
    %s133 = sphi 0, %s131
    %s134 = sphi 0, %s133
    %s148 = sphi 0, %s134
    %s152 = sphi 0, %s152
    %s154 = sphi 0, %s152
    %s155 = sphi 0, %s154
    %s169 = sphi 0, %s155
    %s173 = sphi 0, %s173
    %s175 = sphi 0, %s173
    %s176 = sphi 0, %s175
    %s190 = sphi 0, %s176
    %s194 = sphi 0, %s194
    %s196 = sphi 0, %s194
    %s197 = sphi 0, %s196
    %s211 = sphi 0, %s197
    %s215 = sphi 0, %s215
    %s217 = sphi 0, %s215
    %s218 = sphi 0, %s217
    %s232 = sphi 0, %s218
    %s236 = sphi 0, %s236
    %s238 = sphi 0, %s236
    %s239 = sphi 0, %s238
    %s253 = sphi 0, %s239
    %s257 = sphi 0, %s257
    %s259 = sphi 0, %s257
    %s260 = sphi 0, %s259
    %s274 = sphi 0, %s260
    %s280 = sphi 0, %s282
    %s283 = sphi 0, %s280
    %s284 = sphi 0, %s283
    %s300 = sphi 0, %s284
    %s306 = sphi 0, %s308
    %s309 = sphi 0, %s306
    %s310 = sphi 0, %s309
    %s326 = sphi 0, %s310
  $region4: #{_block_forward.4} parent=0 // loop_header_branch
    %22 = sbr.rel (%p20) target = $region8
  $region5: #{_block_forward.4} parent=0 // loop_body
    %s24 = ssub.s32 %s19, 1
    %s25 = ssub.s32 %s19, 2
    %s26 = sadd.s32 %s19, 1
    %s27 = ssub.s32 %s19, %s26
    %p28 = scmp.eq.s32.totalorder %s27, 0
    %s30 = sadd.s32 %s29, 1
    %s31 = scalar_select %p28, %s29, %s30
    %p34 = pneg %p28
    %p35 = scmp.eq.s32.totalorder %s19, 1
    %p36 = por %p34, %p35
    %p37 = scmp.ne.s32.totalorder %s29, %s32
    %p38 = scmp.eq.s32.totalorder %s19, 0
    %p39 = por %p37, %p38
    %p40 = scmp.ne.s32.totalorder %s29, %s32
    %p41 = scmp.eq.s32.totalorder %s24, 1
    %p42 = por %p40, %p41
    %p43 = scmp.ne.s32.totalorder %s32, %s33
    %p44 = scmp.eq.s32.totalorder %s24, 0
    %p45 = por %p43, %p44
    %p46 = scmp.ne.s32.totalorder %s32, %s33
    %p47 = scmp.eq.s32.totalorder %s25, 1
    %p48 = por %p46, %p47
    %p50 = scmp.ne.s32.totalorder %s33, %s49
    %p51 = scmp.eq.s32.totalorder %s25, 0
    %p52 = por %p50, %p51
    %s53 = ssub.s32 %s19, %s26
    %p54 = scmp.eq.s32.totalorder %s53, 0
    %s56 = sadd.s32 %s55, 1
    %s57 = scalar_select %p54, %s55, %s56
    %p60 = pneg %p54
    %p61 = scmp.eq.s32.totalorder %s19, 1
    %p62 = por %p60, %p61
    %p63 = scmp.ne.s32.totalorder %s55, %s58
    %p64 = scmp.eq.s32.totalorder %s19, 0
    %p65 = por %p63, %p64
    %p66 = scmp.ne.s32.totalorder %s55, %s58
    %p67 = scmp.eq.s32.totalorder %s24, 1
    %p68 = por %p66, %p67
    %p69 = scmp.ne.s32.totalorder %s58, %s59
    %p70 = scmp.eq.s32.totalorder %s24, 0
    %p71 = por %p69, %p70
    %p72 = scmp.ne.s32.totalorder %s58, %s59
    %p73 = scmp.eq.s32.totalorder %s25, 1
    %p74 = por %p72, %p73
    %p76 = scmp.ne.s32.totalorder %s59, %s75
    %p77 = scmp.eq.s32.totalorder %s25, 0
    %p78 = por %p76, %p77
    %s79 = ssub.s32 %s19, %s26
    %p80 = scmp.eq.s32.totalorder %s79, 0
    %s82 = sadd.s32 %s81, 1
    %s83 = scalar_select %p80, %s81, %s82
    %p86 = pneg %p80
    %p87 = scmp.eq.s32.totalorder %s19, 1
    %p88 = por %p86, %p87
    %p89 = scmp.ne.s32.totalorder %s81, %s84
    %p90 = scmp.eq.s32.totalorder %s19, 0
    %p91 = por %p89, %p90
    %p92 = scmp.ne.s32.totalorder %s81, %s84
    %p93 = scmp.eq.s32.totalorder %s24, 1
    %p94 = por %p92, %p93
    %p95 = scmp.ne.s32.totalorder %s84, %s85
    %p96 = scmp.eq.s32.totalorder %s24, 0
    %p97 = por %p95, %p96
    %p98 = scmp.ne.s32.totalorder %s84, %s85
    %p99 = scmp.eq.s32.totalorder %s25, 1
    %p100 = por %p98, %p99
    %p102 = scmp.ne.s32.totalorder %s85, %s101
    %p103 = scmp.eq.s32.totalorder %s25, 0
    %p104 = por %p102, %p103
    %s105 = ssub.s32 %s19, %s26
    %p106 = scmp.eq.s32.totalorder %s105, 0
    %s108 = sadd.s32 %s107, 1
    %s109 = scalar_select %p106, %s107, %s108
    %p112 = pneg %p106
    %p113 = scmp.eq.s32.totalorder %s19, 1
    %p114 = por %p112, %p113
    %p115 = scmp.ne.s32.totalorder %s107, %s110
    %p116 = scmp.eq.s32.totalorder %s19, 0
    %p117 = por %p115, %p116
    %p118 = scmp.ne.s32.totalorder %s107, %s110
    %p119 = scmp.eq.s32.totalorder %s24, 1
    %p120 = por %p118, %p119
    %p121 = scmp.ne.s32.totalorder %s110, %s111
    %p122 = scmp.eq.s32.totalorder %s24, 0
    %p123 = por %p121, %p122
    %p124 = scmp.ne.s32.totalorder %s110, %s111
    %p125 = scmp.eq.s32.totalorder %s25, 1
    %p126 = por %p124, %p125
    %p128 = scmp.ne.s32.totalorder %s111, %s127
    %p129 = scmp.eq.s32.totalorder %s25, 0
    %p130 = por %p128, %p129
    %s132 = sadd.s32 %s131, 1
    %p135 = scmp.eq.s32.totalorder %s19, 1
    %p136 = scmp.ne.s32.totalorder %s131, %s133
    %p137 = scmp.eq.s32.totalorder %s19, 0
    %p138 = por %p136, %p137
    %p139 = scmp.ne.s32.totalorder %s131, %s133
    %p140 = scmp.eq.s32.totalorder %s24, 1
    %p141 = por %p139, %p140
    %p142 = scmp.ne.s32.totalorder %s133, %s134
    %p143 = scmp.eq.s32.totalorder %s24, 0
    %p144 = por %p142, %p143
    %p145 = scmp.ne.s32.totalorder %s133, %s134
    %p146 = scmp.eq.s32.totalorder %s25, 1
    %p147 = por %p145, %p146
    %p149 = scmp.ne.s32.totalorder %s134, %s148
    %p150 = scmp.eq.s32.totalorder %s25, 0
    %p151 = por %p149, %p150
    %s153 = sadd.s32 %s152, 1
    %p156 = scmp.eq.s32.totalorder %s19, 1
    %p157 = scmp.ne.s32.totalorder %s152, %s154
    %p158 = scmp.eq.s32.totalorder %s19, 0
    %p159 = por %p157, %p158
    %p160 = scmp.ne.s32.totalorder %s152, %s154
    %p161 = scmp.eq.s32.totalorder %s24, 1
    %p162 = por %p160, %p161
    %p163 = scmp.ne.s32.totalorder %s154, %s155
    %p164 = scmp.eq.s32.totalorder %s24, 0
    %p165 = por %p163, %p164
    %p166 = scmp.ne.s32.totalorder %s154, %s155
    %p167 = scmp.eq.s32.totalorder %s25, 1
    %p168 = por %p166, %p167
    %p170 = scmp.ne.s32.totalorder %s155, %s169
    %p171 = scmp.eq.s32.totalorder %s25, 0
    %p172 = por %p170, %p171
    %s174 = sadd.s32 %s173, 1
    %p177 = scmp.eq.s32.totalorder %s19, 1
    %p178 = scmp.ne.s32.totalorder %s173, %s175
    %p179 = scmp.eq.s32.totalorder %s19, 0
    %p180 = por %p178, %p179
    %p181 = scmp.ne.s32.totalorder %s173, %s175
    %p182 = scmp.eq.s32.totalorder %s24, 1
    %p183 = por %p181, %p182
    %p184 = scmp.ne.s32.totalorder %s175, %s176
    %p185 = scmp.eq.s32.totalorder %s24, 0
    %p186 = por %p184, %p185
    %p187 = scmp.ne.s32.totalorder %s175, %s176
    %p188 = scmp.eq.s32.totalorder %s25, 1
    %p189 = por %p187, %p188
    %p191 = scmp.ne.s32.totalorder %s176, %s190
    %p192 = scmp.eq.s32.totalorder %s25, 0
    %p193 = por %p191, %p192
    %s195 = sadd.s32 %s194, 1
    %p198 = scmp.eq.s32.totalorder %s19, 1
    %p199 = scmp.ne.s32.totalorder %s194, %s196
    %p200 = scmp.eq.s32.totalorder %s19, 0
    %p201 = por %p199, %p200
    %p202 = scmp.ne.s32.totalorder %s194, %s196
    %p203 = scmp.eq.s32.totalorder %s24, 1
    %p204 = por %p202, %p203
    %p205 = scmp.ne.s32.totalorder %s196, %s197
    %p206 = scmp.eq.s32.totalorder %s24, 0
    %p207 = por %p205, %p206
    %p208 = scmp.ne.s32.totalorder %s196, %s197
    %p209 = scmp.eq.s32.totalorder %s25, 1
    %p210 = por %p208, %p209
    %p212 = scmp.ne.s32.totalorder %s197, %s211
    %p213 = scmp.eq.s32.totalorder %s25, 0
    %p214 = por %p212, %p213
    %s216 = sadd.s32 %s215, 1
    %p219 = scmp.eq.s32.totalorder %s19, 1
    %p220 = scmp.ne.s32.totalorder %s215, %s217
    %p221 = scmp.eq.s32.totalorder %s19, 0
    %p222 = por %p220, %p221
    %p223 = scmp.ne.s32.totalorder %s215, %s217
    %p224 = scmp.eq.s32.totalorder %s24, 1
    %p225 = por %p223, %p224
    %p226 = scmp.ne.s32.totalorder %s217, %s218
    %p227 = scmp.eq.s32.totalorder %s24, 0
    %p228 = por %p226, %p227
    %p229 = scmp.ne.s32.totalorder %s217, %s218
    %p230 = scmp.eq.s32.totalorder %s25, 1
    %p231 = por %p229, %p230
    %p233 = scmp.ne.s32.totalorder %s218, %s232
    %p234 = scmp.eq.s32.totalorder %s25, 0
    %p235 = por %p233, %p234
    %s237 = sadd.s32 %s236, 1
    %p240 = scmp.eq.s32.totalorder %s19, 1
    %p241 = scmp.ne.s32.totalorder %s236, %s238
    %p242 = scmp.eq.s32.totalorder %s19, 0
    %p243 = por %p241, %p242
    %p244 = scmp.ne.s32.totalorder %s236, %s238
    %p245 = scmp.eq.s32.totalorder %s24, 1
    %p246 = por %p244, %p245
    %p247 = scmp.ne.s32.totalorder %s238, %s239
    %p248 = scmp.eq.s32.totalorder %s24, 0
    %p249 = por %p247, %p248
    %p250 = scmp.ne.s32.totalorder %s238, %s239
    %p251 = scmp.eq.s32.totalorder %s25, 1
    %p252 = por %p250, %p251
    %p254 = scmp.ne.s32.totalorder %s239, %s253
    %p255 = scmp.eq.s32.totalorder %s25, 0
    %p256 = por %p254, %p255
    %s258 = sadd.s32 %s257, 1
    %p261 = scmp.eq.s32.totalorder %s19, 1
    %p262 = scmp.ne.s32.totalorder %s257, %s259
    %p263 = scmp.eq.s32.totalorder %s19, 0
    %p264 = por %p262, %p263
    %p265 = scmp.ne.s32.totalorder %s257, %s259
    %p266 = scmp.eq.s32.totalorder %s24, 1
    %p267 = por %p265, %p266
    %p268 = scmp.ne.s32.totalorder %s259, %s260
    %p269 = scmp.eq.s32.totalorder %s24, 0
    %p270 = por %p268, %p269
    %p271 = scmp.ne.s32.totalorder %s259, %s260
    %p272 = scmp.eq.s32.totalorder %s25, 1
    %p273 = por %p271, %p272
    %p275 = scmp.ne.s32.totalorder %s260, %s274
    %p276 = scmp.eq.s32.totalorder %s25, 0
    %p277 = por %p275, %p276
    %s278 = ssub.s32 %s19, %s26
    %p279 = scmp.eq.s32.totalorder %s278, 0
    %s281 = sadd.s32 %s280, 1
    %s282 = scalar_select %p279, %s280, %s281
    %p285 = pneg %p279
    %p286 = scmp.eq.s32.totalorder %s19, 1
    %p287 = por %p285, %p286
    %p288 = scmp.ne.s32.totalorder %s280, %s283
    %p289 = scmp.eq.s32.totalorder %s19, 0
    %p290 = por %p288, %p289
    %p291 = scmp.ne.s32.totalorder %s280, %s283
    %p292 = scmp.eq.s32.totalorder %s24, 1
    %p293 = por %p291, %p292
    %p294 = scmp.ne.s32.totalorder %s283, %s284
    %p295 = scmp.eq.s32.totalorder %s24, 0
    %p296 = por %p294, %p295
    %p297 = scmp.ne.s32.totalorder %s283, %s284
    %p298 = scmp.eq.s32.totalorder %s25, 1
    %p299 = por %p297, %p298
    %p301 = scmp.ne.s32.totalorder %s284, %s300
    %p302 = scmp.eq.s32.totalorder %s25, 0
    %p303 = por %p301, %p302
    %s304 = ssub.s32 %s19, %s26
    %p305 = scmp.eq.s32.totalorder %s304, 0
    %s307 = sadd.s32 %s306, 1
    %s308 = scalar_select %p305, %s306, %s307
    %p311 = pneg %p305
    %p312 = scmp.eq.s32.totalorder %s19, 1
    %p313 = por %p311, %p312
    %p314 = scmp.ne.s32.totalorder %s306, %s309
    %p315 = scmp.eq.s32.totalorder %s19, 0
    %p316 = por %p314, %p315
    %p317 = scmp.ne.s32.totalorder %s306, %s309
    %p318 = scmp.eq.s32.totalorder %s24, 1
    %p319 = por %p317, %p318
    %p320 = scmp.ne.s32.totalorder %s309, %s310
    %p321 = scmp.eq.s32.totalorder %s24, 0
    %p322 = por %p320, %p321
    %p323 = scmp.ne.s32.totalorder %s309, %s310
    %p324 = scmp.eq.s32.totalorder %s25, 1
    %p325 = por %p323, %p324
    %p327 = scmp.ne.s32.totalorder %s310, %s326
    %p328 = scmp.eq.s32.totalorder %s25, 0
    %p329 = por %p327, %p328
    %p330 = scmp.le.s32.totalorder 1, %s19
    %p331 = scmp.lt.s32.totalorder %s19, 3
    %p332 = pnand %p330, %p331
    %p333 = pneg %p332
    // Predicated region
    $region9: #{_block_forward.4} parent=5 // pred_check
      _
    $region10: #{_block_forward.4} parent=5 // pred_check_branch
      %335 = sbr.rel (%p332) target = $region12
    $region11: #{_block_forward.4} parent=5 // pred_region
      %s336 = ssub.s32 %s19, 1
      // Predicated region
      $region13: #{_block_forward.4} parent=11 // pred_check
        %p337 = pneg %p144
      $region14: #{_block_forward.4} parent=11 // pred_check_branch
        %339 = sbr.rel (%p337) target = $region16
      $region15: #{_block_forward.4} parent=11 // pred_region
        _
      $region16: #{_block_forward.4} parent=11 // pred_fallthru
        _
      // Predicated region
      $region17: #{_block_forward.4} parent=11 // pred_check
        %p340 = pneg %p165
      $region18: #{_block_forward.4} parent=11 // pred_check_branch
        %342 = sbr.rel (%p340) target = $region20
      $region19: #{_block_forward.4} parent=11 // pred_region
        _
      $region20: #{_block_forward.4} parent=11 // pred_fallthru
        _
      // Predicated region
      $region21: #{_block_forward.4} parent=11 // pred_check
        %p343 = pneg %p186
      $region22: #{_block_forward.4} parent=11 // pred_check_branch
        %345 = sbr.rel (%p343) target = $region24
      $region23: #{_block_forward.4} parent=11 // pred_region
        _
      $region24: #{_block_forward.4} parent=11 // pred_fallthru
        _
      // Predicated region
      $region25: #{_block_forward.4} parent=11 // pred_check
        %p346 = pneg %p207
      $region26: #{_block_forward.4} parent=11 // pred_check_branch
        %348 = sbr.rel (%p346) target = $region28
      $region27: #{_block_forward.4} parent=11 // pred_region
        _
      $region28: #{_block_forward.4} parent=11 // pred_fallthru
        _
      // Predicated region
      $region29: #{_block_forward.4} parent=11 // pred_check
        %p349 = pneg %p228
      $region30: #{_block_forward.4} parent=11 // pred_check_branch
        %351 = sbr.rel (%p349) target = $region32
      $region31: #{_block_forward.4} parent=11 // pred_region
        _
      $region32: #{_block_forward.4} parent=11 // pred_fallthru
        _
      // Predicated region
      $region33: #{_block_forward.4} parent=11 // pred_check
        %p352 = pneg %p249
      $region34: #{_block_forward.4} parent=11 // pred_check_branch
        %354 = sbr.rel (%p352) target = $region36
      $region35: #{_block_forward.4} parent=11 // pred_region
        _
      $region36: #{_block_forward.4} parent=11 // pred_fallthru
        _
      // Predicated region
      $region37: #{_block_forward.4} parent=11 // pred_check
        %p355 = pneg %p270
      $region38: #{_block_forward.4} parent=11 // pred_check_branch
        %357 = sbr.rel (%p355) target = $region40
      $region39: #{_block_forward.4} parent=11 // pred_region
        _
      $region40: #{_block_forward.4} parent=11 // pred_fallthru
        _
    $region12: #{_block_forward.4} parent=5 // pred_fallthru
      _
    %p358 = scmp.lt.s32.totalorder %s19, 2
    // Predicated region
    $region41: #{_block_forward.4} parent=5 // pred_check
      %p359 = pneg %p358
    $region42: #{_block_forward.4} parent=5 // pred_check_branch
      %361 = sbr.rel (%p359) target = $region44
    $region43: #{_block_forward.4} parent=5 // pred_region
      // Predicated region
      $region45: #{_block_forward.4} parent=43 // pred_check
        %p362 = pneg %p39
      $region46: #{_block_forward.4} parent=43 // pred_check_branch
        %364 = sbr.rel (%p362) target = $region48
      $region47: #{_block_forward.4} parent=43 // pred_region
        %p365 = scmp.lt.s32.totalorder %s19, 1
        %s366 = scalar_select %p365, %s19, 1
        %s367 = smul.addr %s366, 18
        %s368 = smul.addr %s367, 8
        %s369 = scalar_lea.vmem %s0, %s368
      $region48: #{_block_forward.4} parent=43 // pred_fallthru
        _
      // Predicated region
      $region49: #{_block_forward.4} parent=43 // pred_check
        %p370 = pneg %p65
      $region50: #{_block_forward.4} parent=43 // pred_check_branch
        %372 = sbr.rel (%p370) target = $region52
      $region51: #{_block_forward.4} parent=43 // pred_region
        %p373 = scmp.lt.s32.totalorder %s19, 1
        %s374 = scalar_select %p373, %s19, 1
        %s375 = smul.addr %s374, 18
        %s376 = smul.addr %s375, 8
        %s377 = scalar_lea.vmem %s1, %s376
      $region52: #{_block_forward.4} parent=43 // pred_fallthru
        _
      // Predicated region
      $region53: #{_block_forward.4} parent=43 // pred_check
        %p378 = pneg %p91
      $region54: #{_block_forward.4} parent=43 // pred_check_branch
        %380 = sbr.rel (%p378) target = $region56
      $region55: #{_block_forward.4} parent=43 // pred_region
        %p381 = scmp.lt.s32.totalorder %s19, 1
        %s382 = scalar_select %p381, %s19, 1
        %s383 = smul.addr %s382, 18
        %s384 = smul.addr %s383, 8
        %s385 = scalar_lea.vmem %s2, %s384
      $region56: #{_block_forward.4} parent=43 // pred_fallthru
        _
      // Predicated region
      $region57: #{_block_forward.4} parent=43 // pred_check
        %p386 = pneg %p117
      $region58: #{_block_forward.4} parent=43 // pred_check_branch
        %388 = sbr.rel (%p386) target = $region60
      $region59: #{_block_forward.4} parent=43 // pred_region
        %p389 = scmp.lt.s32.totalorder %s19, 1
        %s390 = scalar_select %p389, %s19, 1
        %s391 = smul.addr %s390, 18
        %s392 = smul.addr %s391, 8
        %s393 = scalar_lea.vmem %s3, %s392
      $region60: #{_block_forward.4} parent=43 // pred_fallthru
        _
    $region44: #{_block_forward.4} parent=5 // pred_fallthru
      _
    %p394 = scmp.le.s32.totalorder 1, %s19
    %p395 = scmp.lt.s32.totalorder %s19, 3
    %p396 = pnand %p394, %p395
    %p397 = pneg %p396
    // Predicated region
    $region61: #{_block_forward.4} parent=5 // pred_check
      _
    $region62: #{_block_forward.4} parent=5 // pred_check_branch
      %399 = sbr.rel (%p396) target = $region64
    $region63: #{_block_forward.4} parent=5 // pred_region
      %s400 = ssub.s32 %s19, 1
      %p401 = scmp.lt.s32.totalorder %s24, 1
      %s402 = scalar_select %p401, %s24, 1
      %s403 = smul.addr %s402, 18
      %s404 = smul.addr %s403, 8
      %s405 = scalar_lea.vmem %s0, %s404
      %p406 = pneg %p45
      %p407 = pneg %p42
      %p408 = scmp.lt.s32.totalorder %s24, 1
      %s409 = scalar_select %p408, %s24, 1
      %s410 = smul.addr %s409, 18
      %s411 = smul.addr %s410, 8
      %s412 = scalar_lea.vmem %s1, %s411
      %p413 = pneg %p71
      %p414 = pneg %p68
      %p415 = scmp.lt.s32.totalorder %s24, 1
      %s416 = scalar_select %p415, %s24, 1
      %s417 = smul.addr %s416, 18
      %s418 = smul.addr %s417, 8
      %s419 = scalar_lea.vmem %s2, %s418
      %p420 = pneg %p97
      %p421 = pneg %p94
      %p422 = scmp.lt.s32.totalorder %s24, 1
      %s423 = scalar_select %p422, %s24, 1
      %s424 = smul.addr %s423, 18
      %s425 = smul.addr %s424, 8
      %s426 = scalar_lea.vmem %s3, %s425
      %p427 = pneg %p123
      %p428 = pneg %p120
      %p429 = pneg %p144
      %p430 = pneg %p141
      %p431 = pneg %p165
      %p432 = pneg %p162
      %p433 = pneg %p186
      %p434 = pneg %p183
      %p435 = pneg %p207
      %p436 = pneg %p204
      %p437 = pneg %p228
      %p438 = pneg %p225
      %p439 = pneg %p249
      %p440 = pneg %p246
      %p441 = pneg %p270
      %p442 = pneg %p267
      %p443 = pneg %p296
      %p444 = pneg %p293
      %p445 = scmp.lt.s32.totalorder %s24, 1
      %s446 = scalar_select %p445, %s24, 1
      %s447 = smul.addr %s446, 20
      %s448 = smul.addr %s447, 4
      %s449 = scalar_lea.vmem %s11, %s448
      %p450 = pneg %p322
      %p451 = pneg %p319
      %p452 = scmp.lt.s32.totalorder %s24, 1
      %s453 = scalar_select %p452, %s24, 1
      %s454 = smul.addr %s453, 2
      %s455 = scalar_lea.vmem %s12, %s454
      %p456 = scmp.lt.s32.totalorder %s24, 1
      %s457 = scalar_select %p456, %s24, 1
      %s458 = smul.addr %s457, 18
      %s459 = smul.addr %s458, 8
      %s460 = scalar_lea.vmem %s0, %s459
      %p461 = scmp.lt.s32.totalorder %s24, 1
      %s462 = scalar_select %p461, %s24, 1
      %s463 = smul.addr %s462, 18
      %s464 = smul.addr %s463, 8
      %s465 = scalar_lea.vmem %s1, %s464
      %p466 = scmp.lt.s32.totalorder %s24, 1
      %s467 = scalar_select %p466, %s24, 1
      %s468 = smul.addr %s467, 18
      %s469 = smul.addr %s468, 8
      %s470 = scalar_lea.vmem %s2, %s469
      %p471 = scmp.lt.s32.totalorder %s24, 1
      %s472 = scalar_select %p471, %s24, 1
      %s473 = smul.addr %s472, 18
      %s474 = smul.addr %s473, 8
      %s475 = scalar_lea.vmem %s3, %s474
      %p476 = scmp.lt.s32.totalorder %s24, 1
      %s477 = scalar_select %p476, %s24, 1
      %s478 = smul.addr %s477, 20
      %s479 = smul.addr %s478, 4
      %s480 = scalar_lea.vmem %s11, %s479
      %p481 = scmp.lt.s32.totalorder %s24, 1
      %s482 = scalar_select %p481, %s24, 1
      %s483 = smul.addr %s482, 2
      %s484 = scalar_lea.vmem %s12, %s483
      %v486 = vld [vmem:[%s8] sm:$0x1]
      %v487 = vld [vmem:[%s9] sm:$0x1]
      %v488 = vld [vmem:[%s460] sm:$0xff]
      %v489 = vld [vmem:[%s460 + $0x10] sm:$0xff]
      %v490 = vld [vmem:[%s460 + $0x20] sm:$0xff]
      %v491 = vld [vmem:[%s460 + $0x30] sm:$0xff]
      %v492 = vld [vmem:[%s460 + $0x40] sm:$0xff]
      %v493 = vld [vmem:[%s460 + $0x50] sm:$0xff]
      %v494 = vld [vmem:[%s460 + $0x60] sm:$0xff]
      %v495 = vld [vmem:[%s460 + $0x70] sm:$0xff]
      %v496 = vld [vmem:[%s4] sm:$0xff]
      %v497 = vld [vmem:[%s4 + $0x10] sm:$0xff]
      %v498 = vld [vmem:[%s4 + $0x20] sm:$0xff]
      %v499 = vld [vmem:[%s4 + $0x30] sm:$0xff]
      %v500 = vld [vmem:[%s4 + $0x40] sm:$0xff]
      %v501 = vld [vmem:[%s4 + $0x50] sm:$0xff]
      %v502 = vld [vmem:[%s4 + $0x60] sm:$0xff]
      %v503 = vld [vmem:[%s4 + $0x70] sm:$0xff]
      %v505 = vlaneseq
      %v506 = vshrl.u32 %v505, 7
      %v507 = vsub.s32 0, %v506
      %v508 = vrot.slane %v486, %v507
      %v510 = vmul.f32 %v488, %v508
      %v511 = vmul.f32 %v489, %v508
      %v512 = vmul.f32 %v490, %v508
      %v513 = vmul.f32 %v491, %v508
      %v514 = vmul.f32 %v492, %v508
      %v515 = vmul.f32 %v493, %v508
      %v516 = vmul.f32 %v494, %v508
      %v517 = vmul.f32 %v495, %v508
      %v519 = vlaneseq
      %v520 = vshrl.u32 %v519, 7
      %v521 = vsub.s32 0, %v520
      %v522 = vrot.slane %v487, %v521
      %v524 = vadd.f32 %v510, %v522
      %v525 = vadd.f32 %v511, %v522
      %v526 = vadd.f32 %v512, %v522
      %v527 = vadd.f32 %v513, %v522
      %v528 = vadd.f32 %v514, %v522
      %v529 = vadd.f32 %v515, %v522
      %v530 = vadd.f32 %v516, %v522
      %v531 = vadd.f32 %v517, %v522
      %v532 = vmax.f32 %v524, 0.0
      %v533 = vmax.f32 %v525, 0.0
      %v534 = vmax.f32 %v526, 0.0
      %v535 = vmax.f32 %v527, 0.0
      %v536 = vmax.f32 %v528, 0.0
      %v537 = vmax.f32 %v529, 0.0
      %v538 = vmax.f32 %v530, 0.0
      %v539 = vmax.f32 %v531, 0.0
      %541 = vset.pattern.permute.xlu0 0
      %542 = vperm.xlu0 %541, %v496
      %v543 = vpop.permute.xlu0 %542
      %546 = vset.pattern.permute.xlu0 0
      %547 = vperm.xlu0 %546, %v497
      %v548 = vpop.permute.xlu0 %547
      %551 = vset.pattern.permute.xlu0 0
      %552 = vperm.xlu0 %551, %v498
      %v553 = vpop.permute.xlu0 %552
      %556 = vset.pattern.permute.xlu0 0
      %557 = vperm.xlu0 %556, %v499
      %v558 = vpop.permute.xlu0 %557
      %561 = vset.pattern.permute.xlu0 0
      %562 = vperm.xlu0 %561, %v500
      %v563 = vpop.permute.xlu0 %562
      %566 = vset.pattern.permute.xlu0 0
      %567 = vperm.xlu0 %566, %v501
      %v568 = vpop.permute.xlu0 %567
      %571 = vset.pattern.permute.xlu0 0
      %572 = vperm.xlu0 %571, %v502
      %v573 = vpop.permute.xlu0 %572
      %576 = vset.pattern.permute.xlu0 0
      %577 = vperm.xlu0 %576, %v503
      %v578 = vpop.permute.xlu0 %577
      %v580 = vmul.f32 %v532, %v543
      %v581 = vmul.f32 %v533, %v548
      %v582 = vmul.f32 %v534, %v553
      %v583 = vmul.f32 %v535, %v558
      %v584 = vmul.f32 %v536, %v563
      %v585 = vmul.f32 %v537, %v568
      %v586 = vmul.f32 %v538, %v573
      %v587 = vmul.f32 %v539, %v578
      %v588 = vpack.c.bf16 %v581, %v580
      %v589 = vpack.c.bf16 %v583, %v582
      %v590 = vpack.c.bf16 %v585, %v584
      %v591 = vpack.c.bf16 %v587, %v586
      %v592 = vld [vmem:[%s10] sm:$0x3]
      %v593 = vld [vmem:[%s465] sm:$0xff]
      %v594 = vld [vmem:[%s465 + $0x10] sm:$0xff]
      %v595 = vld [vmem:[%s465 + $0x20] sm:$0xff]
      %v596 = vld [vmem:[%s465 + $0x30] sm:$0xff]
      %v597 = vld [vmem:[%s465 + $0x40] sm:$0xff]
      %v598 = vld [vmem:[%s465 + $0x50] sm:$0xff]
      %v599 = vld [vmem:[%s465 + $0x60] sm:$0xff]
      %v600 = vld [vmem:[%s465 + $0x70] sm:$0xff]
      %v601 = vld [vmem:[%s5] sm:$0xff]
      %v602 = vld [vmem:[%s5 + $0x10] sm:$0xff]
      %v603 = vld [vmem:[%s5 + $0x20] sm:$0xff]
      %v604 = vld [vmem:[%s5 + $0x30] sm:$0xff]
      %v605 = vld [vmem:[%s5 + $0x40] sm:$0xff]
      %v606 = vld [vmem:[%s5 + $0x50] sm:$0xff]
      %v607 = vld [vmem:[%s5 + $0x60] sm:$0xff]
      %v608 = vld [vmem:[%s5 + $0x70] sm:$0xff]
      %v609 = vmul.f32 %v593, %v508
      %v610 = vmul.f32 %v594, %v508
      %v611 = vmul.f32 %v595, %v508
      %v612 = vmul.f32 %v596, %v508
      %v613 = vmul.f32 %v597, %v508
      %v614 = vmul.f32 %v598, %v508
      %v615 = vmul.f32 %v599, %v508
      %v616 = vmul.f32 %v600, %v508
      %v617 = vadd.f32 %v609, %v522
      %v618 = vadd.f32 %v610, %v522
      %v619 = vadd.f32 %v611, %v522
      %v620 = vadd.f32 %v612, %v522
      %v621 = vadd.f32 %v613, %v522
      %v622 = vadd.f32 %v614, %v522
      %v623 = vadd.f32 %v615, %v522
      %v624 = vadd.f32 %v616, %v522
      %v625 = vmax.f32 %v617, 0.0
      %v626 = vmax.f32 %v618, 0.0
      %v627 = vmax.f32 %v619, 0.0
      %v628 = vmax.f32 %v620, 0.0
      %v629 = vmax.f32 %v621, 0.0
      %v630 = vmax.f32 %v622, 0.0
      %v631 = vmax.f32 %v623, 0.0
      %v632 = vmax.f32 %v624, 0.0
      %634 = vset.pattern.permute.xlu0 0
      %635 = vperm.xlu0 %634, %v601
      %v636 = vpop.permute.xlu0 %635
      %639 = vset.pattern.permute.xlu0 0
      %640 = vperm.xlu0 %639, %v602
      %v641 = vpop.permute.xlu0 %640
      %644 = vset.pattern.permute.xlu0 0
      %645 = vperm.xlu0 %644, %v603
      %v646 = vpop.permute.xlu0 %645
      %649 = vset.pattern.permute.xlu0 0
      %650 = vperm.xlu0 %649, %v604
      %v651 = vpop.permute.xlu0 %650
      %654 = vset.pattern.permute.xlu0 0
      %655 = vperm.xlu0 %654, %v605
      %v656 = vpop.permute.xlu0 %655
      %659 = vset.pattern.permute.xlu0 0
      %660 = vperm.xlu0 %659, %v606
      %v661 = vpop.permute.xlu0 %660
      %664 = vset.pattern.permute.xlu0 0
      %665 = vperm.xlu0 %664, %v607
      %v666 = vpop.permute.xlu0 %665
      %669 = vset.pattern.permute.xlu0 0
      %670 = vperm.xlu0 %669, %v608
      %v671 = vpop.permute.xlu0 %670
      %v673 = vmul.f32 %v625, %v636
      %v674 = vmul.f32 %v626, %v641
      %v675 = vmul.f32 %v627, %v646
      %v676 = vmul.f32 %v628, %v651
      %v677 = vmul.f32 %v629, %v656
      %v678 = vmul.f32 %v630, %v661
      %v679 = vmul.f32 %v631, %v666
      %v680 = vmul.f32 %v632, %v671
      %v681 = vpack.c.bf16 %v674, %v673
      %v682 = vpack.c.bf16 %v676, %v675
      %v683 = vpack.c.bf16 %v678, %v677
      %v684 = vpack.c.bf16 %v680, %v679
      %s685 = scalar_lea.vmem %s10, 2
      %v686 = vld [vmem:[%s685] sm:$0x3]
      %vm687 = vcmask 31744
      %v689 = vsel %vm687, %v681, 0
      %v692 = vsel %vm687, %v682, 0
      %v695 = vsel %vm687, %v683, 0
      %v698 = vsel %vm687, %v684, 0
      %vm700 = vcmask 1041408
      %v702 = vsel %vm700, %v686, 0
      %704 = vmatprep.subr.bf16.mxu0 0
      %705 = vmatpush1.bf16.msra.mxu0 %v702
      %706 = vmatprep.subr.bf16.mxu0 0
      %707 = vmatpush1.bf16.msra.mxu0 0
      %708 = vmatprep.subr.bf16.mxu0 0
      %709 = vmatpush1.bf16.msra.mxu0 0
      %710 = vmatprep.subr.bf16.mxu0 0
      %711 = vmatpush1.bf16.msra.mxu0 0
      %712 = vmatprep.subr.bf16.mxu0 0
      %713 = vmatpush1.bf16.msra.mxu0 0
      %714 = vmatprep.subr.bf16.mxu0 0
      %715 = vmatpush1.bf16.msra.mxu0 0
      %716 = vmatprep.subr.bf16.mxu0 0
      %717 = vmatpush1.bf16.msra.mxu0 0
      %718 = vmatprep.subr.bf16.mxu0 0
      %719 = vmatpush1.bf16.msra.mxu0 0
      %720 = vmatprep.subr.bf16.mxu0 0
      %721 = vmatpush1.bf16.msra.mxu0 0
      %722 = vmatprep.subr.bf16.mxu0 0
      %723 = vmatpush1.bf16.msra.mxu0 0
      %724 = vmatprep.subr.bf16.mxu0 0
      %725 = vmatpush1.bf16.msra.mxu0 0
      %726 = vmatprep.subr.bf16.mxu0 0
      %727 = vmatpush1.bf16.msra.mxu0 0
      %728 = vmatprep.subr.bf16.mxu0 0
      %729 = vmatpush1.bf16.msra.mxu0 0
      %730 = vmatprep.subr.bf16.mxu0 0
      %731 = vmatpush1.bf16.msra.mxu0 0
      %732 = vmatprep.subr.bf16.mxu0 0
      %733 = vmatpush1.bf16.msra.mxu0 0
      %734 = vmatprep.subr.bf16.mxu0 0
      %735 = vmatpush1.bf16.msra.mxu0 0
      %736 = vmatprep.mubr.bf16.mxu0 0
      %737 = vmatmul.mubr.bf16.gmra.mrb[0].mxu0 %v689
      %v738 = vpop.f32.mrb[0].mxu0
      %v739 = vadd.f32 0.0, %v738
      %v740 = vpop.f32.mrb[0].mxu0
      %v741 = vpop.f32.mrb[0].mxu0
      %v742 = vadd.f32 0.0, %v741
      %v743 = vpop.f32.mrb[0].mxu0
      %744 = vmatprep.mubr.bf16.mxu0 0
      %745 = vmatmul.mubr.bf16.gmra.mrb[0].mxu0 %v692
      %v746 = vpop.f32.mrb[0].mxu0
      %v747 = vadd.f32 0.0, %v746
      %v748 = vpop.f32.mrb[0].mxu0
      %v749 = vpop.f32.mrb[0].mxu0
      %v750 = vadd.f32 0.0, %v749
      %v751 = vpop.f32.mrb[0].mxu0
      %752 = vmatprep.mubr.bf16.mxu0 0
      %753 = vmatmul.mubr.bf16.gmra.mrb[0].mxu0 %v695
      %v754 = vpop.f32.mrb[0].mxu0
      %v755 = vadd.f32 0.0, %v754
      %v756 = vpop.f32.mrb[0].mxu0
      %v757 = vpop.f32.mrb[0].mxu0
      %v758 = vadd.f32 0.0, %v757
      %v759 = vpop.f32.mrb[0].mxu0
      %760 = vmatprep.mubr.bf16.mxu0 0
      %761 = vmatmul.mubr.bf16.gmra.mrb[0].mxu0 %v698
      %v762 = vpop.f32.mrb[0].mxu0
      %v763 = vadd.f32 0.0, %v762
      %v764 = vpop.f32.mrb[0].mxu0
      %v765 = vpop.f32.mrb[0].mxu0
      %v766 = vadd.f32 0.0, %v765
      %v767 = vpop.f32.mrb[0].mxu0
      %768 = vdwg.mxu0
      %v770 = vsel %vm687, %v588, 0
      %v773 = vsel %vm687, %v589, 0
      %v776 = vsel %vm687, %v590, 0
      %v779 = vsel %vm687, %v591, 0
      %v782 = vsel %vm700, %v592, 0
      %784 = vmatprep.subr.bf16.mxu0 0
      %785 = vmatpush1.bf16.msra.mxu0 %v782
      %786 = vmatprep.subr.bf16.mxu0 0
      %787 = vmatpush1.bf16.msra.mxu0 0
      %788 = vmatprep.subr.bf16.mxu0 0
      %789 = vmatpush1.bf16.msra.mxu0 0
      %790 = vmatprep.subr.bf16.mxu0 0
      %791 = vmatpush1.bf16.msra.mxu0 0
      %792 = vmatprep.subr.bf16.mxu0 0
      %793 = vmatpush1.bf16.msra.mxu0 0
      %794 = vmatprep.subr.bf16.mxu0 0
      %795 = vmatpush1.bf16.msra.mxu0 0
      %796 = vmatprep.subr.bf16.mxu0 0
      %797 = vmatpush1.bf16.msra.mxu0 0
      %798 = vmatprep.subr.bf16.mxu0 0
      %799 = vmatpush1.bf16.msra.mxu0 0
      %800 = vmatprep.subr.bf16.mxu0 0
      %801 = vmatpush1.bf16.msra.mxu0 0
      %802 = vmatprep.subr.bf16.mxu0 0
      %803 = vmatpush1.bf16.msra.mxu0 0
      %804 = vmatprep.subr.bf16.mxu0 0
      %805 = vmatpush1.bf16.msra.mxu0 0
      %806 = vmatprep.subr.bf16.mxu0 0
      %807 = vmatpush1.bf16.msra.mxu0 0
      %808 = vmatprep.subr.bf16.mxu0 0
      %809 = vmatpush1.bf16.msra.mxu0 0
      %810 = vmatprep.subr.bf16.mxu0 0
      %811 = vmatpush1.bf16.msra.mxu0 0
      %812 = vmatprep.subr.bf16.mxu0 0
      %813 = vmatpush1.bf16.msra.mxu0 0
      %814 = vmatprep.subr.bf16.mxu0 0
      %815 = vmatpush1.bf16.msra.mxu0 0
      %816 = vmatprep.mubr.bf16.mxu0 0
      %817 = vmatmul.mubr.bf16.gmra.mrb[0].mxu0 %v770
      %v818 = vpop.f32.mrb[0].mxu0
      %v819 = vadd.f32 %v739, %v818
      %v820 = vpop.f32.mrb[0].mxu0
      %v821 = vpop.f32.mrb[0].mxu0
      %v822 = vadd.f32 %v742, %v821
      %v823 = vpop.f32.mrb[0].mxu0
      %824 = vmatprep.mubr.bf16.mxu0 0
      %825 = vmatmul.mubr.bf16.gmra.mrb[0].mxu0 %v773
      %v826 = vpop.f32.mrb[0].mxu0
      %v827 = vadd.f32 %v747, %v826
      %v828 = vpop.f32.mrb[0].mxu0
      %v829 = vpop.f32.mrb[0].mxu0
      %v830 = vadd.f32 %v750, %v829
      %v831 = vpop.f32.mrb[0].mxu0
      %832 = vmatprep.mubr.bf16.mxu0 0
      %833 = vmatmul.mubr.bf16.gmra.mrb[0].mxu0 %v776
      %v834 = vpop.f32.mrb[0].mxu0
      %v835 = vadd.f32 %v755, %v834
      %v836 = vpop.f32.mrb[0].mxu0
      %v837 = vpop.f32.mrb[0].mxu0
      %v838 = vadd.f32 %v758, %v837
      %v839 = vpop.f32.mrb[0].mxu0
      %840 = vmatprep.mubr.bf16.mxu0 0
      %841 = vmatmul.mubr.bf16.gmra.mrb[0].mxu0 %v779
      %v842 = vpop.f32.mrb[0].mxu0
      %v843 = vadd.f32 %v763, %v842
      %v844 = vpop.f32.mrb[0].mxu0
      %v845 = vpop.f32.mrb[0].mxu0
      %v846 = vadd.f32 %v766, %v845
      %v847 = vpop.f32.mrb[0].mxu0
      %848 = vdwg.mxu0
      %v849 = vld [vmem:[%s460 + $0x1] sm:$0xff]
      %v850 = vld [vmem:[%s460 + $0x11] sm:$0xff]
      %v851 = vld [vmem:[%s460 + $0x21] sm:$0xff]
      %v852 = vld [vmem:[%s460 + $0x31] sm:$0xff]
      %v853 = vld [vmem:[%s460 + $0x41] sm:$0xff]
      %v854 = vld [vmem:[%s460 + $0x51] sm:$0xff]
      %v855 = vld [vmem:[%s460 + $0x61] sm:$0xff]
      %v856 = vld [vmem:[%s460 + $0x71] sm:$0xff]
      %v857 = vld [vmem:[%s4 + $0x1] sm:$0xff]
      %v858 = vld [vmem:[%s4 + $0x11] sm:$0xff]
      %v859 = vld [vmem:[%s4 + $0x21] sm:$0xff]
      %v860 = vld [vmem:[%s4 + $0x31] sm:$0xff]
      %v861 = vld [vmem:[%s4 + $0x41] sm:$0xff]
      %v862 = vld [vmem:[%s4 + $0x51] sm:$0xff]
      %v863 = vld [vmem:[%s4 + $0x61] sm:$0xff]
      %v864 = vld [vmem:[%s4 + $0x71] sm:$0xff]
      %v865 = vmul.f32 %v849, %v508
      %v866 = vmul.f32 %v850, %v508
      %v867 = vmul.f32 %v851, %v508
      %v868 = vmul.f32 %v852, %v508
      %v869 = vmul.f32 %v853, %v508
      %v870 = vmul.f32 %v854, %v508
      %v871 = vmul.f32 %v855, %v508
      %v872 = vmul.f32 %v856, %v508
      %v873 = vadd.f32 %v865, %v522
      %v874 = vadd.f32 %v866, %v522
      %v875 = vadd.f32 %v867, %v522
      %v876 = vadd.f32 %v868, %v522
      %v877 = vadd.f32 %v869, %v522
      %v878 = vadd.f32 %v870, %v522
      %v879 = vadd.f32 %v871, %v522
      %v880 = vadd.f32 %v872, %v522
      %v881 = vmax.f32 %v873, 0.0
      %v882 = vmax.f32 %v874, 0.0
      %v883 = vmax.f32 %v875, 0.0
      %v884 = vmax.f32 %v876, 0.0
      %v885 = vmax.f32 %v877, 0.0
      %v886 = vmax.f32 %v878, 0.0
      %v887 = vmax.f32 %v879, 0.0
      %v888 = vmax.f32 %v880, 0.0
      %890 = vset.pattern.permute.xlu0 0
      %891 = vperm.xlu0 %890, %v857
      %v892 = vpop.permute.xlu0 %891
      %895 = vset.pattern.permute.xlu0 0
      %896 = vperm.xlu0 %895, %v858
      %v897 = vpop.permute.xlu0 %896
      %900 = vset.pattern.permute.xlu0 0
      %901 = vperm.xlu0 %900, %v859
      %v902 = vpop.permute.xlu0 %901
      %905 = vset.pattern.permute.xlu0 0
      %906 = vperm.xlu0 %905, %v860
      %v907 = vpop.permute.xlu0 %906
      %910 = vset.pattern.permute.xlu0 0
      %911 = vperm.xlu0 %910, %v861
      %v912 = vpop.permute.xlu0 %911
      %915 = vset.pattern.permute.xlu0 0
      %916 = vperm.xlu0 %915, %v862
      %v917 = vpop.permute.xlu0 %916
      %920 = vset.pattern.permute.xlu0 0
      %921 = vperm.xlu0 %920, %v863
      %v922 = vpop.permute.xlu0 %921
      %925 = vset.pattern.permute.xlu0 0
      %926 = vperm.xlu0 %925, %v864
      %v927 = vpop.permute.xlu0 %926
      %v929 = vmul.f32 %v881, %v892
      %v930 = vmul.f32 %v882, %v897
      %v931 = vmul.f32 %v883, %v902
      %v932 = vmul.f32 %v884, %v907
      %v933 = vmul.f32 %v885, %v912
      %v934 = vmul.f32 %v886, %v917
      %v935 = vmul.f32 %v887, %v922
      %v936 = vmul.f32 %v888, %v927
      %v937 = vpack.c.bf16 %v930, %v929
      %v938 = vpack.c.bf16 %v932, %v931
      %v939 = vpack.c.bf16 %v934, %v933
      %v940 = vpack.c.bf16 %v936, %v935
      %s941 = scalar_lea.vmem %s10, 4
      %v942 = vld [vmem:[%s941] sm:$0x3]
      %v944 = vsel %vm687, %v937, 0
      %v947 = vsel %vm687, %v938, 0
      %v950 = vsel %vm687, %v939, 0
      %v953 = vsel %vm687, %v940, 0
      %v956 = vsel %vm700, %v942, 0
      %958 = vmatprep.subr.bf16.mxu0 0
      %959 = vmatpush1.bf16.msra.mxu0 %v956
      %960 = vmatprep.subr.bf16.mxu0 0
      %961 = vmatpush1.bf16.msra.mxu0 0
      %962 = vmatprep.subr.bf16.mxu0 0
      %963 = vmatpush1.bf16.msra.mxu0 0
      %964 = vmatprep.subr.bf16.mxu0 0
      %965 = vmatpush1.bf16.msra.mxu0 0
      %966 = vmatprep.subr.bf16.mxu0 0
      %967 = vmatpush1.bf16.msra.mxu0 0
      %968 = vmatprep.subr.bf16.mxu0 0
      %969 = vmatpush1.bf16.msra.mxu0 0
      %970 = vmatprep.subr.bf16.mxu0 0
      %971 = vmatpush1.bf16.msra.mxu0 0
      %972 = vmatprep.subr.bf16.mxu0 0
      %973 = vmatpush1.bf16.msra.mxu0 0
      %974 = vmatprep.subr.bf16.mxu0 0
      %975 = vmatpush1.bf16.msra.mxu0 0
      %976 = vmatprep.subr.bf16.mxu0 0
      %977 = vmatpush1.bf16.msra.mxu0 0
      %978 = vmatprep.subr.bf16.mxu0 0
      %979 = vmatpush1.bf16.msra.mxu0 0
      %980 = vmatprep.subr.bf16.mxu0 0
      %981 = vmatpush1.bf16.msra.mxu0 0
      %982 = vmatprep.subr.bf16.mxu0 0
      %983 = vmatpush1.bf16.msra.mxu0 0
      %984 = vmatprep.subr.bf16.mxu0 0
      %985 = vmatpush1.bf16.msra.mxu0 0
      %986 = vmatprep.subr.bf16.mxu0 0
      %987 = vmatpush1.bf16.msra.mxu0 0
      %988 = vmatprep.subr.bf16.mxu0 0
      %989 = vmatpush1.bf16.msra.mxu0 0
      %990 = vmatprep.mubr.bf16.mxu0 0
      %991 = vmatmul.mubr.bf16.gmra.mrb[0].mxu0 %v944
      %v992 = vpop.f32.mrb[0].mxu0
      %v993 = vadd.f32 0.0, %v992
      %v994 = vpop.f32.mrb[0].mxu0
      %v995 = vpop.f32.mrb[0].mxu0
      %v996 = vadd.f32 0.0, %v995
      %v997 = vpop.f32.mrb[0].mxu0
      %998 = vmatprep.mubr.bf16.mxu0 0
      %999 = vmatmul.mubr.bf16.gmra.mrb[0].mxu0 %v947
      %v1000 = vpop.f32.mrb[0].mxu0
      %v1001 = vadd.f32 0.0, %v1000
      %v1002 = vpop.f32.mrb[0].mxu0
      %v1003 = vpop.f32.mrb[0].mxu0
      %v1004 = vadd.f32 0.0, %v1003
      %v1005 = vpop.f32.mrb[0].mxu0
      %1006 = vmatprep.mubr.bf16.mxu0 0
      %1007 = vmatmul.mubr.bf16.gmra.mrb[0].mxu0 %v950
      %v1008 = vpop.f32.mrb[0].mxu0
      %v1009 = vadd.f32 0.0, %v1008
      %v1010 = vpop.f32.mrb[0].mxu0
      %v1011 = vpop.f32.mrb[0].mxu0
      %v1012 = vadd.f32 0.0, %v1011
      %v1013 = vpop.f32.mrb[0].mxu0
      %1014 = vmatprep.mubr.bf16.mxu0 0
      %1015 = vmatmul.mubr.bf16.gmra.mrb[0].mxu0 %v953
      %v1016 = vpop.f32.mrb[0].mxu0
      %v1017 = vadd.f32 0.0, %v1016
      %v1018 = vpop.f32.mrb[0].mxu0
      %v1019 = vpop.f32.mrb[0].mxu0
      %v1020 = vadd.f32 0.0, %v1019
      %v1021 = vpop.f32.mrb[0].mxu0
      %1022 = vdwg.mxu0
      %v1023 = vadd.f32 %v819, %v993
      %v1024 = vadd.f32 %v822, %v996
      %v1025 = vadd.f32 %v827, %v1001
      %v1026 = vadd.f32 %v830, %v1004
      %v1027 = vadd.f32 %v835, %v1009
      %v1028 = vadd.f32 %v838, %v1012
      %v1029 = vadd.f32 %v843, %v1017
      %v1030 = vadd.f32 %v846, %v1020
      %v1031 = vld [vmem:[%s470] sm:$0xff]
      %v1032 = vld [vmem:[%s470 + $0x10] sm:$0xff]
      %v1033 = vld [vmem:[%s470 + $0x20] sm:$0xff]
      %v1034 = vld [vmem:[%s470 + $0x30] sm:$0xff]
      %v1035 = vld [vmem:[%s470 + $0x40] sm:$0xff]
      %v1036 = vld [vmem:[%s470 + $0x50] sm:$0xff]
      %v1037 = vld [vmem:[%s470 + $0x60] sm:$0xff]
      %v1038 = vld [vmem:[%s470 + $0x70] sm:$0xff]
      %v1039 = vld [vmem:[%s6] sm:$0xff]
      %v1040 = vld [vmem:[%s6 + $0x10] sm:$0xff]
      %v1041 = vld [vmem:[%s6 + $0x20] sm:$0xff]
      %v1042 = vld [vmem:[%s6 + $0x30] sm:$0xff]
      %v1043 = vld [vmem:[%s6 + $0x40] sm:$0xff]
      %v1044 = vld [vmem:[%s6 + $0x50] sm:$0xff]
      %v1045 = vld [vmem:[%s6 + $0x60] sm:$0xff]
      %v1046 = vld [vmem:[%s6 + $0x70] sm:$0xff]
      %v1047 = vmul.f32 %v1031, %v508
      %v1048 = vmul.f32 %v1032, %v508
      %v1049 = vmul.f32 %v1033, %v508
      %v1050 = vmul.f32 %v1034, %v508
      %v1051 = vmul.f32 %v1035, %v508
      %v1052 = vmul.f32 %v1036, %v508
      %v1053 = vmul.f32 %v1037, %v508
      %v1054 = vmul.f32 %v1038, %v508
      %v1055 = vadd.f32 %v1047, %v522
      %v1056 = vadd.f32 %v1048, %v522
      %v1057 = vadd.f32 %v1049, %v522
      %v1058 = vadd.f32 %v1050, %v522
      %v1059 = vadd.f32 %v1051, %v522
      %v1060 = vadd.f32 %v1052, %v522
      %v1061 = vadd.f32 %v1053, %v522
      %v1062 = vadd.f32 %v1054, %v522
      %v1063 = vmax.f32 %v1055, 0.0
      %v1064 = vmax.f32 %v1056, 0.0
      %v1065 = vmax.f32 %v1057, 0.0
      %v1066 = vmax.f32 %v1058, 0.0
      %v1067 = vmax.f32 %v1059, 0.0
      %v1068 = vmax.f32 %v1060, 0.0
      %v1069 = vmax.f32 %v1061, 0.0
      %v1070 = vmax.f32 %v1062, 0.0
      %1072 = vset.pattern.permute.xlu0 0
      %1073 = vperm.xlu0 %1072, %v1039
      %v1074 = vpop.permute.xlu0 %1073
      %1077 = vset.pattern.permute.xlu0 0
      %1078 = vperm.xlu0 %1077, %v1040
      %v1079 = vpop.permute.xlu0 %1078
      %1082 = vset.pattern.permute.xlu0 0
      %1083 = vperm.xlu0 %1082, %v1041
      %v1084 = vpop.permute.xlu0 %1083
      %1087 = vset.pattern.permute.xlu0 0
      %1088 = vperm.xlu0 %1087, %v1042
      %v1089 = vpop.permute.xlu0 %1088
      %1092 = vset.pattern.permute.xlu0 0
      %1093 = vperm.xlu0 %1092, %v1043
      %v1094 = vpop.permute.xlu0 %1093
      %1097 = vset.pattern.permute.xlu0 0
      %1098 = vperm.xlu0 %1097, %v1044
      %v1099 = vpop.permute.xlu0 %1098
      %1102 = vset.pattern.permute.xlu0 0
      %1103 = vperm.xlu0 %1102, %v1045
      %v1104 = vpop.permute.xlu0 %1103
      %1107 = vset.pattern.permute.xlu0 0
      %1108 = vperm.xlu0 %1107, %v1046
      %v1109 = vpop.permute.xlu0 %1108
      %v1111 = vmul.f32 %v1063, %v1074
      %v1112 = vmul.f32 %v1064, %v1079
      %v1113 = vmul.f32 %v1065, %v1084
      %v1114 = vmul.f32 %v1066, %v1089
      %v1115 = vmul.f32 %v1067, %v1094
      %v1116 = vmul.f32 %v1068, %v1099
      %v1117 = vmul.f32 %v1069, %v1104
      %v1118 = vmul.f32 %v1070, %v1109
      %v1119 = vpack.c.bf16 %v1112, %v1111
      %v1120 = vpack.c.bf16 %v1114, %v1113
      %v1121 = vpack.c.bf16 %v1116, %v1115
      %v1122 = vpack.c.bf16 %v1118, %v1117
      %s1123 = scalar_lea.vmem %s10, 6
      %v1124 = vld [vmem:[%s1123] sm:$0x3]
      %v1126 = vsel %vm687, %v1119, 0
      %v1129 = vsel %vm687, %v1120, 0
      %v1132 = vsel %vm687, %v1121, 0
      %v1135 = vsel %vm687, %v1122, 0
      %v1138 = vsel %vm700, %v1124, 0
      %1140 = vmatprep.subr.bf16.mxu0 0
      %1141 = vmatpush1.bf16.msra.mxu0 %v1138
      %1142 = vmatprep.subr.bf16.mxu0 0
      %1143 = vmatpush1.bf16.msra.mxu0 0
      %1144 = vmatprep.subr.bf16.mxu0 0
      %1145 = vmatpush1.bf16.msra.mxu0 0
      %1146 = vmatprep.subr.bf16.mxu0 0
      %1147 = vmatpush1.bf16.msra.mxu0 0
      %1148 = vmatprep.subr.bf16.mxu0 0
      %1149 = vmatpush1.bf16.msra.mxu0 0
      %1150 = vmatprep.subr.bf16.mxu0 0
      %1151 = vmatpush1.bf16.msra.mxu0 0
      %1152 = vmatprep.subr.bf16.mxu0 0
      %1153 = vmatpush1.bf16.msra.mxu0 0
      %1154 = vmatprep.subr.bf16.mxu0 0
      %1155 = vmatpush1.bf16.msra.mxu0 0
      %1156 = vmatprep.subr.bf16.mxu0 0
      %1157 = vmatpush1.bf16.msra.mxu0 0
      %1158 = vmatprep.subr.bf16.mxu0 0
      %1159 = vmatpush1.bf16.msra.mxu0 0
      %1160 = vmatprep.subr.bf16.mxu0 0
      %1161 = vmatpush1.bf16.msra.mxu0 0
      %1162 = vmatprep.subr.bf16.mxu0 0
      %1163 = vmatpush1.bf16.msra.mxu0 0
      %1164 = vmatprep.subr.bf16.mxu0 0
      %1165 = vmatpush1.bf16.msra.mxu0 0
      %1166 = vmatprep.subr.bf16.mxu0 0
      %1167 = vmatpush1.bf16.msra.mxu0 0
      %1168 = vmatprep.subr.bf16.mxu0 0
      %1169 = vmatpush1.bf16.msra.mxu0 0
      %1170 = vmatprep.subr.bf16.mxu0 0
      %1171 = vmatpush1.bf16.msra.mxu0 0
      %1172 = vmatprep.mubr.bf16.mxu0 0
      %1173 = vmatmul.mubr.bf16.gmra.mrb[0].mxu0 %v1126
      %v1174 = vpop.f32.mrb[0].mxu0
      %v1175 = vadd.f32 0.0, %v1174
      %v1176 = vpop.f32.mrb[0].mxu0
      %v1177 = vpop.f32.mrb[0].mxu0
      %v1178 = vadd.f32 0.0, %v1177
      %v1179 = vpop.f32.mrb[0].mxu0
      %1180 = vmatprep.mubr.bf16.mxu0 0
      %1181 = vmatmul.mubr.bf16.gmra.mrb[0].mxu0 %v1129
      %v1182 = vpop.f32.mrb[0].mxu0
      %v1183 = vadd.f32 0.0, %v1182
      %v1184 = vpop.f32.mrb[0].mxu0
      %v1185 = vpop.f32.mrb[0].mxu0
      %v1186 = vadd.f32 0.0, %v1185
      %v1187 = vpop.f32.mrb[0].mxu0
      %1188 = vmatprep.mubr.bf16.mxu0 0
      %1189 = vmatmul.mubr.bf16.gmra.mrb[0].mxu0 %v1132
      %v1190 = vpop.f32.mrb[0].mxu0
      %v1191 = vadd.f32 0.0, %v1190
      %v1192 = vpop.f32.mrb[0].mxu0
      %v1193 = vpop.f32.mrb[0].mxu0
      %v1194 = vadd.f32 0.0, %v1193
      %v1195 = vpop.f32.mrb[0].mxu0
      %1196 = vmatprep.mubr.bf16.mxu0 0
      %1197 = vmatmul.mubr.bf16.gmra.mrb[0].mxu0 %v1135
      %v1198 = vpop.f32.mrb[0].mxu0
      %v1199 = vadd.f32 0.0, %v1198
      %v1200 = vpop.f32.mrb[0].mxu0
      %v1201 = vpop.f32.mrb[0].mxu0
      %v1202 = vadd.f32 0.0, %v1201
      %v1203 = vpop.f32.mrb[0].mxu0
      %1204 = vdwg.mxu0
      %v1205 = vadd.f32 %v1023, %v1175
      %v1206 = vadd.f32 %v1024, %v1178
      %v1207 = vadd.f32 %v1025, %v1183
      %v1208 = vadd.f32 %v1026, %v1186
      %v1209 = vadd.f32 %v1027, %v1191
      %v1210 = vadd.f32 %v1028, %v1194
      %v1211 = vadd.f32 %v1029, %v1199
      %v1212 = vadd.f32 %v1030, %v1202
      %v1213 = vld [vmem:[%s475] sm:$0xff]
      %v1214 = vld [vmem:[%s475 + $0x10] sm:$0xff]
      %v1215 = vld [vmem:[%s475 + $0x20] sm:$0xff]
      %v1216 = vld [vmem:[%s475 + $0x30] sm:$0xff]
      %v1217 = vld [vmem:[%s475 + $0x40] sm:$0xff]
      %v1218 = vld [vmem:[%s475 + $0x50] sm:$0xff]
      %v1219 = vld [vmem:[%s475 + $0x60] sm:$0xff]
      %v1220 = vld [vmem:[%s475 + $0x70] sm:$0xff]
      %v1221 = vld [vmem:[%s7] sm:$0xff]
      %v1222 = vld [vmem:[%s7 + $0x10] sm:$0xff]
      %v1223 = vld [vmem:[%s7 + $0x20] sm:$0xff]
      %v1224 = vld [vmem:[%s7 + $0x30] sm:$0xff]
      %v1225 = vld [vmem:[%s7 + $0x40] sm:$0xff]
      %v1226 = vld [vmem:[%s7 + $0x50] sm:$0xff]
      %v1227 = vld [vmem:[%s7 + $0x60] sm:$0xff]
      %v1228 = vld [vmem:[%s7 + $0x70] sm:$0xff]
      %v1229 = vmul.f32 %v1213, %v508
      %v1230 = vmul.f32 %v1214, %v508
      %v1231 = vmul.f32 %v1215, %v508
      %v1232 = vmul.f32 %v1216, %v508
      %v1233 = vmul.f32 %v1217, %v508
      %v1234 = vmul.f32 %v1218, %v508
      %v1235 = vmul.f32 %v1219, %v508
      %v1236 = vmul.f32 %v1220, %v508
      %v1237 = vadd.f32 %v1229, %v522
      %v1238 = vadd.f32 %v1230, %v522
      %v1239 = vadd.f32 %v1231, %v522
      %v1240 = vadd.f32 %v1232, %v522
      %v1241 = vadd.f32 %v1233, %v522
      %v1242 = vadd.f32 %v1234, %v522
      %v1243 = vadd.f32 %v1235, %v522
      %v1244 = vadd.f32 %v1236, %v522
      %v1245 = vmax.f32 %v1237, 0.0
      %v1246 = vmax.f32 %v1238, 0.0
      %v1247 = vmax.f32 %v1239, 0.0
      %v1248 = vmax.f32 %v1240, 0.0
      %v1249 = vmax.f32 %v1241, 0.0
      %v1250 = vmax.f32 %v1242, 0.0
      %v1251 = vmax.f32 %v1243, 0.0
      %v1252 = vmax.f32 %v1244, 0.0
      %1254 = vset.pattern.permute.xlu0 0
      %1255 = vperm.xlu0 %1254, %v1221
      %v1256 = vpop.permute.xlu0 %1255
      %1259 = vset.pattern.permute.xlu0 0
      %1260 = vperm.xlu0 %1259, %v1222
      %v1261 = vpop.permute.xlu0 %1260
      %1264 = vset.pattern.permute.xlu0 0
      %1265 = vperm.xlu0 %1264, %v1223
      %v1266 = vpop.permute.xlu0 %1265
      %1269 = vset.pattern.permute.xlu0 0
      %1270 = vperm.xlu0 %1269, %v1224
      %v1271 = vpop.permute.xlu0 %1270
      %1274 = vset.pattern.permute.xlu0 0
      %1275 = vperm.xlu0 %1274, %v1225
      %v1276 = vpop.permute.xlu0 %1275
      %1279 = vset.pattern.permute.xlu0 0
      %1280 = vperm.xlu0 %1279, %v1226
      %v1281 = vpop.permute.xlu0 %1280
      %1284 = vset.pattern.permute.xlu0 0
      %1285 = vperm.xlu0 %1284, %v1227
      %v1286 = vpop.permute.xlu0 %1285
      %1289 = vset.pattern.permute.xlu0 0
      %1290 = vperm.xlu0 %1289, %v1228
      %v1291 = vpop.permute.xlu0 %1290
      %v1293 = vmul.f32 %v1245, %v1256
      %v1294 = vmul.f32 %v1246, %v1261
      %v1295 = vmul.f32 %v1247, %v1266
      %v1296 = vmul.f32 %v1248, %v1271
      %v1297 = vmul.f32 %v1249, %v1276
      %v1298 = vmul.f32 %v1250, %v1281
      %v1299 = vmul.f32 %v1251, %v1286
      %v1300 = vmul.f32 %v1252, %v1291
      %v1301 = vpack.c.bf16 %v1294, %v1293
      %v1302 = vpack.c.bf16 %v1296, %v1295
      %v1303 = vpack.c.bf16 %v1298, %v1297
      %v1304 = vpack.c.bf16 %v1300, %v1299
      %s1305 = scalar_lea.vmem %s10, 8
      %v1306 = vld [vmem:[%s1305] sm:$0x3]
      %v1308 = vsel %vm687, %v1301, 0
      %v1311 = vsel %vm687, %v1302, 0
      %v1314 = vsel %vm687, %v1303, 0
      %v1317 = vsel %vm687, %v1304, 0
      %v1320 = vsel %vm700, %v1306, 0
      %1322 = vmatprep.subr.bf16.mxu0 0
      %1323 = vmatpush1.bf16.msra.mxu0 %v1320
      %1324 = vmatprep.subr.bf16.mxu0 0
      %1325 = vmatpush1.bf16.msra.mxu0 0
      %1326 = vmatprep.subr.bf16.mxu0 0
      %1327 = vmatpush1.bf16.msra.mxu0 0
      %1328 = vmatprep.subr.bf16.mxu0 0
      %1329 = vmatpush1.bf16.msra.mxu0 0
      %1330 = vmatprep.subr.bf16.mxu0 0
      %1331 = vmatpush1.bf16.msra.mxu0 0
      %1332 = vmatprep.subr.bf16.mxu0 0
      %1333 = vmatpush1.bf16.msra.mxu0 0
      %1334 = vmatprep.subr.bf16.mxu0 0
      %1335 = vmatpush1.bf16.msra.mxu0 0
      %1336 = vmatprep.subr.bf16.mxu0 0
      %1337 = vmatpush1.bf16.msra.mxu0 0
      %1338 = vmatprep.subr.bf16.mxu0 0
      %1339 = vmatpush1.bf16.msra.mxu0 0
      %1340 = vmatprep.subr.bf16.mxu0 0
      %1341 = vmatpush1.bf16.msra.mxu0 0
      %1342 = vmatprep.subr.bf16.mxu0 0
      %1343 = vmatpush1.bf16.msra.mxu0 0
      %1344 = vmatprep.subr.bf16.mxu0 0
      %1345 = vmatpush1.bf16.msra.mxu0 0
      %1346 = vmatprep.subr.bf16.mxu0 0
      %1347 = vmatpush1.bf16.msra.mxu0 0
      %1348 = vmatprep.subr.bf16.mxu0 0
      %1349 = vmatpush1.bf16.msra.mxu0 0
      %1350 = vmatprep.subr.bf16.mxu0 0
      %1351 = vmatpush1.bf16.msra.mxu0 0
      %1352 = vmatprep.subr.bf16.mxu0 0
      %1353 = vmatpush1.bf16.msra.mxu0 0
      %1354 = vmatprep.mubr.bf16.mxu0 0
      %1355 = vmatmul.mubr.bf16.gmra.mrb[0].mxu0 %v1308
      %v1356 = vpop.f32.mrb[0].mxu0
      %v1357 = vadd.f32 0.0, %v1356
      %v1358 = vpop.f32.mrb[0].mxu0
      %v1359 = vpop.f32.mrb[0].mxu0
      %v1360 = vadd.f32 0.0, %v1359
      %v1361 = vpop.f32.mrb[0].mxu0
      %1362 = vmatprep.mubr.bf16.mxu0 0
      %1363 = vmatmul.mubr.bf16.gmra.mrb[0].mxu0 %v1311
      %v1364 = vpop.f32.mrb[0].mxu0
      %v1365 = vadd.f32 0.0, %v1364
      %v1366 = vpop.f32.mrb[0].mxu0
      %v1367 = vpop.f32.mrb[0].mxu0
      %v1368 = vadd.f32 0.0, %v1367
      %v1369 = vpop.f32.mrb[0].mxu0
      %1370 = vmatprep.mubr.bf16.mxu0 0
      %1371 = vmatmul.mubr.bf16.gmra.mrb[0].mxu0 %v1314
      %v1372 = vpop.f32.mrb[0].mxu0
      %v1373 = vadd.f32 0.0, %v1372
      %v1374 = vpop.f32.mrb[0].mxu0
      %v1375 = vpop.f32.mrb[0].mxu0
      %v1376 = vadd.f32 0.0, %v1375
      %v1377 = vpop.f32.mrb[0].mxu0
      %1378 = vmatprep.mubr.bf16.mxu0 0
      %1379 = vmatmul.mubr.bf16.gmra.mrb[0].mxu0 %v1317
      %v1380 = vpop.f32.mrb[0].mxu0
      %v1381 = vadd.f32 0.0, %v1380
      %v1382 = vpop.f32.mrb[0].mxu0
      %v1383 = vpop.f32.mrb[0].mxu0
      %v1384 = vadd.f32 0.0, %v1383
      %v1385 = vpop.f32.mrb[0].mxu0
      %1386 = vdwg.mxu0
      %v1387 = vadd.f32 %v1205, %v1357
      %v1388 = vadd.f32 %v1206, %v1360
      %v1389 = vadd.f32 %v1207, %v1365
      %v1390 = vadd.f32 %v1208, %v1368
      %v1391 = vadd.f32 %v1209, %v1373
      %v1392 = vadd.f32 %v1210, %v1376
      %v1393 = vadd.f32 %v1211, %v1381
      %v1394 = vadd.f32 %v1212, %v1384
      %v1395 = vld [vmem:[%s470 + $0x1] sm:$0xff]
      %v1396 = vld [vmem:[%s470 + $0x11] sm:$0xff]
      %v1397 = vld [vmem:[%s470 + $0x21] sm:$0xff]
      %v1398 = vld [vmem:[%s470 + $0x31] sm:$0xff]
      %v1399 = vld [vmem:[%s470 + $0x41] sm:$0xff]
      %v1400 = vld [vmem:[%s470 + $0x51] sm:$0xff]
      %v1401 = vld [vmem:[%s470 + $0x61] sm:$0xff]
      %v1402 = vld [vmem:[%s470 + $0x71] sm:$0xff]
      %v1403 = vld [vmem:[%s6 + $0x1] sm:$0xff]
      %v1404 = vld [vmem:[%s6 + $0x11] sm:$0xff]
      %v1405 = vld [vmem:[%s6 + $0x21] sm:$0xff]
      %v1406 = vld [vmem:[%s6 + $0x31] sm:$0xff]
      %v1407 = vld [vmem:[%s6 + $0x41] sm:$0xff]
      %v1408 = vld [vmem:[%s6 + $0x51] sm:$0xff]
      %v1409 = vld [vmem:[%s6 + $0x61] sm:$0xff]
      %v1410 = vld [vmem:[%s6 + $0x71] sm:$0xff]
      %v1411 = vmul.f32 %v1395, %v508
      %v1412 = vmul.f32 %v1396, %v508
      %v1413 = vmul.f32 %v1397, %v508
      %v1414 = vmul.f32 %v1398, %v508
      %v1415 = vmul.f32 %v1399, %v508
      %v1416 = vmul.f32 %v1400, %v508
      %v1417 = vmul.f32 %v1401, %v508
      %v1418 = vmul.f32 %v1402, %v508
      %v1419 = vadd.f32 %v1411, %v522
      %v1420 = vadd.f32 %v1412, %v522
      %v1421 = vadd.f32 %v1413, %v522
      %v1422 = vadd.f32 %v1414, %v522
      %v1423 = vadd.f32 %v1415, %v522
      %v1424 = vadd.f32 %v1416, %v522
      %v1425 = vadd.f32 %v1417, %v522
      %v1426 = vadd.f32 %v1418, %v522
      %v1427 = vmax.f32 %v1419, 0.0
      %v1428 = vmax.f32 %v1420, 0.0
      %v1429 = vmax.f32 %v1421, 0.0
      %v1430 = vmax.f32 %v1422, 0.0
      %v1431 = vmax.f32 %v1423, 0.0
      %v1432 = vmax.f32 %v1424, 0.0
      %v1433 = vmax.f32 %v1425, 0.0
      %v1434 = vmax.f32 %v1426, 0.0
      %1436 = vset.pattern.permute.xlu0 0
      %1437 = vperm.xlu0 %1436, %v1403
      %v1438 = vpop.permute.xlu0 %1437
      %1441 = vset.pattern.permute.xlu0 0
      %1442 = vperm.xlu0 %1441, %v1404
      %v1443 = vpop.permute.xlu0 %1442
      %1446 = vset.pattern.permute.xlu0 0
      %1447 = vperm.xlu0 %1446, %v1405
      %v1448 = vpop.permute.xlu0 %1447
      %1451 = vset.pattern.permute.xlu0 0
      %1452 = vperm.xlu0 %1451, %v1406
      %v1453 = vpop.permute.xlu0 %1452
      %1456 = vset.pattern.permute.xlu0 0
      %1457 = vperm.xlu0 %1456, %v1407
      %v1458 = vpop.permute.xlu0 %1457
      %1461 = vset.pattern.permute.xlu0 0
      %1462 = vperm.xlu0 %1461, %v1408
      %v1463 = vpop.permute.xlu0 %1462
      %1466 = vset.pattern.permute.xlu0 0
      %1467 = vperm.xlu0 %1466, %v1409
      %v1468 = vpop.permute.xlu0 %1467
      %1471 = vset.pattern.permute.xlu0 0
      %1472 = vperm.xlu0 %1471, %v1410
      %v1473 = vpop.permute.xlu0 %1472
      %v1475 = vmul.f32 %v1427, %v1438
      %v1476 = vmul.f32 %v1428, %v1443
      %v1477 = vmul.f32 %v1429, %v1448
      %v1478 = vmul.f32 %v1430, %v1453
      %v1479 = vmul.f32 %v1431, %v1458
      %v1480 = vmul.f32 %v1432, %v1463
      %v1481 = vmul.f32 %v1433, %v1468
      %v1482 = vmul.f32 %v1434, %v1473
      %v1483 = vpack.c.bf16 %v1476, %v1475
      %v1484 = vpack.c.bf16 %v1478, %v1477
      %v1485 = vpack.c.bf16 %v1480, %v1479
      %v1486 = vpack.c.bf16 %v1482, %v1481
      %s1487 = scalar_lea.vmem %s10, 10
      %v1488 = vld [vmem:[%s1487] sm:$0x3]
      %v1490 = vsel %vm687, %v1483, 0
      %v1493 = vsel %vm687, %v1484, 0
      %v1496 = vsel %vm687, %v1485, 0
      %v1499 = vsel %vm687, %v1486, 0
      %v1502 = vsel %vm700, %v1488, 0
      %1504 = vmatprep.subr.bf16.mxu0 0
      %1505 = vmatpush1.bf16.msra.mxu0 %v1502
      %1506 = vmatprep.subr.bf16.mxu0 0
      %1507 = vmatpush1.bf16.msra.mxu0 0
      %1508 = vmatprep.subr.bf16.mxu0 0
      %1509 = vmatpush1.bf16.msra.mxu0 0
      %1510 = vmatprep.subr.bf16.mxu0 0
      %1511 = vmatpush1.bf16.msra.mxu0 0
      %1512 = vmatprep.subr.bf16.mxu0 0
      %1513 = vmatpush1.bf16.msra.mxu0 0
      %1514 = vmatprep.subr.bf16.mxu0 0
      %1515 = vmatpush1.bf16.msra.mxu0 0
      %1516 = vmatprep.subr.bf16.mxu0 0
      %1517 = vmatpush1.bf16.msra.mxu0 0
      %1518 = vmatprep.subr.bf16.mxu0 0
      %1519 = vmatpush1.bf16.msra.mxu0 0
      %1520 = vmatprep.subr.bf16.mxu0 0
      %1521 = vmatpush1.bf16.msra.mxu0 0
      %1522 = vmatprep.subr.bf16.mxu0 0
      %1523 = vmatpush1.bf16.msra.mxu0 0
      %1524 = vmatprep.subr.bf16.mxu0 0
      %1525 = vmatpush1.bf16.msra.mxu0 0
      %1526 = vmatprep.subr.bf16.mxu0 0
      %1527 = vmatpush1.bf16.msra.mxu0 0
      %1528 = vmatprep.subr.bf16.mxu0 0
      %1529 = vmatpush1.bf16.msra.mxu0 0
      %1530 = vmatprep.subr.bf16.mxu0 0
      %1531 = vmatpush1.bf16.msra.mxu0 0
      %1532 = vmatprep.subr.bf16.mxu0 0
      %1533 = vmatpush1.bf16.msra.mxu0 0
      %1534 = vmatprep.subr.bf16.mxu0 0
      %1535 = vmatpush1.bf16.msra.mxu0 0
      %1536 = vmatprep.mubr.bf16.mxu0 0
      %1537 = vmatmul.mubr.bf16.gmra.mrb[0].mxu0 %v1490
      %v1538 = vpop.f32.mrb[0].mxu0
      %v1539 = vadd.f32 0.0, %v1538
      %v1540 = vpop.f32.mrb[0].mxu0
      %v1541 = vpop.f32.mrb[0].mxu0
      %v1542 = vadd.f32 0.0, %v1541
      %v1543 = vpop.f32.mrb[0].mxu0
      %1544 = vmatprep.mubr.bf16.mxu0 0
      %1545 = vmatmul.mubr.bf16.gmra.mrb[0].mxu0 %v1493
      %v1546 = vpop.f32.mrb[0].mxu0
      %v1547 = vadd.f32 0.0, %v1546
      %v1548 = vpop.f32.mrb[0].mxu0
      %v1549 = vpop.f32.mrb[0].mxu0
      %v1550 = vadd.f32 0.0, %v1549
      %v1551 = vpop.f32.mrb[0].mxu0
      %1552 = vmatprep.mubr.bf16.mxu0 0
      %1553 = vmatmul.mubr.bf16.gmra.mrb[0].mxu0 %v1496
      %v1554 = vpop.f32.mrb[0].mxu0
      %v1555 = vadd.f32 0.0, %v1554
      %v1556 = vpop.f32.mrb[0].mxu0
      %v1557 = vpop.f32.mrb[0].mxu0
      %v1558 = vadd.f32 0.0, %v1557
      %v1559 = vpop.f32.mrb[0].mxu0
      %1560 = vmatprep.mubr.bf16.mxu0 0
      %1561 = vmatmul.mubr.bf16.gmra.mrb[0].mxu0 %v1499
      %v1562 = vpop.f32.mrb[0].mxu0
      %v1563 = vadd.f32 0.0, %v1562
      %v1564 = vpop.f32.mrb[0].mxu0
      %v1565 = vpop.f32.mrb[0].mxu0
      %v1566 = vadd.f32 0.0, %v1565
      %v1567 = vpop.f32.mrb[0].mxu0
      %1568 = vdwg.mxu0
      %v1569 = vadd.f32 %v1387, %v1539
      %v1570 = vadd.f32 %v1388, %v1542
      %v1571 = vadd.f32 %v1389, %v1547
      %v1572 = vadd.f32 %v1390, %v1550
      %v1573 = vadd.f32 %v1391, %v1555
      %v1574 = vadd.f32 %v1392, %v1558
      %v1575 = vadd.f32 %v1393, %v1563
      %v1576 = vadd.f32 %v1394, %v1566
      %s1577 = scalar_lea.vmem %s460, 16
      %v1578 = vld [vmem:[%s1577] sm:$0xff]
      %v1579 = vld [vmem:[%s1577 + $0x10] sm:$0xff]
      %v1580 = vld [vmem:[%s1577 + $0x20] sm:$0xff]
      %v1581 = vld [vmem:[%s1577 + $0x30] sm:$0xff]
      %v1582 = vld [vmem:[%s1577 + $0x40] sm:$0xff]
      %v1583 = vld [vmem:[%s1577 + $0x50] sm:$0xff]
      %v1584 = vld [vmem:[%s1577 + $0x60] sm:$0xff]
      %v1585 = vld [vmem:[%s1577 + $0x70] sm:$0xff]
      %s1586 = scalar_lea.vmem %s4, 16
      %v1587 = vld [vmem:[%s1586] sm:$0xff]
      %v1588 = vld [vmem:[%s1586 + $0x10] sm:$0xff]
      %v1589 = vld [vmem:[%s1586 + $0x20] sm:$0xff]
      %v1590 = vld [vmem:[%s1586 + $0x30] sm:$0xff]
      %v1591 = vld [vmem:[%s1586 + $0x40] sm:$0xff]
      %v1592 = vld [vmem:[%s1586 + $0x50] sm:$0xff]
      %v1593 = vld [vmem:[%s1586 + $0x60] sm:$0xff]
      %v1594 = vld [vmem:[%s1586 + $0x70] sm:$0xff]
      %v1595 = vmul.f32 %v1578, %v508
      %v1596 = vmul.f32 %v1579, %v508
      %v1597 = vmul.f32 %v1580, %v508
      %v1598 = vmul.f32 %v1581, %v508
      %v1599 = vmul.f32 %v1582, %v508
      %v1600 = vmul.f32 %v1583, %v508
      %v1601 = vmul.f32 %v1584, %v508
      %v1602 = vmul.f32 %v1585, %v508
      %v1603 = vadd.f32 %v1595, %v522
      %v1604 = vadd.f32 %v1596, %v522
      %v1605 = vadd.f32 %v1597, %v522
      %v1606 = vadd.f32 %v1598, %v522
      %v1607 = vadd.f32 %v1599, %v522
      %v1608 = vadd.f32 %v1600, %v522
      %v1609 = vadd.f32 %v1601, %v522
      %v1610 = vadd.f32 %v1602, %v522
      %v1611 = vmax.f32 %v1603, 0.0
      %v1612 = vmax.f32 %v1604, 0.0
      %v1613 = vmax.f32 %v1605, 0.0
      %v1614 = vmax.f32 %v1606, 0.0
      %v1615 = vmax.f32 %v1607, 0.0
      %v1616 = vmax.f32 %v1608, 0.0
      %v1617 = vmax.f32 %v1609, 0.0
      %v1618 = vmax.f32 %v1610, 0.0
      %1620 = vset.pattern.permute.xlu0 0
      %1621 = vperm.xlu0 %1620, %v1587
      %v1622 = vpop.permute.xlu0 %1621
      %1625 = vset.pattern.permute.xlu0 0
      %1626 = vperm.xlu0 %1625, %v1588
      %v1627 = vpop.permute.xlu0 %1626
      %1630 = vset.pattern.permute.xlu0 0
      %1631 = vperm.xlu0 %1630, %v1589
      %v1632 = vpop.permute.xlu0 %1631
      %1635 = vset.pattern.permute.xlu0 0
      %1636 = vperm.xlu0 %1635, %v1590
      %v1637 = vpop.permute.xlu0 %1636
      %1640 = vset.pattern.permute.xlu0 0
      %1641 = vperm.xlu0 %1640, %v1591
      %v1642 = vpop.permute.xlu0 %1641
      %1645 = vset.pattern.permute.xlu0 0
      %1646 = vperm.xlu0 %1645, %v1592
      %v1647 = vpop.permute.xlu0 %1646
      %1650 = vset.pattern.permute.xlu0 0
      %1651 = vperm.xlu0 %1650, %v1593
      %v1652 = vpop.permute.xlu0 %1651
      %1655 = vset.pattern.permute.xlu0 0
      %1656 = vperm.xlu0 %1655, %v1594
      %v1657 = vpop.permute.xlu0 %1656
      %v1659 = vmul.f32 %v1611, %v1622
      %v1660 = vmul.f32 %v1612, %v1627
      %v1661 = vmul.f32 %v1613, %v1632
      %v1662 = vmul.f32 %v1614, %v1637
      %v1663 = vmul.f32 %v1615, %v1642
      %v1664 = vmul.f32 %v1616, %v1647
      %v1665 = vmul.f32 %v1617, %v1652
      %v1666 = vmul.f32 %v1618, %v1657
      %v1667 = vpack.c.bf16 %v1660, %v1659
      %v1668 = vpack.c.bf16 %v1662, %v1661
      %v1669 = vpack.c.bf16 %v1664, %v1663
      %v1670 = vpack.c.bf16 %v1666, %v1665
      %s1671 = scalar_lea.vmem %s10, 12
      %v1672 = vld [vmem:[%s1671] sm:$0x3]
      %v1674 = vsel %vm687, %v1667, 0
      %v1677 = vsel %vm687, %v1668, 0
      %v1680 = vsel %vm687, %v1669, 0
      %v1683 = vsel %vm687, %v1670, 0
      %v1686 = vsel %vm700, %v1672, 0
      %1688 = vmatprep.subr.bf16.mxu0 0
      %1689 = vmatpush1.bf16.msra.mxu0 %v1686
      %1690 = vmatprep.subr.bf16.mxu0 0
      %1691 = vmatpush1.bf16.msra.mxu0 0
      %1692 = vmatprep.subr.bf16.mxu0 0
      %1693 = vmatpush1.bf16.msra.mxu0 0
      %1694 = vmatprep.subr.bf16.mxu0 0
      %1695 = vmatpush1.bf16.msra.mxu0 0
      %1696 = vmatprep.subr.bf16.mxu0 0
      %1697 = vmatpush1.bf16.msra.mxu0 0
      %1698 = vmatprep.subr.bf16.mxu0 0
      %1699 = vmatpush1.bf16.msra.mxu0 0
      %1700 = vmatprep.subr.bf16.mxu0 0
      %1701 = vmatpush1.bf16.msra.mxu0 0
      %1702 = vmatprep.subr.bf16.mxu0 0
      %1703 = vmatpush1.bf16.msra.mxu0 0
      %1704 = vmatprep.subr.bf16.mxu0 0
      %1705 = vmatpush1.bf16.msra.mxu0 0
      %1706 = vmatprep.subr.bf16.mxu0 0
      %1707 = vmatpush1.bf16.msra.mxu0 0
      %1708 = vmatprep.subr.bf16.mxu0 0
      %1709 = vmatpush1.bf16.msra.mxu0 0
      %1710 = vmatprep.subr.bf16.mxu0 0
      %1711 = vmatpush1.bf16.msra.mxu0 0
      %1712 = vmatprep.subr.bf16.mxu0 0
      %1713 = vmatpush1.bf16.msra.mxu0 0
      %1714 = vmatprep.subr.bf16.mxu0 0
      %1715 = vmatpush1.bf16.msra.mxu0 0
      %1716 = vmatprep.subr.bf16.mxu0 0
      %1717 = vmatpush1.bf16.msra.mxu0 0
      %1718 = vmatprep.subr.bf16.mxu0 0
      %1719 = vmatpush1.bf16.msra.mxu0 0
      %1720 = vmatprep.mubr.bf16.mxu0 0
      %1721 = vmatmul.mubr.bf16.gmra.mrb[0].mxu0 %v1674
      %v1722 = vpop.f32.mrb[0].mxu0
      %v1723 = vadd.f32 0.0, %v1722
      %v1724 = vpop.f32.mrb[0].mxu0
      %v1725 = vpop.f32.mrb[0].mxu0
      %v1726 = vadd.f32 0.0, %v1725
      %v1727 = vpop.f32.mrb[0].mxu0
      %1728 = vmatprep.mubr.bf16.mxu0 0
      %1729 = vmatmul.mubr.bf16.gmra.mrb[0].mxu0 %v1677
      %v1730 = vpop.f32.mrb[0].mxu0
      %v1731 = vadd.f32 0.0, %v1730
      %v1732 = vpop.f32.mrb[0].mxu0
      %v1733 = vpop.f32.mrb[0].mxu0
      %v1734 = vadd.f32 0.0, %v1733
      %v1735 = vpop.f32.mrb[0].mxu0
      %1736 = vmatprep.mubr.bf16.mxu0 0
      %1737 = vmatmul.mubr.bf16.gmra.mrb[0].mxu0 %v1680
      %v1738 = vpop.f32.mrb[0].mxu0
      %v1739 = vadd.f32 0.0, %v1738
      %v1740 = vpop.f32.mrb[0].mxu0
      %v1741 = vpop.f32.mrb[0].mxu0
      %v1742 = vadd.f32 0.0, %v1741
      %v1743 = vpop.f32.mrb[0].mxu0
      %1744 = vmatprep.mubr.bf16.mxu0 0
      %1745 = vmatmul.mubr.bf16.gmra.mrb[0].mxu0 %v1683
      %v1746 = vpop.f32.mrb[0].mxu0
      %v1747 = vadd.f32 0.0, %v1746
      %v1748 = vpop.f32.mrb[0].mxu0
      %v1749 = vpop.f32.mrb[0].mxu0
      %v1750 = vadd.f32 0.0, %v1749
      %v1751 = vpop.f32.mrb[0].mxu0
      %1752 = vdwg.mxu0
      %v1753 = vadd.f32 %v1569, %v1723
      %v1754 = vadd.f32 %v1570, %v1726
      %v1755 = vadd.f32 %v1571, %v1731
      %v1756 = vadd.f32 %v1572, %v1734
      %v1757 = vadd.f32 %v1573, %v1739
      %v1758 = vadd.f32 %v1574, %v1742
      %v1759 = vadd.f32 %v1575, %v1747
      %v1760 = vadd.f32 %v1576, %v1750
      %s1761 = scalar_lea.vmem %s465, 16
      %v1762 = vld [vmem:[%s1761] sm:$0xff]
      %v1763 = vld [vmem:[%s1761 + $0x10] sm:$0xff]
      %v1764 = vld [vmem:[%s1761 + $0x20] sm:$0xff]
      %v1765 = vld [vmem:[%s1761 + $0x30] sm:$0xff]
      %v1766 = vld [vmem:[%s1761 + $0x40] sm:$0xff]
      %v1767 = vld [vmem:[%s1761 + $0x50] sm:$0xff]
      %v1768 = vld [vmem:[%s1761 + $0x60] sm:$0xff]
      %v1769 = vld [vmem:[%s1761 + $0x70] sm:$0xff]
      %s1770 = scalar_lea.vmem %s5, 16
      %v1771 = vld [vmem:[%s1770] sm:$0xff]
      %v1772 = vld [vmem:[%s1770 + $0x10] sm:$0xff]
      %v1773 = vld [vmem:[%s1770 + $0x20] sm:$0xff]
      %v1774 = vld [vmem:[%s1770 + $0x30] sm:$0xff]
      %v1775 = vld [vmem:[%s1770 + $0x40] sm:$0xff]
      %v1776 = vld [vmem:[%s1770 + $0x50] sm:$0xff]
      %v1777 = vld [vmem:[%s1770 + $0x60] sm:$0xff]
      %v1778 = vld [vmem:[%s1770 + $0x70] sm:$0xff]
      %v1779 = vmul.f32 %v1762, %v508
      %v1780 = vmul.f32 %v1763, %v508
      %v1781 = vmul.f32 %v1764, %v508
      %v1782 = vmul.f32 %v1765, %v508
      %v1783 = vmul.f32 %v1766, %v508
      %v1784 = vmul.f32 %v1767, %v508
      %v1785 = vmul.f32 %v1768, %v508
      %v1786 = vmul.f32 %v1769, %v508
      %v1787 = vadd.f32 %v1779, %v522
      %v1788 = vadd.f32 %v1780, %v522
      %v1789 = vadd.f32 %v1781, %v522
      %v1790 = vadd.f32 %v1782, %v522
      %v1791 = vadd.f32 %v1783, %v522
      %v1792 = vadd.f32 %v1784, %v522
      %v1793 = vadd.f32 %v1785, %v522
      %v1794 = vadd.f32 %v1786, %v522
      %v1795 = vmax.f32 %v1787, 0.0
      %v1796 = vmax.f32 %v1788, 0.0
      %v1797 = vmax.f32 %v1789, 0.0
      %v1798 = vmax.f32 %v1790, 0.0
      %v1799 = vmax.f32 %v1791, 0.0
      %v1800 = vmax.f32 %v1792, 0.0
      %v1801 = vmax.f32 %v1793, 0.0
      %v1802 = vmax.f32 %v1794, 0.0
      %1804 = vset.pattern.permute.xlu0 0
      %1805 = vperm.xlu0 %1804, %v1771
      %v1806 = vpop.permute.xlu0 %1805
      %1809 = vset.pattern.permute.xlu0 0
      %1810 = vperm.xlu0 %1809, %v1772
      %v1811 = vpop.permute.xlu0 %1810
      %1814 = vset.pattern.permute.xlu0 0
      %1815 = vperm.xlu0 %1814, %v1773
      %v1816 = vpop.permute.xlu0 %1815
      %1819 = vset.pattern.permute.xlu0 0
      %1820 = vperm.xlu0 %1819, %v1774
      %v1821 = vpop.permute.xlu0 %1820
      %1824 = vset.pattern.permute.xlu0 0
      %1825 = vperm.xlu0 %1824, %v1775
      %v1826 = vpop.permute.xlu0 %1825
      %1829 = vset.pattern.permute.xlu0 0
      %1830 = vperm.xlu0 %1829, %v1776
      %v1831 = vpop.permute.xlu0 %1830
      %1834 = vset.pattern.permute.xlu0 0
      %1835 = vperm.xlu0 %1834, %v1777
      %v1836 = vpop.permute.xlu0 %1835
      %1839 = vset.pattern.permute.xlu0 0
      %1840 = vperm.xlu0 %1839, %v1778
      %v1841 = vpop.permute.xlu0 %1840
      %v1843 = vmul.f32 %v1795, %v1806
      %v1844 = vmul.f32 %v1796, %v1811
      %v1845 = vmul.f32 %v1797, %v1816
      %v1846 = vmul.f32 %v1798, %v1821
      %v1847 = vmul.f32 %v1799, %v1826
      %v1848 = vmul.f32 %v1800, %v1831
      %v1849 = vmul.f32 %v1801, %v1836
      %v1850 = vmul.f32 %v1802, %v1841
      %v1851 = vpack.c.bf16 %v1844, %v1843
      %v1852 = vpack.c.bf16 %v1846, %v1845
      %v1853 = vpack.c.bf16 %v1848, %v1847
      %v1854 = vpack.c.bf16 %v1850, %v1849
      %s1855 = scalar_lea.vmem %s10, 14
      %v1856 = vld [vmem:[%s1855] sm:$0x3]
      %v1858 = vsel %vm687, %v1851, 0
      %v1861 = vsel %vm687, %v1852, 0
      %v1864 = vsel %vm687, %v1853, 0
      %v1867 = vsel %vm687, %v1854, 0
      %v1870 = vsel %vm700, %v1856, 0
      %1872 = vmatprep.subr.bf16.mxu0 0
      %1873 = vmatpush1.bf16.msra.mxu0 %v1870
      %1874 = vmatprep.subr.bf16.mxu0 0
      %1875 = vmatpush1.bf16.msra.mxu0 0
      %1876 = vmatprep.subr.bf16.mxu0 0
      %1877 = vmatpush1.bf16.msra.mxu0 0
      %1878 = vmatprep.subr.bf16.mxu0 0
      %1879 = vmatpush1.bf16.msra.mxu0 0
      %1880 = vmatprep.subr.bf16.mxu0 0
      %1881 = vmatpush1.bf16.msra.mxu0 0
      %1882 = vmatprep.subr.bf16.mxu0 0
      %1883 = vmatpush1.bf16.msra.mxu0 0
      %1884 = vmatprep.subr.bf16.mxu0 0
      %1885 = vmatpush1.bf16.msra.mxu0 0
      %1886 = vmatprep.subr.bf16.mxu0 0
      %1887 = vmatpush1.bf16.msra.mxu0 0
      %1888 = vmatprep.subr.bf16.mxu0 0
      %1889 = vmatpush1.bf16.msra.mxu0 0
      %1890 = vmatprep.subr.bf16.mxu0 0
      %1891 = vmatpush1.bf16.msra.mxu0 0
      %1892 = vmatprep.subr.bf16.mxu0 0
      %1893 = vmatpush1.bf16.msra.mxu0 0
      %1894 = vmatprep.subr.bf16.mxu0 0
      %1895 = vmatpush1.bf16.msra.mxu0 0
      %1896 = vmatprep.subr.bf16.mxu0 0
      %1897 = vmatpush1.bf16.msra.mxu0 0
      %1898 = vmatprep.subr.bf16.mxu0 0
      %1899 = vmatpush1.bf16.msra.mxu0 0
      %1900 = vmatprep.subr.bf16.mxu0 0
      %1901 = vmatpush1.bf16.msra.mxu0 0
      %1902 = vmatprep.subr.bf16.mxu0 0
      %1903 = vmatpush1.bf16.msra.mxu0 0
      %1904 = vmatprep.mubr.bf16.mxu0 0
      %1905 = vmatmul.mubr.bf16.gmra.mrb[0].mxu0 %v1858
      %v1906 = vpop.f32.mrb[0].mxu0
      %v1907 = vadd.f32 0.0, %v1906
      %v1908 = vpop.f32.mrb[0].mxu0
      %v1909 = vpop.f32.mrb[0].mxu0
      %v1910 = vadd.f32 0.0, %v1909
      %v1911 = vpop.f32.mrb[0].mxu0
      %1912 = vmatprep.mubr.bf16.mxu0 0
      %1913 = vmatmul.mubr.bf16.gmra.mrb[0].mxu0 %v1861
      %v1914 = vpop.f32.mrb[0].mxu0
      %v1915 = vadd.f32 0.0, %v1914
      %v1916 = vpop.f32.mrb[0].mxu0
      %v1917 = vpop.f32.mrb[0].mxu0
      %v1918 = vadd.f32 0.0, %v1917
      %v1919 = vpop.f32.mrb[0].mxu0
      %1920 = vmatprep.mubr.bf16.mxu0 0
      %1921 = vmatmul.mubr.bf16.gmra.mrb[0].mxu0 %v1864
      %v1922 = vpop.f32.mrb[0].mxu0
      %v1923 = vadd.f32 0.0, %v1922
      %v1924 = vpop.f32.mrb[0].mxu0
      %v1925 = vpop.f32.mrb[0].mxu0
      %v1926 = vadd.f32 0.0, %v1925
      %v1927 = vpop.f32.mrb[0].mxu0
      %1928 = vmatprep.mubr.bf16.mxu0 0
      %1929 = vmatmul.mubr.bf16.gmra.mrb[0].mxu0 %v1867
      %v1930 = vpop.f32.mrb[0].mxu0
      %v1931 = vadd.f32 0.0, %v1930
      %v1932 = vpop.f32.mrb[0].mxu0
      %v1933 = vpop.f32.mrb[0].mxu0
      %v1934 = vadd.f32 0.0, %v1933
      %v1935 = vpop.f32.mrb[0].mxu0
      %1936 = vdwg.mxu0
      %v1937 = vadd.f32 %v1753, %v1907
      %v1938 = vadd.f32 %v1754, %v1910
      %v1939 = vadd.f32 %v1755, %v1915
      %v1940 = vadd.f32 %v1756, %v1918
      %v1941 = vadd.f32 %v1757, %v1923
      %v1942 = vadd.f32 %v1758, %v1926
      %v1943 = vadd.f32 %v1759, %v1931
      %v1944 = vadd.f32 %v1760, %v1934
      %v1945 = vld [vmem:[%s1577 + $0x1] sm:$0xff]
      %v1946 = vld [vmem:[%s1577 + $0x11] sm:$0xff]
      %v1947 = vld [vmem:[%s1577 + $0x21] sm:$0xff]
      %v1948 = vld [vmem:[%s1577 + $0x31] sm:$0xff]
      %v1949 = vld [vmem:[%s1577 + $0x41] sm:$0xff]
      %v1950 = vld [vmem:[%s1577 + $0x51] sm:$0xff]
      %v1951 = vld [vmem:[%s1577 + $0x61] sm:$0xff]
      %v1952 = vld [vmem:[%s1577 + $0x71] sm:$0xff]
      %v1953 = vld [vmem:[%s1586 + $0x1] sm:$0xff]
      %v1954 = vld [vmem:[%s1586 + $0x11] sm:$0xff]
      %v1955 = vld [vmem:[%s1586 + $0x21] sm:$0xff]
      %v1956 = vld [vmem:[%s1586 + $0x31] sm:$0xff]
      %v1957 = vld [vmem:[%s1586 + $0x41] sm:$0xff]
      %v1958 = vld [vmem:[%s1586 + $0x51] sm:$0xff]
      %v1959 = vld [vmem:[%s1586 + $0x61] sm:$0xff]
      %v1960 = vld [vmem:[%s1586 + $0x71] sm:$0xff]
      %v1961 = vmul.f32 %v1945, %v508
      %v1962 = vmul.f32 %v1946, %v508
      %v1963 = vmul.f32 %v1947, %v508
      %v1964 = vmul.f32 %v1948, %v508
      %v1965 = vmul.f32 %v1949, %v508
      %v1966 = vmul.f32 %v1950, %v508
      %v1967 = vmul.f32 %v1951, %v508
      %v1968 = vmul.f32 %v1952, %v508
      %v1969 = vadd.f32 %v1961, %v522
      %v1970 = vadd.f32 %v1962, %v522
      %v1971 = vadd.f32 %v1963, %v522
      %v1972 = vadd.f32 %v1964, %v522
      %v1973 = vadd.f32 %v1965, %v522
      %v1974 = vadd.f32 %v1966, %v522
      %v1975 = vadd.f32 %v1967, %v522
      %v1976 = vadd.f32 %v1968, %v522
      %v1977 = vmax.f32 %v1969, 0.0
      %v1978 = vmax.f32 %v1970, 0.0
      %v1979 = vmax.f32 %v1971, 0.0
      %v1980 = vmax.f32 %v1972, 0.0
      %v1981 = vmax.f32 %v1973, 0.0
      %v1982 = vmax.f32 %v1974, 0.0
      %v1983 = vmax.f32 %v1975, 0.0
      %v1984 = vmax.f32 %v1976, 0.0
      %1986 = vset.pattern.permute.xlu0 0
      %1987 = vperm.xlu0 %1986, %v1953
      %v1988 = vpop.permute.xlu0 %1987
      %1991 = vset.pattern.permute.xlu0 0
      %1992 = vperm.xlu0 %1991, %v1954
      %v1993 = vpop.permute.xlu0 %1992
      %1996 = vset.pattern.permute.xlu0 0
      %1997 = vperm.xlu0 %1996, %v1955
      %v1998 = vpop.permute.xlu0 %1997
      %2001 = vset.pattern.permute.xlu0 0
      %2002 = vperm.xlu0 %2001, %v1956
      %v2003 = vpop.permute.xlu0 %2002
      %2006 = vset.pattern.permute.xlu0 0
      %2007 = vperm.xlu0 %2006, %v1957
      %v2008 = vpop.permute.xlu0 %2007
      %2011 = vset.pattern.permute.xlu0 0
      %2012 = vperm.xlu0 %2011, %v1958
      %v2013 = vpop.permute.xlu0 %2012
      %2016 = vset.pattern.permute.xlu0 0
      %2017 = vperm.xlu0 %2016, %v1959
      %v2018 = vpop.permute.xlu0 %2017
      %2021 = vset.pattern.permute.xlu0 0
      %2022 = vperm.xlu0 %2021, %v1960
      %v2023 = vpop.permute.xlu0 %2022
      %v2025 = vmul.f32 %v1977, %v1988
      %v2026 = vmul.f32 %v1978, %v1993
      %v2027 = vmul.f32 %v1979, %v1998
      %v2028 = vmul.f32 %v1980, %v2003
      %v2029 = vmul.f32 %v1981, %v2008
      %v2030 = vmul.f32 %v1982, %v2013
      %v2031 = vmul.f32 %v1983, %v2018
      %v2032 = vmul.f32 %v1984, %v2023
      %v2033 = vpack.c.bf16 %v2026, %v2025
      %v2034 = vpack.c.bf16 %v2028, %v2027
      %v2035 = vpack.c.bf16 %v2030, %v2029
      %v2036 = vpack.c.bf16 %v2032, %v2031
      %s2037 = scalar_lea.vmem %s10, 16
      %v2038 = vld [vmem:[%s2037] sm:$0x3]
      %v2040 = vsel %vm687, %v2033, 0
      %v2043 = vsel %vm687, %v2034, 0
      %v2046 = vsel %vm687, %v2035, 0
      %v2049 = vsel %vm687, %v2036, 0
      %v2052 = vsel %vm700, %v2038, 0
      %2054 = vmatprep.subr.bf16.mxu0 0
      %2055 = vmatpush1.bf16.msra.mxu0 %v2052
      %2056 = vmatprep.subr.bf16.mxu0 0
      %2057 = vmatpush1.bf16.msra.mxu0 0
      %2058 = vmatprep.subr.bf16.mxu0 0
      %2059 = vmatpush1.bf16.msra.mxu0 0
      %2060 = vmatprep.subr.bf16.mxu0 0
      %2061 = vmatpush1.bf16.msra.mxu0 0
      %2062 = vmatprep.subr.bf16.mxu0 0
      %2063 = vmatpush1.bf16.msra.mxu0 0
      %2064 = vmatprep.subr.bf16.mxu0 0
      %2065 = vmatpush1.bf16.msra.mxu0 0
      %2066 = vmatprep.subr.bf16.mxu0 0
      %2067 = vmatpush1.bf16.msra.mxu0 0
      %2068 = vmatprep.subr.bf16.mxu0 0
      %2069 = vmatpush1.bf16.msra.mxu0 0
      %2070 = vmatprep.subr.bf16.mxu0 0
      %2071 = vmatpush1.bf16.msra.mxu0 0
      %2072 = vmatprep.subr.bf16.mxu0 0
      %2073 = vmatpush1.bf16.msra.mxu0 0
      %2074 = vmatprep.subr.bf16.mxu0 0
      %2075 = vmatpush1.bf16.msra.mxu0 0
      %2076 = vmatprep.subr.bf16.mxu0 0
      %2077 = vmatpush1.bf16.msra.mxu0 0
      %2078 = vmatprep.subr.bf16.mxu0 0
      %2079 = vmatpush1.bf16.msra.mxu0 0
      %2080 = vmatprep.subr.bf16.mxu0 0
      %2081 = vmatpush1.bf16.msra.mxu0 0
      %2082 = vmatprep.subr.bf16.mxu0 0
      %2083 = vmatpush1.bf16.msra.mxu0 0
      %2084 = vmatprep.subr.bf16.mxu0 0
      %2085 = vmatpush1.bf16.msra.mxu0 0
      %2086 = vmatprep.mubr.bf16.mxu0 0
      %2087 = vmatmul.mubr.bf16.gmra.mrb[0].mxu0 %v2040
      %v2088 = vpop.f32.mrb[0].mxu0
      %v2089 = vadd.f32 0.0, %v2088
      %v2090 = vpop.f32.mrb[0].mxu0
      %v2091 = vpop.f32.mrb[0].mxu0
      %v2092 = vadd.f32 0.0, %v2091
      %v2093 = vpop.f32.mrb[0].mxu0
      %2094 = vmatprep.mubr.bf16.mxu0 0
      %2095 = vmatmul.mubr.bf16.gmra.mrb[0].mxu0 %v2043
      %v2096 = vpop.f32.mrb[0].mxu0
      %v2097 = vadd.f32 0.0, %v2096
      %v2098 = vpop.f32.mrb[0].mxu0
      %v2099 = vpop.f32.mrb[0].mxu0
      %v2100 = vadd.f32 0.0, %v2099
      %v2101 = vpop.f32.mrb[0].mxu0
      %2102 = vmatprep.mubr.bf16.mxu0 0
      %2103 = vmatmul.mubr.bf16.gmra.mrb[0].mxu0 %v2046
      %v2104 = vpop.f32.mrb[0].mxu0
      %v2105 = vadd.f32 0.0, %v2104
      %v2106 = vpop.f32.mrb[0].mxu0
      %v2107 = vpop.f32.mrb[0].mxu0
      %v2108 = vadd.f32 0.0, %v2107
      %v2109 = vpop.f32.mrb[0].mxu0
      %2110 = vmatprep.mubr.bf16.mxu0 0
      %2111 = vmatmul.mubr.bf16.gmra.mrb[0].mxu0 %v2049
      %v2112 = vpop.f32.mrb[0].mxu0
      %v2113 = vadd.f32 0.0, %v2112
      %v2114 = vpop.f32.mrb[0].mxu0
      %v2115 = vpop.f32.mrb[0].mxu0
      %v2116 = vadd.f32 0.0, %v2115
      %v2117 = vpop.f32.mrb[0].mxu0
      %2118 = vdwg.mxu0
      %v2119 = vadd.f32 %v1937, %v2089
      %v2120 = vadd.f32 %v1938, %v2092
      %v2121 = vadd.f32 %v1939, %v2097
      %v2122 = vadd.f32 %v1940, %v2100
      %v2123 = vadd.f32 %v1941, %v2105
      %v2124 = vadd.f32 %v1942, %v2108
      %v2125 = vadd.f32 %v1943, %v2113
      %v2126 = vadd.f32 %v1944, %v2116
      %v2127 = vadd.f32 %v2119, %v2120
      %v2128 = vadd.f32 %v2127, %v2121
      %v2129 = vadd.f32 %v2128, %v2122
      %v2130 = vadd.f32 %v2129, %v2123
      %v2131 = vadd.f32 %v2130, %v2124
      %v2132 = vadd.f32 %v2131, %v2125
      %v2133 = vadd.f32 %v2132, %v2126
      %v2134 = vrot.slane %v2133, 4
      %v2135 = vadd.f32 %v2133, %v2134
      %v2136 = vrot.slane %v2135, 2
      %v2137 = vadd.f32 %v2135, %v2136
      %v2138 = vrot.slane %v2137, 1
      %v2139 = vadd.f32 %v2137, %v2138
      %2140 = vst [vmem:[%s484] sm:$0x1] %v2139
      %v2141 = vmul.f32 %v2119, %v2119
      %v2142 = vmul.f32 %v2120, %v2120
      %v2143 = vmul.f32 %v2121, %v2121
      %v2144 = vmul.f32 %v2122, %v2122
      %v2145 = vmul.f32 %v2123, %v2123
      %v2146 = vmul.f32 %v2124, %v2124
      %v2147 = vmul.f32 %v2125, %v2125
      %v2148 = vmul.f32 %v2126, %v2126
      %v2149 = vadd.f32 %v2141, %v2142
      %v2150 = vadd.f32 %v2149, %v2143
      %v2151 = vadd.f32 %v2150, %v2144
      %v2152 = vadd.f32 %v2151, %v2145
      %v2153 = vadd.f32 %v2152, %v2146
      %v2154 = vadd.f32 %v2153, %v2147
      %v2155 = vadd.f32 %v2154, %v2148
      %v2156 = vrot.slane %v2155, 4
      %v2157 = vadd.f32 %v2155, %v2156
      %v2158 = vrot.slane %v2157, 2
      %v2159 = vadd.f32 %v2157, %v2158
      %v2160 = vrot.slane %v2159, 1
      %v2161 = vadd.f32 %v2159, %v2160
      %2162 = vst [vmem:[%s484 + $0x1] sm:$0x1] %v2161
      %v2163 = vpack.c.bf16 %v2120, %v2119
      %v2164 = vpack.c.bf16 %v2122, %v2121
      %v2165 = vpack.c.bf16 %v2124, %v2123
      %v2166 = vpack.c.bf16 %v2126, %v2125
      %2167 = vst [vmem:[%s480] sm:$0xf] 0
      %2168 = vst [vmem:[%s480 + $0x4] sm:$0x1] 0
      %2169 = vst [vmem:[%s480 + $0x8] sm:$0xf] 0
      %2170 = vst [vmem:[%s480 + $0xc] sm:$0x1] 0
      %2171 = vst [vmem:[%s480 + $0x10] sm:$0xf] 0
      %2172 = vst [vmem:[%s480 + $0x14] sm:$0x1] 0
      %2173 = vst [vmem:[%s480 + $0x18] sm:$0xf] 0
      %2174 = vst [vmem:[%s480 + $0x1c] sm:$0x1] 0
      %2175 = vst [vmem:[%s480 + $0x20] sm:$0xf] 0
      %2176 = vst [vmem:[%s480 + $0x24] sm:$0x1] 0
      %2177 = vst [vmem:[%s480 + $0x28] sm:$0xf] 0
      %2178 = vst [vmem:[%s480 + $0x2c] sm:$0x1] 0
      %2179 = vst [vmem:[%s480 + $0x30] sm:$0xf] 0
      %2180 = vst [vmem:[%s480 + $0x34] sm:$0x1] 0
      %2181 = vst [vmem:[%s480 + $0x38] sm:$0xf] 0
      %2182 = vst [vmem:[%s480 + $0x3c] sm:$0x1] 0
      %2183 = vst [vmem:[%s480 + $0x40] sm:$0xf] 0
      %2184 = vst [vmem:[%s480 + $0x44] sm:$0x1] 0
      %2185 = vst [vmem:[%s480 + $0x48] sm:$0xf] 0
      %2186 = vst [vmem:[%s480 + $0x4c] sm:$0x1] 0
      %v2191 = vunpack.c.l.b16 %v2163
      %v2192 = vunpack.c.h.b16 %v2163
      %v2193 = vunpack.c.l.b16 %v2164
      %v2194 = vunpack.c.h.b16 %v2164
      %v2195 = vunpack.c.l.b16 %v2165
      %v2196 = vunpack.c.h.b16 %v2165
      %v2197 = vunpack.c.l.b16 %v2166
      %v2198 = vunpack.c.h.b16 %v2166
      %v2199 = vpack.c.b16 %v2191, %v2191
      %v2200 = vpack.c.b16 %v2192, %v2192
      %v2201 = vpack.c.b16 %v2193, %v2193
      %v2202 = vpack.c.b16 %v2194, %v2194
      %v2203 = vpack.c.b16 %v2195, %v2195
      %v2204 = vpack.c.b16 %v2196, %v2196
      %v2205 = vpack.c.b16 %v2197, %v2197
      %v2206 = vpack.c.b16 %v2198, %v2198
      %v2208 = vshrl.u32 %v2199, 16
      %v2210 = vrot.slane %v2208, 7
      %v2211 = vshll.u32 %v2199, 16
      %v2213 = vor.u32 %v2210, %v2211
      %v2214 = vrot.slane %v2210, 4
      %v2216 = vshrl.u32 %v2200, 16
      %v2218 = vrot.slane %v2216, 7
      %v2219 = vshll.u32 %v2200, 16
      %v2221 = vor.u32 %v2218, %v2219
      %v2222 = vrot.slane %v2218, 4
      %v2224 = vshrl.u32 %v2201, 16
      %v2226 = vrot.slane %v2224, 7
      %v2227 = vshll.u32 %v2201, 16
      %v2229 = vor.u32 %v2226, %v2227
      %v2230 = vrot.slane %v2226, 4
      %v2232 = vshrl.u32 %v2202, 16
      %v2234 = vrot.slane %v2232, 7
      %v2235 = vshll.u32 %v2202, 16
      %v2237 = vor.u32 %v2234, %v2235
      %v2238 = vrot.slane %v2234, 4
      %v2240 = vshrl.u32 %v2203, 16
      %v2242 = vrot.slane %v2240, 7
      %v2243 = vshll.u32 %v2203, 16
      %v2245 = vor.u32 %v2242, %v2243
      %v2246 = vrot.slane %v2242, 4
      %v2248 = vshrl.u32 %v2204, 16
      %v2250 = vrot.slane %v2248, 7
      %v2251 = vshll.u32 %v2204, 16
      %v2253 = vor.u32 %v2250, %v2251
      %v2254 = vrot.slane %v2250, 4
      %v2256 = vshrl.u32 %v2205, 16
      %v2258 = vrot.slane %v2256, 7
      %v2259 = vshll.u32 %v2205, 16
      %v2261 = vor.u32 %v2258, %v2259
      %v2262 = vrot.slane %v2258, 4
      %v2264 = vshrl.u32 %v2206, 16
      %v2266 = vrot.slane %v2264, 7
      %v2267 = vshll.u32 %v2206, 16
      %v2269 = vor.u32 %v2266, %v2267
      %v2270 = vrot.slane %v2266, 4
      %s2287 = scalar_lea.vmem %s480, 8
      %vm2288 = vcmask 1043456
      %vm2289 = vsmask.f32 7938
      %vm2290 = vmand %vm2288, %vm2289
      %v2291 = vld [vmem:[%s2287] sm:$0xf]
      %v2292 = vsel %vm2290, %v2213, %v2291
      %2293 = vst [vmem:[%s2287] sm:$0xf] %v2292
      %vm2294 = vcmask 1040384
      %vm2295 = vsmask.f32 256
      %vm2296 = vmand %vm2294, %vm2295
      %v2297 = vld [vmem:[%s2287 + $0x4] sm:$0x1]
      %v2298 = vsel %vm2296, %v2214, %v2297
      %2299 = vst [vmem:[%s2287 + $0x4] sm:$0x1] %v2298
      %v2300 = vld [vmem:[%s2287 + $0x8] sm:$0xf]
      %v2301 = vsel %vm2290, %v2221, %v2300
      %2302 = vst [vmem:[%s2287 + $0x8] sm:$0xf] %v2301
      %v2303 = vld [vmem:[%s2287 + $0xc] sm:$0x1]
      %v2304 = vsel %vm2296, %v2222, %v2303
      %2305 = vst [vmem:[%s2287 + $0xc] sm:$0x1] %v2304
      %v2306 = vld [vmem:[%s2287 + $0x10] sm:$0xf]
      %v2307 = vsel %vm2290, %v2229, %v2306
      %2308 = vst [vmem:[%s2287 + $0x10] sm:$0xf] %v2307
      %v2309 = vld [vmem:[%s2287 + $0x14] sm:$0x1]
      %v2310 = vsel %vm2296, %v2230, %v2309
      %2311 = vst [vmem:[%s2287 + $0x14] sm:$0x1] %v2310
      %v2312 = vld [vmem:[%s2287 + $0x18] sm:$0xf]
      %v2313 = vsel %vm2290, %v2237, %v2312
      %2314 = vst [vmem:[%s2287 + $0x18] sm:$0xf] %v2313
      %v2315 = vld [vmem:[%s2287 + $0x1c] sm:$0x1]
      %v2316 = vsel %vm2296, %v2238, %v2315
      %2317 = vst [vmem:[%s2287 + $0x1c] sm:$0x1] %v2316
      %v2318 = vld [vmem:[%s2287 + $0x20] sm:$0xf]
      %v2319 = vsel %vm2290, %v2245, %v2318
      %2320 = vst [vmem:[%s2287 + $0x20] sm:$0xf] %v2319
      %v2321 = vld [vmem:[%s2287 + $0x24] sm:$0x1]
      %v2322 = vsel %vm2296, %v2246, %v2321
      %2323 = vst [vmem:[%s2287 + $0x24] sm:$0x1] %v2322
      %v2324 = vld [vmem:[%s2287 + $0x28] sm:$0xf]
      %v2325 = vsel %vm2290, %v2253, %v2324
      %2326 = vst [vmem:[%s2287 + $0x28] sm:$0xf] %v2325
      %v2327 = vld [vmem:[%s2287 + $0x2c] sm:$0x1]
      %v2328 = vsel %vm2296, %v2254, %v2327
      %2329 = vst [vmem:[%s2287 + $0x2c] sm:$0x1] %v2328
      %v2330 = vld [vmem:[%s2287 + $0x30] sm:$0xf]
      %v2331 = vsel %vm2290, %v2261, %v2330
      %2332 = vst [vmem:[%s2287 + $0x30] sm:$0xf] %v2331
      %v2333 = vld [vmem:[%s2287 + $0x34] sm:$0x1]
      %v2334 = vsel %vm2296, %v2262, %v2333
      %2335 = vst [vmem:[%s2287 + $0x34] sm:$0x1] %v2334
      %v2336 = vld [vmem:[%s2287 + $0x38] sm:$0xf]
      %v2337 = vsel %vm2290, %v2269, %v2336
      %2338 = vst [vmem:[%s2287 + $0x38] sm:$0xf] %v2337
      %v2339 = vld [vmem:[%s2287 + $0x3c] sm:$0x1]
      %v2340 = vsel %vm2296, %v2270, %v2339
      %2341 = vst [vmem:[%s2287 + $0x3c] sm:$0x1] %v2340
      %p2342 = scmp.lt.s32.totalorder %s24, 1
      %s2343 = scalar_select %p2342, %s24, 1
      %s2344 = smul.addr %s2343, 20
      %s2345 = smul.addr %s2344, 4
      %s2346 = scalar_lea.vmem %s11, %s2345
      %p2347 = scmp.lt.s32.totalorder %s24, 1
      %s2348 = scalar_select %p2347, %s24, 1
      %s2349 = smul.addr %s2348, 2
      %s2350 = scalar_lea.vmem %s12, %s2349
      // Predicated region
      $region65: #{_block_forward.4} parent=63 // pred_check
        %p2351 = pneg %p293
      $region66: #{_block_forward.4} parent=63 // pred_check_branch
        %2353 = sbr.rel (%p2351) target = $region68
      $region67: #{_block_forward.4} parent=63 // pred_region
        _
      $region68: #{_block_forward.4} parent=63 // pred_fallthru
        _
      // Predicated region
      $region69: #{_block_forward.4} parent=63 // pred_check
        %p2354 = pneg %p319
      $region70: #{_block_forward.4} parent=63 // pred_check_branch
        %2356 = sbr.rel (%p2354) target = $region72
      $region71: #{_block_forward.4} parent=63 // pred_region
        _
      $region72: #{_block_forward.4} parent=63 // pred_fallthru
        _
    $region64: #{_block_forward.4} parent=5 // pred_fallthru
      _
    %p2357 = scmp.le.s32.totalorder 2, %s19
    // Predicated region
    $region73: #{_block_forward.4} parent=5 // pred_check
      %p2358 = pneg %p2357
    $region74: #{_block_forward.4} parent=5 // pred_check_branch
      %2360 = sbr.rel (%p2358) target = $region76
    $region75: #{_block_forward.4} parent=5 // pred_region
      %s2361 = ssub.s32 %s19, 2
      // Predicated region
      $region77: #{_block_forward.4} parent=75 // pred_check
        %p2362 = pneg %p299
      $region78: #{_block_forward.4} parent=75 // pred_check_branch
        %2364 = sbr.rel (%p2362) target = $region80
      $region79: #{_block_forward.4} parent=75 // pred_region
        %p2365 = scmp.lt.s32.totalorder %s25, 1
        %s2366 = scalar_select %p2365, %s25, 1
        %s2367 = smul.addr %s2366, 20
        %s2368 = smul.addr %s2367, 4
        %s2369 = scalar_lea.vmem %s11, %s2368
      $region80: #{_block_forward.4} parent=75 // pred_fallthru
        _
      // Predicated region
      $region81: #{_block_forward.4} parent=75 // pred_check
        %p2370 = pneg %p325
      $region82: #{_block_forward.4} parent=75 // pred_check_branch
        %2372 = sbr.rel (%p2370) target = $region84
      $region83: #{_block_forward.4} parent=75 // pred_region
        %p2373 = scmp.lt.s32.totalorder %s25, 1
        %s2374 = scalar_select %p2373, %s25, 1
        %s2375 = smul.addr %s2374, 2
        %s2376 = scalar_lea.vmem %s12, %s2375
      $region84: #{_block_forward.4} parent=75 // pred_fallthru
        _
    $region76: #{_block_forward.4} parent=5 // pred_fallthru
      _
  $region6: #{_block_forward.4} parent=0 // loop_footer
    %s23 = sadd.s32 1, %s19
  $region7: #{_block_forward.4} parent=0 // loop_footer_branch
    %18 = sbr.rel target = $region3
  $region8: #{_block_forward.4} parent=0 // loop_exit
    _

// kernel: _block_forward.5
$region0: #{_block_forward.5}
  #allocation0 [shape = 'u32[]', space=smem, size = 0x4, offset = 0x4, fixed_abs, tag = 'smem constant byte address 0x4 - core index']
  #allocation1 [shape = 'u32[144,128]{1,0:T(1,128)}', space=vmem, size = 0x12000, scoped, tag = 'internal scratch']
  %s0 = inlined_call_operand.vmem [shape: bf16[2,10,10,128], index: 0, kind: input, shape index: {}]
  %s1 = inlined_call_operand.vmem [shape: f32[1,10,10,1], index: 1, kind: input, shape index: {}]
  %s2 = inlined_call_operand.vmem [shape: f32[1,1,128], index: 2, kind: input, shape index: {}]
  %s3 = inlined_call_operand.vmem [shape: f32[1,1,128], index: 3, kind: input, shape index: {}]
  %s4 = inlined_call_operand.vmem [shape: bf16[9,128,128], index: 4, kind: input, shape index: {}]
  %s5 = inlined_call_operand.vmem [shape: f32[2,8,8,4], index: 5, kind: input, shape index: {}]
  %s6 = inlined_call_operand.vmem [shape: f32[1,1,4], index: 6, kind: input, shape index: {}]
  %s7 = inlined_call_operand.vmem [shape: f32[1,1,4], index: 7, kind: input, shape index: {}]
  %s8 = inlined_call_operand.vmem [shape: bf16[4,128], index: 8, kind: input, shape index: {}]
  %s9 = inlined_call_operand.vmem [shape: f32[2,8,8,128], index: 9, kind: output, shape index: {}]
  %s10 = sld [smem:[#allocation0]]
  $region69: #{_block_forward.5} parent=0
    _
  %s12 = ssub.s32 1, %s10
  %s13 = scalar_select 0, %s12, %s10
  loop: start=0, step=1, limit=4
  $region2: #{_block_forward.5} parent=0 // loop_pre_header
    _
  $region3: #{_block_forward.5} parent=0 // loop_header
    %s15 = sphi 0, %s19
    %p16 = scmp.ge.s32.totalorder %s15, 4
    %s25 = sphi 0, %s27
    %s28 = sphi 0, %s25
    %s29 = sphi 0, %s28
    %s45 = sphi 0, %s29
    %s49 = sphi 0, %s49
    %s51 = sphi 0, %s49
    %s52 = sphi 0, %s51
    %s66 = sphi 0, %s52
    %s70 = sphi 0, %s70
    %s72 = sphi 0, %s70
    %s73 = sphi 0, %s72
    %s87 = sphi 0, %s73
    %s91 = sphi 0, %s91
    %s93 = sphi 0, %s91
    %s94 = sphi 0, %s93
    %s108 = sphi 0, %s94
    %s112 = sphi 0, %s112
    %s114 = sphi 0, %s112
    %s115 = sphi 0, %s114
    %s129 = sphi 0, %s115
    %s135 = sphi 0, %s137
    %s138 = sphi 0, %s135
    %s139 = sphi 0, %s138
    %s155 = sphi 0, %s139
    %s159 = sphi 0, %s159
    %s161 = sphi 0, %s159
    %s162 = sphi 0, %s161
    %s176 = sphi 0, %s162
    %s180 = sphi 0, %s180
    %s182 = sphi 0, %s180
    %s183 = sphi 0, %s182
    %s197 = sphi 0, %s183
    %s201 = sphi 0, %s201
    %s203 = sphi 0, %s201
    %s204 = sphi 0, %s203
    %s218 = sphi 0, %s204
    %s224 = sphi 0, %s226
    %s227 = sphi 0, %s224
    %s228 = sphi 0, %s227
    %s244 = sphi 0, %s228
  $region4: #{_block_forward.5} parent=0 // loop_header_branch
    %18 = sbr.rel (%p16) target = $region8
  $region5: #{_block_forward.5} parent=0 // loop_body
    %s20 = ssub.s32 %s15, 1
    %s21 = ssub.s32 %s15, 2
    %s22 = sadd.s32 %s15, 1
    %s23 = ssub.s32 %s15, %s22
    %p24 = scmp.eq.s32.totalorder %s23, 0
    %s26 = sadd.s32 %s25, 1
    %s27 = scalar_select %p24, %s25, %s26
    %p30 = pneg %p24
    %p31 = scmp.eq.s32.totalorder %s15, 1
    %p32 = por %p30, %p31
    %p33 = scmp.ne.s32.totalorder %s25, %s28
    %p34 = scmp.eq.s32.totalorder %s15, 0
    %p35 = por %p33, %p34
    %p36 = scmp.ne.s32.totalorder %s25, %s28
    %p37 = scmp.eq.s32.totalorder %s20, 1
    %p38 = por %p36, %p37
    %p39 = scmp.ne.s32.totalorder %s28, %s29
    %p40 = scmp.eq.s32.totalorder %s20, 0
    %p41 = por %p39, %p40
    %p42 = scmp.ne.s32.totalorder %s28, %s29
    %p43 = scmp.eq.s32.totalorder %s21, 1
    %p44 = por %p42, %p43
    %p46 = scmp.ne.s32.totalorder %s29, %s45
    %p47 = scmp.eq.s32.totalorder %s21, 0
    %p48 = por %p46, %p47
    %s50 = sadd.s32 %s49, 1
    %p53 = scmp.eq.s32.totalorder %s15, 1
    %p54 = scmp.ne.s32.totalorder %s49, %s51
    %p55 = scmp.eq.s32.totalorder %s15, 0
    %p56 = por %p54, %p55
    %p57 = scmp.ne.s32.totalorder %s49, %s51
    %p58 = scmp.eq.s32.totalorder %s20, 1
    %p59 = por %p57, %p58
    %p60 = scmp.ne.s32.totalorder %s51, %s52
    %p61 = scmp.eq.s32.totalorder %s20, 0
    %p62 = por %p60, %p61
    %p63 = scmp.ne.s32.totalorder %s51, %s52
    %p64 = scmp.eq.s32.totalorder %s21, 1
    %p65 = por %p63, %p64
    %p67 = scmp.ne.s32.totalorder %s52, %s66
    %p68 = scmp.eq.s32.totalorder %s21, 0
    %p69 = por %p67, %p68
    %s71 = sadd.s32 %s70, 1
    %p74 = scmp.eq.s32.totalorder %s15, 1
    %p75 = scmp.ne.s32.totalorder %s70, %s72
    %p76 = scmp.eq.s32.totalorder %s15, 0
    %p77 = por %p75, %p76
    %p78 = scmp.ne.s32.totalorder %s70, %s72
    %p79 = scmp.eq.s32.totalorder %s20, 1
    %p80 = por %p78, %p79
    %p81 = scmp.ne.s32.totalorder %s72, %s73
    %p82 = scmp.eq.s32.totalorder %s20, 0
    %p83 = por %p81, %p82
    %p84 = scmp.ne.s32.totalorder %s72, %s73
    %p85 = scmp.eq.s32.totalorder %s21, 1
    %p86 = por %p84, %p85
    %p88 = scmp.ne.s32.totalorder %s73, %s87
    %p89 = scmp.eq.s32.totalorder %s21, 0
    %p90 = por %p88, %p89
    %s92 = sadd.s32 %s91, 1
    %p95 = scmp.eq.s32.totalorder %s15, 1
    %p96 = scmp.ne.s32.totalorder %s91, %s93
    %p97 = scmp.eq.s32.totalorder %s15, 0
    %p98 = por %p96, %p97
    %p99 = scmp.ne.s32.totalorder %s91, %s93
    %p100 = scmp.eq.s32.totalorder %s20, 1
    %p101 = por %p99, %p100
    %p102 = scmp.ne.s32.totalorder %s93, %s94
    %p103 = scmp.eq.s32.totalorder %s20, 0
    %p104 = por %p102, %p103
    %p105 = scmp.ne.s32.totalorder %s93, %s94
    %p106 = scmp.eq.s32.totalorder %s21, 1
    %p107 = por %p105, %p106
    %p109 = scmp.ne.s32.totalorder %s94, %s108
    %p110 = scmp.eq.s32.totalorder %s21, 0
    %p111 = por %p109, %p110
    %s113 = sadd.s32 %s112, 1
    %p116 = scmp.eq.s32.totalorder %s15, 1
    %p117 = scmp.ne.s32.totalorder %s112, %s114
    %p118 = scmp.eq.s32.totalorder %s15, 0
    %p119 = por %p117, %p118
    %p120 = scmp.ne.s32.totalorder %s112, %s114
    %p121 = scmp.eq.s32.totalorder %s20, 1
    %p122 = por %p120, %p121
    %p123 = scmp.ne.s32.totalorder %s114, %s115
    %p124 = scmp.eq.s32.totalorder %s20, 0
    %p125 = por %p123, %p124
    %p126 = scmp.ne.s32.totalorder %s114, %s115
    %p127 = scmp.eq.s32.totalorder %s21, 1
    %p128 = por %p126, %p127
    %p130 = scmp.ne.s32.totalorder %s115, %s129
    %p131 = scmp.eq.s32.totalorder %s21, 0
    %p132 = por %p130, %p131
    %s133 = ssub.s32 %s15, %s22
    %p134 = scmp.eq.s32.totalorder %s133, 0
    %s136 = sadd.s32 %s135, 1
    %s137 = scalar_select %p134, %s135, %s136
    %p140 = pneg %p134
    %p141 = scmp.eq.s32.totalorder %s15, 1
    %p142 = por %p140, %p141
    %p143 = scmp.ne.s32.totalorder %s135, %s138
    %p144 = scmp.eq.s32.totalorder %s15, 0
    %p145 = por %p143, %p144
    %p146 = scmp.ne.s32.totalorder %s135, %s138
    %p147 = scmp.eq.s32.totalorder %s20, 1
    %p148 = por %p146, %p147
    %p149 = scmp.ne.s32.totalorder %s138, %s139
    %p150 = scmp.eq.s32.totalorder %s20, 0
    %p151 = por %p149, %p150
    %p152 = scmp.ne.s32.totalorder %s138, %s139
    %p153 = scmp.eq.s32.totalorder %s21, 1
    %p154 = por %p152, %p153
    %p156 = scmp.ne.s32.totalorder %s139, %s155
    %p157 = scmp.eq.s32.totalorder %s21, 0
    %p158 = por %p156, %p157
    %s160 = sadd.s32 %s159, 1
    %p163 = scmp.eq.s32.totalorder %s15, 1
    %p164 = scmp.ne.s32.totalorder %s159, %s161
    %p165 = scmp.eq.s32.totalorder %s15, 0
    %p166 = por %p164, %p165
    %p167 = scmp.ne.s32.totalorder %s159, %s161
    %p168 = scmp.eq.s32.totalorder %s20, 1
    %p169 = por %p167, %p168
    %p170 = scmp.ne.s32.totalorder %s161, %s162
    %p171 = scmp.eq.s32.totalorder %s20, 0
    %p172 = por %p170, %p171
    %p173 = scmp.ne.s32.totalorder %s161, %s162
    %p174 = scmp.eq.s32.totalorder %s21, 1
    %p175 = por %p173, %p174
    %p177 = scmp.ne.s32.totalorder %s162, %s176
    %p178 = scmp.eq.s32.totalorder %s21, 0
    %p179 = por %p177, %p178
    %s181 = sadd.s32 %s180, 1
    %p184 = scmp.eq.s32.totalorder %s15, 1
    %p185 = scmp.ne.s32.totalorder %s180, %s182
    %p186 = scmp.eq.s32.totalorder %s15, 0
    %p187 = por %p185, %p186
    %p188 = scmp.ne.s32.totalorder %s180, %s182
    %p189 = scmp.eq.s32.totalorder %s20, 1
    %p190 = por %p188, %p189
    %p191 = scmp.ne.s32.totalorder %s182, %s183
    %p192 = scmp.eq.s32.totalorder %s20, 0
    %p193 = por %p191, %p192
    %p194 = scmp.ne.s32.totalorder %s182, %s183
    %p195 = scmp.eq.s32.totalorder %s21, 1
    %p196 = por %p194, %p195
    %p198 = scmp.ne.s32.totalorder %s183, %s197
    %p199 = scmp.eq.s32.totalorder %s21, 0
    %p200 = por %p198, %p199
    %s202 = sadd.s32 %s201, 1
    %p205 = scmp.eq.s32.totalorder %s15, 1
    %p206 = scmp.ne.s32.totalorder %s201, %s203
    %p207 = scmp.eq.s32.totalorder %s15, 0
    %p208 = por %p206, %p207
    %p209 = scmp.ne.s32.totalorder %s201, %s203
    %p210 = scmp.eq.s32.totalorder %s20, 1
    %p211 = por %p209, %p210
    %p212 = scmp.ne.s32.totalorder %s203, %s204
    %p213 = scmp.eq.s32.totalorder %s20, 0
    %p214 = por %p212, %p213
    %p215 = scmp.ne.s32.totalorder %s203, %s204
    %p216 = scmp.eq.s32.totalorder %s21, 1
    %p217 = por %p215, %p216
    %p219 = scmp.ne.s32.totalorder %s204, %s218
    %p220 = scmp.eq.s32.totalorder %s21, 0
    %p221 = por %p219, %p220
    %s222 = ssub.s32 %s15, %s22
    %p223 = scmp.eq.s32.totalorder %s222, 0
    %s225 = sadd.s32 %s224, 1
    %s226 = scalar_select %p223, %s224, %s225
    %p229 = pneg %p223
    %p230 = scmp.eq.s32.totalorder %s15, 1
    %p231 = por %p229, %p230
    %p232 = scmp.ne.s32.totalorder %s224, %s227
    %p233 = scmp.eq.s32.totalorder %s15, 0
    %p234 = por %p232, %p233
    %p235 = scmp.ne.s32.totalorder %s224, %s227
    %p236 = scmp.eq.s32.totalorder %s20, 1
    %p237 = por %p235, %p236
    %p238 = scmp.ne.s32.totalorder %s227, %s228
    %p239 = scmp.eq.s32.totalorder %s20, 0
    %p240 = por %p238, %p239
    %p241 = scmp.ne.s32.totalorder %s227, %s228
    %p242 = scmp.eq.s32.totalorder %s21, 1
    %p243 = por %p241, %p242
    %p245 = scmp.ne.s32.totalorder %s228, %s244
    %p246 = scmp.eq.s32.totalorder %s21, 0
    %p247 = por %p245, %p246
    %p248 = scmp.le.s32.totalorder 1, %s15
    %p249 = scmp.lt.s32.totalorder %s15, 3
    %p250 = pnand %p248, %p249
    %p251 = pneg %p250
    // Predicated region
    $region9: #{_block_forward.5} parent=5 // pred_check
      _
    $region10: #{_block_forward.5} parent=5 // pred_check_branch
      %253 = sbr.rel (%p250) target = $region12
    $region11: #{_block_forward.5} parent=5 // pred_region
      %s254 = ssub.s32 %s15, 1
      // Predicated region
      $region13: #{_block_forward.5} parent=11 // pred_check
        %p255 = pneg %p62
      $region14: #{_block_forward.5} parent=11 // pred_check_branch
        %257 = sbr.rel (%p255) target = $region16
      $region15: #{_block_forward.5} parent=11 // pred_region
        _
      $region16: #{_block_forward.5} parent=11 // pred_fallthru
        _
      // Predicated region
      $region17: #{_block_forward.5} parent=11 // pred_check
        %p258 = pneg %p83
      $region18: #{_block_forward.5} parent=11 // pred_check_branch
        %260 = sbr.rel (%p258) target = $region20
      $region19: #{_block_forward.5} parent=11 // pred_region
        _
      $region20: #{_block_forward.5} parent=11 // pred_fallthru
        _
      // Predicated region
      $region21: #{_block_forward.5} parent=11 // pred_check
        %p261 = pneg %p104
      $region22: #{_block_forward.5} parent=11 // pred_check_branch
        %263 = sbr.rel (%p261) target = $region24
      $region23: #{_block_forward.5} parent=11 // pred_region
        _
      $region24: #{_block_forward.5} parent=11 // pred_fallthru
        _
      // Predicated region
      $region25: #{_block_forward.5} parent=11 // pred_check
        %p264 = pneg %p125
      $region26: #{_block_forward.5} parent=11 // pred_check_branch
        %266 = sbr.rel (%p264) target = $region28
      $region27: #{_block_forward.5} parent=11 // pred_region
        _
      $region28: #{_block_forward.5} parent=11 // pred_fallthru
        _
      // Predicated region
      $region29: #{_block_forward.5} parent=11 // pred_check
        %p267 = pneg %p172
      $region30: #{_block_forward.5} parent=11 // pred_check_branch
        %269 = sbr.rel (%p267) target = $region32
      $region31: #{_block_forward.5} parent=11 // pred_region
        _
      $region32: #{_block_forward.5} parent=11 // pred_fallthru
        _
      // Predicated region
      $region33: #{_block_forward.5} parent=11 // pred_check
        %p270 = pneg %p193
      $region34: #{_block_forward.5} parent=11 // pred_check_branch
        %272 = sbr.rel (%p270) target = $region36
      $region35: #{_block_forward.5} parent=11 // pred_region
        _
      $region36: #{_block_forward.5} parent=11 // pred_fallthru
        _
      // Predicated region
      $region37: #{_block_forward.5} parent=11 // pred_check
        %p273 = pneg %p214
      $region38: #{_block_forward.5} parent=11 // pred_check_branch
        %275 = sbr.rel (%p273) target = $region40
      $region39: #{_block_forward.5} parent=11 // pred_region
        _
      $region40: #{_block_forward.5} parent=11 // pred_fallthru
        _
    $region12: #{_block_forward.5} parent=5 // pred_fallthru
      _
    %p276 = scmp.lt.s32.totalorder %s15, 2
    // Predicated region
    $region41: #{_block_forward.5} parent=5 // pred_check
      %p277 = pneg %p276
    $region42: #{_block_forward.5} parent=5 // pred_check_branch
      %279 = sbr.rel (%p277) target = $region44
    $region43: #{_block_forward.5} parent=5 // pred_region
      // Predicated region
      $region45: #{_block_forward.5} parent=43 // pred_check
        %p280 = pneg %p35
      $region46: #{_block_forward.5} parent=43 // pred_check_branch
        %282 = sbr.rel (%p280) target = $region48
      $region47: #{_block_forward.5} parent=43 // pred_region
        %p283 = scmp.lt.s32.totalorder %s15, 1
        %s284 = scalar_select %p283, %s15, 1
        %s285 = smul.addr %s284, 20
        %s286 = smul.addr %s285, 4
        %s287 = scalar_lea.vmem %s0, %s286
      $region48: #{_block_forward.5} parent=43 // pred_fallthru
        _
      // Predicated region
      $region49: #{_block_forward.5} parent=43 // pred_check
        %p288 = pneg %p145
      $region50: #{_block_forward.5} parent=43 // pred_check_branch
        %290 = sbr.rel (%p288) target = $region52
      $region51: #{_block_forward.5} parent=43 // pred_region
        %p291 = scmp.lt.s32.totalorder %s15, 1
        %s292 = scalar_select %p291, %s15, 1
        %s293 = smul.addr %s292, 8
        %s294 = smul.addr %s293, 8
        %s295 = scalar_lea.vmem %s5, %s294
      $region52: #{_block_forward.5} parent=43 // pred_fallthru
        _
    $region44: #{_block_forward.5} parent=5 // pred_fallthru
      _
    %p296 = scmp.le.s32.totalorder 1, %s15
    %p297 = scmp.lt.s32.totalorder %s15, 3
    %p298 = pnand %p296, %p297
    %p299 = pneg %p298
    // Predicated region
    $region53: #{_block_forward.5} parent=5 // pred_check
      _
    $region54: #{_block_forward.5} parent=5 // pred_check_branch
      %301 = sbr.rel (%p298) target = $region56
    $region55: #{_block_forward.5} parent=5 // pred_region
      %s302 = ssub.s32 %s15, 1
      %p303 = scmp.lt.s32.totalorder %s20, 1
      %s304 = scalar_select %p303, %s20, 1
      %s305 = smul.addr %s304, 20
      %s306 = smul.addr %s305, 4
      %s307 = scalar_lea.vmem %s0, %s306
      %p308 = pneg %p41
      %p309 = pneg %p38
      %p310 = pneg %p62
      %p311 = pneg %p59
      %p312 = pneg %p83
      %p313 = pneg %p80
      %p314 = pneg %p104
      %p315 = pneg %p101
      %p316 = pneg %p125
      %p317 = pneg %p122
      %p318 = scmp.lt.s32.totalorder %s20, 1
      %s319 = scalar_select %p318, %s20, 1
      %s320 = smul.addr %s319, 8
      %s321 = smul.addr %s320, 8
      %s322 = scalar_lea.vmem %s5, %s321
      %p323 = pneg %p151
      %p324 = pneg %p148
      %p325 = pneg %p172
      %p326 = pneg %p169
      %p327 = pneg %p193
      %p328 = pneg %p190
      %p329 = pneg %p214
      %p330 = pneg %p211
      %p331 = pneg %p240
      %p332 = pneg %p237
      %p333 = scmp.lt.s32.totalorder %s20, 1
      %s334 = scalar_select %p333, %s20, 1
      %s335 = smul.addr %s334, 8
      %s336 = smul.addr %s335, 8
      %s337 = scalar_lea.vmem %s9, %s336
      %p338 = scmp.lt.s32.totalorder %s20, 1
      %s339 = scalar_select %p338, %s20, 1
      %s340 = smul.addr %s339, 20
      %s341 = smul.addr %s340, 4
      %s342 = scalar_lea.vmem %s0, %s341
      %p343 = scmp.lt.s32.totalorder %s20, 1
      %s344 = scalar_select %p343, %s20, 1
      %s345 = smul.addr %s344, 8
      %s346 = smul.addr %s345, 8
      %s347 = scalar_lea.vmem %s5, %s346
      %p348 = scmp.lt.s32.totalorder %s20, 1
      %s349 = scalar_select %p348, %s20, 1
      %s350 = smul.addr %s349, 8
      %s351 = smul.addr %s350, 8
      %s352 = scalar_lea.vmem %s9, %s351
      %v354 = vld [vmem:[%s2] sm:$0x1]
      %v355 = vld [vmem:[%s3] sm:$0x1]
      %v356 = vld [vmem:[%s342] sm:$0xf]
      %v357 = vld [vmem:[%s342 + $0x8] sm:$0xf]
      %v358 = vld [vmem:[%s342 + $0x10] sm:$0xf]
      %v359 = vld [vmem:[%s342 + $0x18] sm:$0xf]
      %v360 = vld [vmem:[%s342 + $0x20] sm:$0xf]
      %v361 = vld [vmem:[%s342 + $0x28] sm:$0xf]
      %v362 = vld [vmem:[%s342 + $0x30] sm:$0xf]
      %v363 = vld [vmem:[%s342 + $0x38] sm:$0xf]
      %v364 = vunpack.c.l.bf16 %v356
      %v365 = vunpack.c.l.bf16 %v357
      %v366 = vunpack.c.l.bf16 %v358
      %v367 = vunpack.c.l.bf16 %v359
      %v368 = vunpack.c.l.bf16 %v360
      %v369 = vunpack.c.l.bf16 %v361
      %v370 = vunpack.c.l.bf16 %v362
      %v371 = vunpack.c.l.bf16 %v363
      %v372 = vld [vmem:[%s1] sm:$0xff]
      %v373 = vld [vmem:[%s1 + $0x10] sm:$0xff]
      %v374 = vld [vmem:[%s1 + $0x20] sm:$0xff]
      %v375 = vld [vmem:[%s1 + $0x30] sm:$0xff]
      %v376 = vld [vmem:[%s1 + $0x40] sm:$0xff]
      %v377 = vld [vmem:[%s1 + $0x50] sm:$0xff]
      %v378 = vld [vmem:[%s1 + $0x60] sm:$0xff]
      %v379 = vld [vmem:[%s1 + $0x70] sm:$0xff]
      %v381 = vlaneseq
      %v382 = vshrl.u32 %v381, 7
      %v383 = vsub.s32 0, %v382
      %v384 = vrot.slane %v354, %v383
      %v386 = vmul.f32 %v364, %v384
      %v387 = vmul.f32 %v365, %v384
      %v388 = vmul.f32 %v366, %v384
      %v389 = vmul.f32 %v367, %v384
      %v390 = vmul.f32 %v368, %v384
      %v391 = vmul.f32 %v369, %v384
      %v392 = vmul.f32 %v370, %v384
      %v393 = vmul.f32 %v371, %v384
      %v395 = vlaneseq
      %v396 = vshrl.u32 %v395, 7
      %v397 = vsub.s32 0, %v396
      %v398 = vrot.slane %v355, %v397
      %v400 = vadd.f32 %v386, %v398
      %v401 = vadd.f32 %v387, %v398
      %v402 = vadd.f32 %v388, %v398
      %v403 = vadd.f32 %v389, %v398
      %v404 = vadd.f32 %v390, %v398
      %v405 = vadd.f32 %v391, %v398
      %v406 = vadd.f32 %v392, %v398
      %v407 = vadd.f32 %v393, %v398
      %v408 = vmax.f32 %v400, 0.0
      %v409 = vmax.f32 %v401, 0.0
      %v410 = vmax.f32 %v402, 0.0
      %v411 = vmax.f32 %v403, 0.0
      %v412 = vmax.f32 %v404, 0.0
      %v413 = vmax.f32 %v405, 0.0
      %v414 = vmax.f32 %v406, 0.0
      %v415 = vmax.f32 %v407, 0.0
      %417 = vset.pattern.permute.xlu0 0
      %418 = vperm.xlu0 %417, %v372
      %v419 = vpop.permute.xlu0 %418
      %422 = vset.pattern.permute.xlu0 0
      %423 = vperm.xlu0 %422, %v373
      %v424 = vpop.permute.xlu0 %423
      %427 = vset.pattern.permute.xlu0 0
      %428 = vperm.xlu0 %427, %v374
      %v429 = vpop.permute.xlu0 %428
      %432 = vset.pattern.permute.xlu0 0
      %433 = vperm.xlu0 %432, %v375
      %v434 = vpop.permute.xlu0 %433
      %437 = vset.pattern.permute.xlu0 0
      %438 = vperm.xlu0 %437, %v376
      %v439 = vpop.permute.xlu0 %438
      %442 = vset.pattern.permute.xlu0 0
      %443 = vperm.xlu0 %442, %v377
      %v444 = vpop.permute.xlu0 %443
      %447 = vset.pattern.permute.xlu0 0
      %448 = vperm.xlu0 %447, %v378
      %v449 = vpop.permute.xlu0 %448
      %452 = vset.pattern.permute.xlu0 0
      %453 = vperm.xlu0 %452, %v379
      %v454 = vpop.permute.xlu0 %453
      %v456 = vmul.f32 %v408, %v419
      %v457 = vmul.f32 %v409, %v424
      %v458 = vmul.f32 %v410, %v429
      %v459 = vmul.f32 %v411, %v434
      %v460 = vmul.f32 %v412, %v439
      %v461 = vmul.f32 %v413, %v444
      %v462 = vmul.f32 %v414, %v449
      %v463 = vmul.f32 %v415, %v454
      %v464 = vpack.c.bf16 %v457, %v456
      %v465 = vpack.c.bf16 %v459, %v458
      %v466 = vpack.c.bf16 %v461, %v460
      %v467 = vpack.c.bf16 %v463, %v462
      %v468 = vld [vmem:[%s4] sm:$0xf]
      %v469 = vld [vmem:[%s4 + $0x4] sm:$0xf]
      %v470 = vld [vmem:[%s4 + $0x8] sm:$0xf]
      %v471 = vld [vmem:[%s4 + $0xc] sm:$0xf]
      %v472 = vld [vmem:[%s4 + $0x10] sm:$0xf]
      %v473 = vld [vmem:[%s4 + $0x14] sm:$0xf]
      %v474 = vld [vmem:[%s4 + $0x18] sm:$0xf]
      %v475 = vld [vmem:[%s4 + $0x1c] sm:$0xf]
      %v476 = vld [vmem:[%s4 + $0x20] sm:$0xf]
      %v477 = vld [vmem:[%s4 + $0x24] sm:$0xf]
      %v478 = vld [vmem:[%s4 + $0x28] sm:$0xf]
      %v479 = vld [vmem:[%s4 + $0x2c] sm:$0xf]
      %v480 = vld [vmem:[%s4 + $0x30] sm:$0xf]
      %v481 = vld [vmem:[%s4 + $0x34] sm:$0xf]
      %v482 = vld [vmem:[%s4 + $0x38] sm:$0xf]
      %v483 = vld [vmem:[%s4 + $0x3c] sm:$0xf]
      %v484 = vld [vmem:[%s342] sm:$0xf]
      %v485 = vld [vmem:[%s342 + $0x4] sm:$0x1]
      %v486 = vld [vmem:[%s342 + $0x8] sm:$0xf]
      %v487 = vld [vmem:[%s342 + $0xc] sm:$0x1]
      %v488 = vld [vmem:[%s342 + $0x10] sm:$0xf]
      %v489 = vld [vmem:[%s342 + $0x14] sm:$0x1]
      %v490 = vld [vmem:[%s342 + $0x18] sm:$0xf]
      %v491 = vld [vmem:[%s342 + $0x1c] sm:$0x1]
      %v492 = vld [vmem:[%s342 + $0x20] sm:$0xf]
      %v493 = vld [vmem:[%s342 + $0x24] sm:$0x1]
      %v494 = vld [vmem:[%s342 + $0x28] sm:$0xf]
      %v495 = vld [vmem:[%s342 + $0x2c] sm:$0x1]
      %v496 = vld [vmem:[%s342 + $0x30] sm:$0xf]
      %v497 = vld [vmem:[%s342 + $0x34] sm:$0x1]
      %v498 = vld [vmem:[%s342 + $0x38] sm:$0xf]
      %v499 = vld [vmem:[%s342 + $0x3c] sm:$0x1]
      %v500 = vunpack.c.l.bf16 %v484
      %v501 = vunpack.c.l.bf16 %v485
      %v502 = vunpack.c.l.bf16 %v486
      %v503 = vunpack.c.l.bf16 %v487
      %v504 = vunpack.c.l.bf16 %v488
      %v505 = vunpack.c.l.bf16 %v489
      %v506 = vunpack.c.l.bf16 %v490
      %v507 = vunpack.c.l.bf16 %v491
      %v508 = vunpack.c.l.bf16 %v492
      %v509 = vunpack.c.l.bf16 %v493
      %v510 = vunpack.c.l.bf16 %v494
      %v511 = vunpack.c.l.bf16 %v495
      %v512 = vunpack.c.l.bf16 %v496
      %v513 = vunpack.c.l.bf16 %v497
      %v514 = vunpack.c.l.bf16 %v498
      %v515 = vunpack.c.l.bf16 %v499
      %v516 = vld [vmem:[%s1 + $0x1] sm:$0xff]
      %v517 = vld [vmem:[%s1 + $0x11] sm:$0xff]
      %v518 = vld [vmem:[%s1 + $0x21] sm:$0xff]
      %v519 = vld [vmem:[%s1 + $0x31] sm:$0xff]
      %v520 = vld [vmem:[%s1 + $0x41] sm:$0xff]
      %v521 = vld [vmem:[%s1 + $0x51] sm:$0xff]
      %v522 = vld [vmem:[%s1 + $0x61] sm:$0xff]
      %v523 = vld [vmem:[%s1 + $0x71] sm:$0xff]
      %v524 = vmul.f32 %v500, %v384
      %v525 = vmul.f32 %v501, %v384
      %v526 = vmul.f32 %v502, %v384
      %v527 = vmul.f32 %v503, %v384
      %v528 = vmul.f32 %v504, %v384
      %v529 = vmul.f32 %v505, %v384
      %v530 = vmul.f32 %v506, %v384
      %v531 = vmul.f32 %v507, %v384
      %v532 = vmul.f32 %v508, %v384
      %v533 = vmul.f32 %v509, %v384
      %v534 = vmul.f32 %v510, %v384
      %v535 = vmul.f32 %v511, %v384
      %v536 = vmul.f32 %v512, %v384
      %v537 = vmul.f32 %v513, %v384
      %v538 = vmul.f32 %v514, %v384
      %v539 = vmul.f32 %v515, %v384
      %v540 = vadd.f32 %v524, %v398
      %v541 = vadd.f32 %v525, %v398
      %v542 = vadd.f32 %v526, %v398
      %v543 = vadd.f32 %v527, %v398
      %v544 = vadd.f32 %v528, %v398
      %v545 = vadd.f32 %v529, %v398
      %v546 = vadd.f32 %v530, %v398
      %v547 = vadd.f32 %v531, %v398
      %v548 = vadd.f32 %v532, %v398
      %v549 = vadd.f32 %v533, %v398
      %v550 = vadd.f32 %v534, %v398
      %v551 = vadd.f32 %v535, %v398
      %v552 = vadd.f32 %v536, %v398
      %v553 = vadd.f32 %v537, %v398
      %v554 = vadd.f32 %v538, %v398
      %v555 = vadd.f32 %v539, %v398
      %v556 = vmax.f32 %v540, 0.0
      %v557 = vmax.f32 %v541, 0.0
      %v558 = vmax.f32 %v542, 0.0
      %v559 = vmax.f32 %v543, 0.0
      %v560 = vmax.f32 %v544, 0.0
      %v561 = vmax.f32 %v545, 0.0
      %v562 = vmax.f32 %v546, 0.0
      %v563 = vmax.f32 %v547, 0.0
      %v564 = vmax.f32 %v548, 0.0
      %v565 = vmax.f32 %v549, 0.0
      %v566 = vmax.f32 %v550, 0.0
      %v567 = vmax.f32 %v551, 0.0
      %v568 = vmax.f32 %v552, 0.0
      %v569 = vmax.f32 %v553, 0.0
      %v570 = vmax.f32 %v554, 0.0
      %v571 = vmax.f32 %v555, 0.0
      %573 = vset.pattern.permute.xlu0 0
      %574 = vperm.xlu0 %573, %v516
      %v575 = vpop.permute.xlu0 %574
      %577 = vset.pattern.permute.xlu0 0
      %578 = vperm.xlu0 %577, %v517
      %v579 = vpop.permute.xlu0 %578
      %581 = vset.pattern.permute.xlu0 0
      %582 = vperm.xlu0 %581, %v518
      %v583 = vpop.permute.xlu0 %582
      %585 = vset.pattern.permute.xlu0 0
      %586 = vperm.xlu0 %585, %v519
      %v587 = vpop.permute.xlu0 %586
      %589 = vset.pattern.permute.xlu0 0
      %590 = vperm.xlu0 %589, %v520
      %v591 = vpop.permute.xlu0 %590
      %593 = vset.pattern.permute.xlu0 0
      %594 = vperm.xlu0 %593, %v521
      %v595 = vpop.permute.xlu0 %594
      %597 = vset.pattern.permute.xlu0 0
      %598 = vperm.xlu0 %597, %v522
      %v599 = vpop.permute.xlu0 %598
      %601 = vset.pattern.permute.xlu0 0
      %602 = vperm.xlu0 %601, %v523
      %v603 = vpop.permute.xlu0 %602
      %v604 = vrot.slane %v575, 7
      %v605 = vrot.slane %v579, 7
      %v606 = vrot.slane %v583, 7
      %v607 = vrot.slane %v587, 7
      %v608 = vrot.slane %v591, 7
      %v609 = vrot.slane %v595, 7
      %v610 = vrot.slane %v599, 7
      %v611 = vrot.slane %v603, 7
      %v620 = vmul.f32 %v556, %v604
      %v621 = vmul.f32 %v557, %v604
      %v622 = vmul.f32 %v558, %v605
      %v623 = vmul.f32 %v559, %v605
      %v624 = vmul.f32 %v560, %v606
      %v625 = vmul.f32 %v561, %v606
      %v626 = vmul.f32 %v562, %v607
      %v627 = vmul.f32 %v563, %v607
      %v628 = vmul.f32 %v564, %v608
      %v629 = vmul.f32 %v565, %v608
      %v630 = vmul.f32 %v566, %v609
      %v631 = vmul.f32 %v567, %v609
      %v632 = vmul.f32 %v568, %v610
      %v633 = vmul.f32 %v569, %v610
      %v634 = vmul.f32 %v570, %v611
      %v635 = vmul.f32 %v571, %v611
      %vm652 = vcmask 1046528
      %v653 = vrot.slane %v620, 1
      %v654 = vrot.slane %v621, 1
      %v655 = vsel %vm652, %v653, %v654
      %v656 = vrot.slane %v622, 1
      %v657 = vrot.slane %v623, 1
      %v658 = vsel %vm652, %v656, %v657
      %v659 = vrot.slane %v624, 1
      %v660 = vrot.slane %v625, 1
      %v661 = vsel %vm652, %v659, %v660
      %v662 = vrot.slane %v626, 1
      %v663 = vrot.slane %v627, 1
      %v664 = vsel %vm652, %v662, %v663
      %v665 = vrot.slane %v628, 1
      %v666 = vrot.slane %v629, 1
      %v667 = vsel %vm652, %v665, %v666
      %v668 = vrot.slane %v630, 1
      %v669 = vrot.slane %v631, 1
      %v670 = vsel %vm652, %v668, %v669
      %v671 = vrot.slane %v632, 1
      %v672 = vrot.slane %v633, 1
      %v673 = vsel %vm652, %v671, %v672
      %v674 = vrot.slane %v634, 1
      %v675 = vrot.slane %v635, 1
      %v676 = vsel %vm652, %v674, %v675
      %v685 = vpack.c.bf16 %v658, %v655
      %v686 = vpack.c.bf16 %v664, %v661
      %v687 = vpack.c.bf16 %v670, %v667
      %v688 = vpack.c.bf16 %v676, %v673
      %s689 = scalar_lea.vmem %s4, 64
      %v690 = vld [vmem:[%s689] sm:$0xf]
      %v691 = vld [vmem:[%s689 + $0x4] sm:$0xf]
      %v692 = vld [vmem:[%s689 + $0x8] sm:$0xf]
      %v693 = vld [vmem:[%s689 + $0xc] sm:$0xf]
      %v694 = vld [vmem:[%s689 + $0x10] sm:$0xf]
      %v695 = vld [vmem:[%s689 + $0x14] sm:$0xf]
      %v696 = vld [vmem:[%s689 + $0x18] sm:$0xf]
      %v697 = vld [vmem:[%s689 + $0x1c] sm:$0xf]
      %v698 = vld [vmem:[%s689 + $0x20] sm:$0xf]
      %v699 = vld [vmem:[%s689 + $0x24] sm:$0xf]
      %v700 = vld [vmem:[%s689 + $0x28] sm:$0xf]
      %v701 = vld [vmem:[%s689 + $0x2c] sm:$0xf]
      %v702 = vld [vmem:[%s689 + $0x30] sm:$0xf]
      %v703 = vld [vmem:[%s689 + $0x34] sm:$0xf]
      %v704 = vld [vmem:[%s689 + $0x38] sm:$0xf]
      %v705 = vld [vmem:[%s689 + $0x3c] sm:$0xf]
      %v722 = vunpack.c.l.b16 %v690
      %v723 = vunpack.c.l.b16 %v691
      %v724 = vunpack.c.l.b16 %v692
      %v725 = vunpack.c.l.b16 %v693
      %v726 = vunpack.c.l.b16 %v694
      %v727 = vunpack.c.l.b16 %v695
      %v728 = vunpack.c.l.b16 %v696
      %v729 = vunpack.c.l.b16 %v697
      %v730 = vunpack.c.l.b16 %v698
      %v731 = vunpack.c.l.b16 %v699
      %v732 = vunpack.c.l.b16 %v700
      %v733 = vunpack.c.l.b16 %v701
      %v734 = vunpack.c.l.b16 %v702
      %v735 = vunpack.c.l.b16 %v703
      %v736 = vunpack.c.l.b16 %v704
      %v737 = vunpack.c.l.b16 %v705
      %v738 = vpack.c.b16 %v723, %v722
      %v739 = vpack.c.b16 %v725, %v724
      %v740 = vpack.c.b16 %v727, %v726
      %v741 = vpack.c.b16 %v729, %v728
      %v742 = vpack.c.b16 %v731, %v730
      %v743 = vpack.c.b16 %v733, %v732
      %v744 = vpack.c.b16 %v735, %v734
      %v745 = vpack.c.b16 %v737, %v736
      %754 = vmatprep.subr.bf16.mxu0 0
      %755 = vmatpush1.bf16.msra.mxu0 %v738
      %756 = vmatprep.subr.bf16.mxu0 0
      %757 = vmatpush1.bf16.msra.mxu0 %v739
      %758 = vmatprep.subr.bf16.mxu0 0
      %759 = vmatpush1.bf16.msra.mxu0 %v740
      %760 = vmatprep.subr.bf16.mxu0 0
      %761 = vmatpush1.bf16.msra.mxu0 %v741
      %762 = vmatprep.subr.bf16.mxu0 0
      %763 = vmatpush1.bf16.msra.mxu0 %v742
      %764 = vmatprep.subr.bf16.mxu0 0
      %765 = vmatpush1.bf16.msra.mxu0 %v743
      %766 = vmatprep.subr.bf16.mxu0 0
      %767 = vmatpush1.bf16.msra.mxu0 %v744
      %768 = vmatprep.subr.bf16.mxu0 0
      %769 = vmatpush1.bf16.msra.mxu0 %v745
      %770 = vmatprep.subr.bf16.mxu0 0
      %771 = vmatpush1.bf16.msra.mxu0 0
      %772 = vmatprep.subr.bf16.mxu0 0
      %773 = vmatpush1.bf16.msra.mxu0 0
      %774 = vmatprep.subr.bf16.mxu0 0
      %775 = vmatpush1.bf16.msra.mxu0 0
      %776 = vmatprep.subr.bf16.mxu0 0
      %777 = vmatpush1.bf16.msra.mxu0 0
      %778 = vmatprep.subr.bf16.mxu0 0
      %779 = vmatpush1.bf16.msra.mxu0 0
      %780 = vmatprep.subr.bf16.mxu0 0
      %781 = vmatpush1.bf16.msra.mxu0 0
      %782 = vmatprep.subr.bf16.mxu0 0
      %783 = vmatpush1.bf16.msra.mxu0 0
      %784 = vmatprep.subr.bf16.mxu0 0
      %785 = vmatpush1.bf16.msra.mxu0 0
      %786 = vmatprep.mubr.bf16.mxu0 0
      %787 = vmatmul.mubr.bf16.gmra.mrb[0].mxu0 %v685
      %v788 = vpop.f32.mrb[0].mxu0
      %v789 = vadd.f32 0.0, %v788
      %v790 = vpop.f32.mrb[0].mxu0
      %v791 = vpop.f32.mrb[0].mxu0
      %v792 = vadd.f32 0.0, %v791
      %v793 = vpop.f32.mrb[0].mxu0
      %794 = vmatprep.mubr.bf16.mxu0 0
      %795 = vmatmul.mubr.bf16.gmra.mrb[0].mxu0 %v686
      %v796 = vpop.f32.mrb[0].mxu0
      %v797 = vadd.f32 0.0, %v796
      %v798 = vpop.f32.mrb[0].mxu0
      %v799 = vpop.f32.mrb[0].mxu0
      %v800 = vadd.f32 0.0, %v799
      %v801 = vpop.f32.mrb[0].mxu0
      %802 = vmatprep.mubr.bf16.mxu0 0
      %803 = vmatmul.mubr.bf16.gmra.mrb[0].mxu0 %v687
      %v804 = vpop.f32.mrb[0].mxu0
      %v805 = vadd.f32 0.0, %v804
      %v806 = vpop.f32.mrb[0].mxu0
      %v807 = vpop.f32.mrb[0].mxu0
      %v808 = vadd.f32 0.0, %v807
      %v809 = vpop.f32.mrb[0].mxu0
      %810 = vmatprep.mubr.bf16.mxu0 0
      %811 = vmatmul.mubr.bf16.gmra.mrb[0].mxu0 %v688
      %v812 = vpop.f32.mrb[0].mxu0
      %v813 = vadd.f32 0.0, %v812
      %v814 = vpop.f32.mrb[0].mxu0
      %v815 = vpop.f32.mrb[0].mxu0
      %v816 = vadd.f32 0.0, %v815
      %v817 = vpop.f32.mrb[0].mxu0
      %818 = vdwg.mxu0
      %v835 = vunpack.c.l.b16 %v468
      %v836 = vunpack.c.l.b16 %v469
      %v837 = vunpack.c.l.b16 %v470
      %v838 = vunpack.c.l.b16 %v471
      %v839 = vunpack.c.l.b16 %v472
      %v840 = vunpack.c.l.b16 %v473
      %v841 = vunpack.c.l.b16 %v474
      %v842 = vunpack.c.l.b16 %v475
      %v843 = vunpack.c.l.b16 %v476
      %v844 = vunpack.c.l.b16 %v477
      %v845 = vunpack.c.l.b16 %v478
      %v846 = vunpack.c.l.b16 %v479
      %v847 = vunpack.c.l.b16 %v480
      %v848 = vunpack.c.l.b16 %v481
      %v849 = vunpack.c.l.b16 %v482
      %v850 = vunpack.c.l.b16 %v483
      %v851 = vpack.c.b16 %v836, %v835
      %v852 = vpack.c.b16 %v838, %v837
      %v853 = vpack.c.b16 %v840, %v839
      %v854 = vpack.c.b16 %v842, %v841
      %v855 = vpack.c.b16 %v844, %v843
      %v856 = vpack.c.b16 %v846, %v845
      %v857 = vpack.c.b16 %v848, %v847
      %v858 = vpack.c.b16 %v850, %v849
      %867 = vmatprep.subr.bf16.mxu0 0
      %868 = vmatpush1.bf16.msra.mxu0 %v851
      %869 = vmatprep.subr.bf16.mxu0 0
      %870 = vmatpush1.bf16.msra.mxu0 %v852
      %871 = vmatprep.subr.bf16.mxu0 0
      %872 = vmatpush1.bf16.msra.mxu0 %v853
      %873 = vmatprep.subr.bf16.mxu0 0
      %874 = vmatpush1.bf16.msra.mxu0 %v854
      %875 = vmatprep.subr.bf16.mxu0 0
      %876 = vmatpush1.bf16.msra.mxu0 %v855
      %877 = vmatprep.subr.bf16.mxu0 0
      %878 = vmatpush1.bf16.msra.mxu0 %v856
      %879 = vmatprep.subr.bf16.mxu0 0
      %880 = vmatpush1.bf16.msra.mxu0 %v857
      %881 = vmatprep.subr.bf16.mxu0 0
      %882 = vmatpush1.bf16.msra.mxu0 %v858
      %883 = vmatprep.subr.bf16.mxu0 0
      %884 = vmatpush1.bf16.msra.mxu0 0
      %885 = vmatprep.subr.bf16.mxu0 0
      %886 = vmatpush1.bf16.msra.mxu0 0
      %887 = vmatprep.subr.bf16.mxu0 0
      %888 = vmatpush1.bf16.msra.mxu0 0
      %889 = vmatprep.subr.bf16.mxu0 0
      %890 = vmatpush1.bf16.msra.mxu0 0
      %891 = vmatprep.subr.bf16.mxu0 0
      %892 = vmatpush1.bf16.msra.mxu0 0
      %893 = vmatprep.subr.bf16.mxu0 0
      %894 = vmatpush1.bf16.msra.mxu0 0
      %895 = vmatprep.subr.bf16.mxu0 0
      %896 = vmatpush1.bf16.msra.mxu0 0
      %897 = vmatprep.subr.bf16.mxu0 0
      %898 = vmatpush1.bf16.msra.mxu0 0
      %899 = vmatprep.mubr.bf16.mxu0 0
      %900 = vmatmul.mubr.bf16.gmra.mrb[0].mxu0 %v464
      %v901 = vpop.f32.mrb[0].mxu0
      %v902 = vadd.f32 %v789, %v901
      %v903 = vpop.f32.mrb[0].mxu0
      %v904 = vpop.f32.mrb[0].mxu0
      %v905 = vadd.f32 %v792, %v904
      %v906 = vpop.f32.mrb[0].mxu0
      %907 = vmatprep.mubr.bf16.mxu0 0
      %908 = vmatmul.mubr.bf16.gmra.mrb[0].mxu0 %v465
      %v909 = vpop.f32.mrb[0].mxu0
      %v910 = vadd.f32 %v797, %v909
      %v911 = vpop.f32.mrb[0].mxu0
      %v912 = vpop.f32.mrb[0].mxu0
      %v913 = vadd.f32 %v800, %v912
      %v914 = vpop.f32.mrb[0].mxu0
      %915 = vmatprep.mubr.bf16.mxu0 0
      %916 = vmatmul.mubr.bf16.gmra.mrb[0].mxu0 %v466
      %v917 = vpop.f32.mrb[0].mxu0
      %v918 = vadd.f32 %v805, %v917
      %v919 = vpop.f32.mrb[0].mxu0
      %v920 = vpop.f32.mrb[0].mxu0
      %v921 = vadd.f32 %v808, %v920
      %v922 = vpop.f32.mrb[0].mxu0
      %923 = vmatprep.mubr.bf16.mxu0 0
      %924 = vmatmul.mubr.bf16.gmra.mrb[0].mxu0 %v467
      %v925 = vpop.f32.mrb[0].mxu0
      %v926 = vadd.f32 %v813, %v925
      %v927 = vpop.f32.mrb[0].mxu0
      %v928 = vpop.f32.mrb[0].mxu0
      %v929 = vadd.f32 %v816, %v928
      %v930 = vpop.f32.mrb[0].mxu0
      %931 = vdwg.mxu0
      %v932 = vld [vmem:[%s342] sm:$0xe]
      %v933 = vld [vmem:[%s342 + $0x8] sm:$0xe]
      %v934 = vld [vmem:[%s342 + $0x10] sm:$0xe]
      %v935 = vld [vmem:[%s342 + $0x18] sm:$0xe]
      %v936 = vld [vmem:[%s342 + $0x20] sm:$0xe]
      %v937 = vld [vmem:[%s342 + $0x28] sm:$0xe]
      %v938 = vld [vmem:[%s342 + $0x30] sm:$0xe]
      %v939 = vld [vmem:[%s342 + $0x38] sm:$0xe]
      %v940 = vunpack.c.l.bf16 %v932
      %v941 = vunpack.c.l.bf16 %v933
      %v942 = vunpack.c.l.bf16 %v934
      %v943 = vunpack.c.l.bf16 %v935
      %v944 = vunpack.c.l.bf16 %v936
      %v945 = vunpack.c.l.bf16 %v937
      %v946 = vunpack.c.l.bf16 %v938
      %v947 = vunpack.c.l.bf16 %v939
      %v948 = vld [vmem:[%s1 + $0x2] sm:$0xff]
      %v949 = vld [vmem:[%s1 + $0x12] sm:$0xff]
      %v950 = vld [vmem:[%s1 + $0x22] sm:$0xff]
      %v951 = vld [vmem:[%s1 + $0x32] sm:$0xff]
      %v952 = vld [vmem:[%s1 + $0x42] sm:$0xff]
      %v953 = vld [vmem:[%s1 + $0x52] sm:$0xff]
      %v954 = vld [vmem:[%s1 + $0x62] sm:$0xff]
      %v955 = vld [vmem:[%s1 + $0x72] sm:$0xff]
      %v956 = vmul.f32 %v940, %v384
      %v957 = vmul.f32 %v941, %v384
      %v958 = vmul.f32 %v942, %v384
      %v959 = vmul.f32 %v943, %v384
      %v960 = vmul.f32 %v944, %v384
      %v961 = vmul.f32 %v945, %v384
      %v962 = vmul.f32 %v946, %v384
      %v963 = vmul.f32 %v947, %v384
      %v964 = vadd.f32 %v956, %v398
      %v965 = vadd.f32 %v957, %v398
      %v966 = vadd.f32 %v958, %v398
      %v967 = vadd.f32 %v959, %v398
      %v968 = vadd.f32 %v960, %v398
      %v969 = vadd.f32 %v961, %v398
      %v970 = vadd.f32 %v962, %v398
      %v971 = vadd.f32 %v963, %v398
      %v972 = vmax.f32 %v964, 0.0
      %v973 = vmax.f32 %v965, 0.0
      %v974 = vmax.f32 %v966, 0.0
      %v975 = vmax.f32 %v967, 0.0
      %v976 = vmax.f32 %v968, 0.0
      %v977 = vmax.f32 %v969, 0.0
      %v978 = vmax.f32 %v970, 0.0
      %v979 = vmax.f32 %v971, 0.0
      %981 = vset.pattern.permute.xlu0 0
      %982 = vperm.xlu0 %981, %v948
      %v983 = vpop.permute.xlu0 %982
      %985 = vset.pattern.permute.xlu0 0
      %986 = vperm.xlu0 %985, %v949
      %v987 = vpop.permute.xlu0 %986
      %989 = vset.pattern.permute.xlu0 0
      %990 = vperm.xlu0 %989, %v950
      %v991 = vpop.permute.xlu0 %990
      %993 = vset.pattern.permute.xlu0 0
      %994 = vperm.xlu0 %993, %v951
      %v995 = vpop.permute.xlu0 %994
      %997 = vset.pattern.permute.xlu0 0
      %998 = vperm.xlu0 %997, %v952
      %v999 = vpop.permute.xlu0 %998
      %1001 = vset.pattern.permute.xlu0 0
      %1002 = vperm.xlu0 %1001, %v953
      %v1003 = vpop.permute.xlu0 %1002
      %1005 = vset.pattern.permute.xlu0 0
      %1006 = vperm.xlu0 %1005, %v954
      %v1007 = vpop.permute.xlu0 %1006
      %1009 = vset.pattern.permute.xlu0 0
      %1010 = vperm.xlu0 %1009, %v955
      %v1011 = vpop.permute.xlu0 %1010
      %v1012 = vrot.slane %v983, 6
      %v1013 = vrot.slane %v987, 6
      %v1014 = vrot.slane %v991, 6
      %v1015 = vrot.slane %v995, 6
      %v1016 = vrot.slane %v999, 6
      %v1017 = vrot.slane %v1003, 6
      %v1018 = vrot.slane %v1007, 6
      %v1019 = vrot.slane %v1011, 6
      %v1028 = vmul.f32 %v972, %v1012
      %v1029 = vmul.f32 %v557, %v1012
      %v1030 = vmul.f32 %v973, %v1013
      %v1031 = vmul.f32 %v559, %v1013
      %v1032 = vmul.f32 %v974, %v1014
      %v1033 = vmul.f32 %v561, %v1014
      %v1034 = vmul.f32 %v975, %v1015
      %v1035 = vmul.f32 %v563, %v1015
      %v1036 = vmul.f32 %v976, %v1016
      %v1037 = vmul.f32 %v565, %v1016
      %v1038 = vmul.f32 %v977, %v1017
      %v1039 = vmul.f32 %v567, %v1017
      %v1040 = vmul.f32 %v978, %v1018
      %v1041 = vmul.f32 %v569, %v1018
      %v1042 = vmul.f32 %v979, %v1019
      %v1043 = vmul.f32 %v571, %v1019
      %vm1060 = vcmask 1045504
      %v1061 = vrot.slane %v1028, 2
      %v1062 = vrot.slane %v1029, 2
      %v1063 = vsel %vm1060, %v1061, %v1062
      %v1064 = vrot.slane %v1030, 2
      %v1065 = vrot.slane %v1031, 2
      %v1066 = vsel %vm1060, %v1064, %v1065
      %v1067 = vrot.slane %v1032, 2
      %v1068 = vrot.slane %v1033, 2
      %v1069 = vsel %vm1060, %v1067, %v1068
      %v1070 = vrot.slane %v1034, 2
      %v1071 = vrot.slane %v1035, 2
      %v1072 = vsel %vm1060, %v1070, %v1071
      %v1073 = vrot.slane %v1036, 2
      %v1074 = vrot.slane %v1037, 2
      %v1075 = vsel %vm1060, %v1073, %v1074
      %v1076 = vrot.slane %v1038, 2
      %v1077 = vrot.slane %v1039, 2
      %v1078 = vsel %vm1060, %v1076, %v1077
      %v1079 = vrot.slane %v1040, 2
      %v1080 = vrot.slane %v1041, 2
      %v1081 = vsel %vm1060, %v1079, %v1080
      %v1082 = vrot.slane %v1042, 2
      %v1083 = vrot.slane %v1043, 2
      %v1084 = vsel %vm1060, %v1082, %v1083
      %v1093 = vpack.c.bf16 %v1066, %v1063
      %v1094 = vpack.c.bf16 %v1072, %v1069
      %v1095 = vpack.c.bf16 %v1078, %v1075
      %v1096 = vpack.c.bf16 %v1084, %v1081
      %s1097 = scalar_lea.vmem %s4, 128
      %v1098 = vld [vmem:[%s1097] sm:$0xf]
      %v1099 = vld [vmem:[%s1097 + $0x4] sm:$0xf]
      %v1100 = vld [vmem:[%s1097 + $0x8] sm:$0xf]
      %v1101 = vld [vmem:[%s1097 + $0xc] sm:$0xf]
      %v1102 = vld [vmem:[%s1097 + $0x10] sm:$0xf]
      %v1103 = vld [vmem:[%s1097 + $0x14] sm:$0xf]
      %v1104 = vld [vmem:[%s1097 + $0x18] sm:$0xf]
      %v1105 = vld [vmem:[%s1097 + $0x1c] sm:$0xf]
      %v1106 = vld [vmem:[%s1097 + $0x20] sm:$0xf]
      %v1107 = vld [vmem:[%s1097 + $0x24] sm:$0xf]
      %v1108 = vld [vmem:[%s1097 + $0x28] sm:$0xf]
      %v1109 = vld [vmem:[%s1097 + $0x2c] sm:$0xf]
      %v1110 = vld [vmem:[%s1097 + $0x30] sm:$0xf]
      %v1111 = vld [vmem:[%s1097 + $0x34] sm:$0xf]
      %v1112 = vld [vmem:[%s1097 + $0x38] sm:$0xf]
      %v1113 = vld [vmem:[%s1097 + $0x3c] sm:$0xf]
      %v1130 = vunpack.c.l.b16 %v1098
      %v1131 = vunpack.c.l.b16 %v1099
      %v1132 = vunpack.c.l.b16 %v1100
      %v1133 = vunpack.c.l.b16 %v1101
      %v1134 = vunpack.c.l.b16 %v1102
      %v1135 = vunpack.c.l.b16 %v1103
      %v1136 = vunpack.c.l.b16 %v1104
      %v1137 = vunpack.c.l.b16 %v1105
      %v1138 = vunpack.c.l.b16 %v1106
      %v1139 = vunpack.c.l.b16 %v1107
      %v1140 = vunpack.c.l.b16 %v1108
      %v1141 = vunpack.c.l.b16 %v1109
      %v1142 = vunpack.c.l.b16 %v1110
      %v1143 = vunpack.c.l.b16 %v1111
      %v1144 = vunpack.c.l.b16 %v1112
      %v1145 = vunpack.c.l.b16 %v1113
      %v1146 = vpack.c.b16 %v1131, %v1130
      %v1147 = vpack.c.b16 %v1133, %v1132
      %v1148 = vpack.c.b16 %v1135, %v1134
      %v1149 = vpack.c.b16 %v1137, %v1136
      %v1150 = vpack.c.b16 %v1139, %v1138
      %v1151 = vpack.c.b16 %v1141, %v1140
      %v1152 = vpack.c.b16 %v1143, %v1142
      %v1153 = vpack.c.b16 %v1145, %v1144
      %1162 = vmatprep.subr.bf16.mxu0 0
      %1163 = vmatpush1.bf16.msra.mxu0 %v1146
      %1164 = vmatprep.subr.bf16.mxu0 0
      %1165 = vmatpush1.bf16.msra.mxu0 %v1147
      %1166 = vmatprep.subr.bf16.mxu0 0
      %1167 = vmatpush1.bf16.msra.mxu0 %v1148
      %1168 = vmatprep.subr.bf16.mxu0 0
      %1169 = vmatpush1.bf16.msra.mxu0 %v1149
      %1170 = vmatprep.subr.bf16.mxu0 0
      %1171 = vmatpush1.bf16.msra.mxu0 %v1150
      %1172 = vmatprep.subr.bf16.mxu0 0
      %1173 = vmatpush1.bf16.msra.mxu0 %v1151
      %1174 = vmatprep.subr.bf16.mxu0 0
      %1175 = vmatpush1.bf16.msra.mxu0 %v1152
      %1176 = vmatprep.subr.bf16.mxu0 0
      %1177 = vmatpush1.bf16.msra.mxu0 %v1153
      %1178 = vmatprep.subr.bf16.mxu0 0
      %1179 = vmatpush1.bf16.msra.mxu0 0
      %1180 = vmatprep.subr.bf16.mxu0 0
      %1181 = vmatpush1.bf16.msra.mxu0 0
      %1182 = vmatprep.subr.bf16.mxu0 0
      %1183 = vmatpush1.bf16.msra.mxu0 0
      %1184 = vmatprep.subr.bf16.mxu0 0
      %1185 = vmatpush1.bf16.msra.mxu0 0
      %1186 = vmatprep.subr.bf16.mxu0 0
      %1187 = vmatpush1.bf16.msra.mxu0 0
      %1188 = vmatprep.subr.bf16.mxu0 0
      %1189 = vmatpush1.bf16.msra.mxu0 0
      %1190 = vmatprep.subr.bf16.mxu0 0
      %1191 = vmatpush1.bf16.msra.mxu0 0
      %1192 = vmatprep.subr.bf16.mxu0 0
      %1193 = vmatpush1.bf16.msra.mxu0 0
      %1194 = vmatprep.mubr.bf16.mxu0 0
      %1195 = vmatmul.mubr.bf16.gmra.mrb[0].mxu0 %v1093
      %v1196 = vpop.f32.mrb[0].mxu0
      %v1197 = vadd.f32 0.0, %v1196
      %v1198 = vpop.f32.mrb[0].mxu0
      %v1199 = vpop.f32.mrb[0].mxu0
      %v1200 = vadd.f32 0.0, %v1199
      %v1201 = vpop.f32.mrb[0].mxu0
      %1202 = vmatprep.mubr.bf16.mxu0 0
      %1203 = vmatmul.mubr.bf16.gmra.mrb[0].mxu0 %v1094
      %v1204 = vpop.f32.mrb[0].mxu0
      %v1205 = vadd.f32 0.0, %v1204
      %v1206 = vpop.f32.mrb[0].mxu0
      %v1207 = vpop.f32.mrb[0].mxu0
      %v1208 = vadd.f32 0.0, %v1207
      %v1209 = vpop.f32.mrb[0].mxu0
      %1210 = vmatprep.mubr.bf16.mxu0 0
      %1211 = vmatmul.mubr.bf16.gmra.mrb[0].mxu0 %v1095
      %v1212 = vpop.f32.mrb[0].mxu0
      %v1213 = vadd.f32 0.0, %v1212
      %v1214 = vpop.f32.mrb[0].mxu0
      %v1215 = vpop.f32.mrb[0].mxu0
      %v1216 = vadd.f32 0.0, %v1215
      %v1217 = vpop.f32.mrb[0].mxu0
      %1218 = vmatprep.mubr.bf16.mxu0 0
      %1219 = vmatmul.mubr.bf16.gmra.mrb[0].mxu0 %v1096
      %v1220 = vpop.f32.mrb[0].mxu0
      %v1221 = vadd.f32 0.0, %v1220
      %v1222 = vpop.f32.mrb[0].mxu0
      %v1223 = vpop.f32.mrb[0].mxu0
      %v1224 = vadd.f32 0.0, %v1223
      %v1225 = vpop.f32.mrb[0].mxu0
      %1226 = vdwg.mxu0
      %v1227 = vadd.f32 %v902, %v1197
      %v1228 = vadd.f32 %v905, %v1200
      %v1229 = vadd.f32 %v910, %v1205
      %v1230 = vadd.f32 %v913, %v1208
      %v1231 = vadd.f32 %v918, %v1213
      %v1232 = vadd.f32 %v921, %v1216
      %v1233 = vadd.f32 %v926, %v1221
      %v1234 = vadd.f32 %v929, %v1224
      %s1235 = scalar_lea.vmem %s342, 8
      %v1236 = vld [vmem:[%s1235] sm:$0xf]
      %v1237 = vld [vmem:[%s1235 + $0x8] sm:$0xf]
      %v1238 = vld [vmem:[%s1235 + $0x10] sm:$0xf]
      %v1239 = vld [vmem:[%s1235 + $0x18] sm:$0xf]
      %v1240 = vld [vmem:[%s1235 + $0x20] sm:$0xf]
      %v1241 = vld [vmem:[%s1235 + $0x28] sm:$0xf]
      %v1242 = vld [vmem:[%s1235 + $0x30] sm:$0xf]
      %v1243 = vld [vmem:[%s1235 + $0x38] sm:$0xf]
      %v1244 = vunpack.c.l.bf16 %v1236
      %v1245 = vunpack.c.l.bf16 %v1237
      %v1246 = vunpack.c.l.bf16 %v1238
      %v1247 = vunpack.c.l.bf16 %v1239
      %v1248 = vunpack.c.l.bf16 %v1240
      %v1249 = vunpack.c.l.bf16 %v1241
      %v1250 = vunpack.c.l.bf16 %v1242
      %v1251 = vunpack.c.l.bf16 %v1243
      %s1252 = scalar_lea.vmem %s1, 16
      %v1253 = vld [vmem:[%s1252] sm:$0xff]
      %v1254 = vld [vmem:[%s1252 + $0x10] sm:$0xff]
      %v1255 = vld [vmem:[%s1252 + $0x20] sm:$0xff]
      %v1256 = vld [vmem:[%s1252 + $0x30] sm:$0xff]
      %v1257 = vld [vmem:[%s1252 + $0x40] sm:$0xff]
      %v1258 = vld [vmem:[%s1252 + $0x50] sm:$0xff]
      %v1259 = vld [vmem:[%s1252 + $0x60] sm:$0xff]
      %v1260 = vld [vmem:[%s1252 + $0x70] sm:$0xff]
      %v1261 = vmul.f32 %v1244, %v384
      %v1262 = vmul.f32 %v1245, %v384
      %v1263 = vmul.f32 %v1246, %v384
      %v1264 = vmul.f32 %v1247, %v384
      %v1265 = vmul.f32 %v1248, %v384
      %v1266 = vmul.f32 %v1249, %v384
      %v1267 = vmul.f32 %v1250, %v384
      %v1268 = vmul.f32 %v1251, %v384
      %v1269 = vadd.f32 %v1261, %v398
      %v1270 = vadd.f32 %v1262, %v398
      %v1271 = vadd.f32 %v1263, %v398
      %v1272 = vadd.f32 %v1264, %v398
      %v1273 = vadd.f32 %v1265, %v398
      %v1274 = vadd.f32 %v1266, %v398
      %v1275 = vadd.f32 %v1267, %v398
      %v1276 = vadd.f32 %v1268, %v398
      %v1277 = vmax.f32 %v1269, 0.0
      %v1278 = vmax.f32 %v1270, 0.0
      %v1279 = vmax.f32 %v1271, 0.0
      %v1280 = vmax.f32 %v1272, 0.0
      %v1281 = vmax.f32 %v1273, 0.0
      %v1282 = vmax.f32 %v1274, 0.0
      %v1283 = vmax.f32 %v1275, 0.0
      %v1284 = vmax.f32 %v1276, 0.0
      %1286 = vset.pattern.permute.xlu0 0
      %1287 = vperm.xlu0 %1286, %v1253
      %v1288 = vpop.permute.xlu0 %1287
      %1291 = vset.pattern.permute.xlu0 0
      %1292 = vperm.xlu0 %1291, %v1254
      %v1293 = vpop.permute.xlu0 %1292
      %1296 = vset.pattern.permute.xlu0 0
      %1297 = vperm.xlu0 %1296, %v1255
      %v1298 = vpop.permute.xlu0 %1297
      %1301 = vset.pattern.permute.xlu0 0
      %1302 = vperm.xlu0 %1301, %v1256
      %v1303 = vpop.permute.xlu0 %1302
      %1306 = vset.pattern.permute.xlu0 0
      %1307 = vperm.xlu0 %1306, %v1257
      %v1308 = vpop.permute.xlu0 %1307
      %1311 = vset.pattern.permute.xlu0 0
      %1312 = vperm.xlu0 %1311, %v1258
      %v1313 = vpop.permute.xlu0 %1312
      %1316 = vset.pattern.permute.xlu0 0
      %1317 = vperm.xlu0 %1316, %v1259
      %v1318 = vpop.permute.xlu0 %1317
      %1321 = vset.pattern.permute.xlu0 0
      %1322 = vperm.xlu0 %1321, %v1260
      %v1323 = vpop.permute.xlu0 %1322
      %v1325 = vmul.f32 %v1277, %v1288
      %v1326 = vmul.f32 %v1278, %v1293
      %v1327 = vmul.f32 %v1279, %v1298
      %v1328 = vmul.f32 %v1280, %v1303
      %v1329 = vmul.f32 %v1281, %v1308
      %v1330 = vmul.f32 %v1282, %v1313
      %v1331 = vmul.f32 %v1283, %v1318
      %v1332 = vmul.f32 %v1284, %v1323
      %v1333 = vpack.c.bf16 %v1326, %v1325
      %v1334 = vpack.c.bf16 %v1328, %v1327
      %v1335 = vpack.c.bf16 %v1330, %v1329
      %v1336 = vpack.c.bf16 %v1332, %v1331
      %s1337 = scalar_lea.vmem %s4, 192
      %v1338 = vld [vmem:[%s1337] sm:$0xf]
      %v1339 = vld [vmem:[%s1337 + $0x4] sm:$0xf]
      %v1340 = vld [vmem:[%s1337 + $0x8] sm:$0xf]
      %v1341 = vld [vmem:[%s1337 + $0xc] sm:$0xf]
      %v1342 = vld [vmem:[%s1337 + $0x10] sm:$0xf]
      %v1343 = vld [vmem:[%s1337 + $0x14] sm:$0xf]
      %v1344 = vld [vmem:[%s1337 + $0x18] sm:$0xf]
      %v1345 = vld [vmem:[%s1337 + $0x1c] sm:$0xf]
      %v1346 = vld [vmem:[%s1337 + $0x20] sm:$0xf]
      %v1347 = vld [vmem:[%s1337 + $0x24] sm:$0xf]
      %v1348 = vld [vmem:[%s1337 + $0x28] sm:$0xf]
      %v1349 = vld [vmem:[%s1337 + $0x2c] sm:$0xf]
      %v1350 = vld [vmem:[%s1337 + $0x30] sm:$0xf]
      %v1351 = vld [vmem:[%s1337 + $0x34] sm:$0xf]
      %v1352 = vld [vmem:[%s1337 + $0x38] sm:$0xf]
      %v1353 = vld [vmem:[%s1337 + $0x3c] sm:$0xf]
      %v1370 = vunpack.c.l.b16 %v1338
      %v1371 = vunpack.c.l.b16 %v1339
      %v1372 = vunpack.c.l.b16 %v1340
      %v1373 = vunpack.c.l.b16 %v1341
      %v1374 = vunpack.c.l.b16 %v1342
      %v1375 = vunpack.c.l.b16 %v1343
      %v1376 = vunpack.c.l.b16 %v1344
      %v1377 = vunpack.c.l.b16 %v1345
      %v1378 = vunpack.c.l.b16 %v1346
      %v1379 = vunpack.c.l.b16 %v1347
      %v1380 = vunpack.c.l.b16 %v1348
      %v1381 = vunpack.c.l.b16 %v1349
      %v1382 = vunpack.c.l.b16 %v1350
      %v1383 = vunpack.c.l.b16 %v1351
      %v1384 = vunpack.c.l.b16 %v1352
      %v1385 = vunpack.c.l.b16 %v1353
      %v1386 = vpack.c.b16 %v1371, %v1370
      %v1387 = vpack.c.b16 %v1373, %v1372
      %v1388 = vpack.c.b16 %v1375, %v1374
      %v1389 = vpack.c.b16 %v1377, %v1376
      %v1390 = vpack.c.b16 %v1379, %v1378
      %v1391 = vpack.c.b16 %v1381, %v1380
      %v1392 = vpack.c.b16 %v1383, %v1382
      %v1393 = vpack.c.b16 %v1385, %v1384
      %1402 = vmatprep.subr.bf16.mxu0 0
      %1403 = vmatpush1.bf16.msra.mxu0 %v1386
      %1404 = vmatprep.subr.bf16.mxu0 0
      %1405 = vmatpush1.bf16.msra.mxu0 %v1387
      %1406 = vmatprep.subr.bf16.mxu0 0
      %1407 = vmatpush1.bf16.msra.mxu0 %v1388
      %1408 = vmatprep.subr.bf16.mxu0 0
      %1409 = vmatpush1.bf16.msra.mxu0 %v1389
      %1410 = vmatprep.subr.bf16.mxu0 0
      %1411 = vmatpush1.bf16.msra.mxu0 %v1390
      %1412 = vmatprep.subr.bf16.mxu0 0
      %1413 = vmatpush1.bf16.msra.mxu0 %v1391
      %1414 = vmatprep.subr.bf16.mxu0 0
      %1415 = vmatpush1.bf16.msra.mxu0 %v1392
      %1416 = vmatprep.subr.bf16.mxu0 0
      %1417 = vmatpush1.bf16.msra.mxu0 %v1393
      %1418 = vmatprep.subr.bf16.mxu0 0
      %1419 = vmatpush1.bf16.msra.mxu0 0
      %1420 = vmatprep.subr.bf16.mxu0 0
      %1421 = vmatpush1.bf16.msra.mxu0 0
      %1422 = vmatprep.subr.bf16.mxu0 0
      %1423 = vmatpush1.bf16.msra.mxu0 0
      %1424 = vmatprep.subr.bf16.mxu0 0
      %1425 = vmatpush1.bf16.msra.mxu0 0
      %1426 = vmatprep.subr.bf16.mxu0 0
      %1427 = vmatpush1.bf16.msra.mxu0 0
      %1428 = vmatprep.subr.bf16.mxu0 0
      %1429 = vmatpush1.bf16.msra.mxu0 0
      %1430 = vmatprep.subr.bf16.mxu0 0
      %1431 = vmatpush1.bf16.msra.mxu0 0
      %1432 = vmatprep.subr.bf16.mxu0 0
      %1433 = vmatpush1.bf16.msra.mxu0 0
      %1434 = vmatprep.mubr.bf16.mxu0 0
      %1435 = vmatmul.mubr.bf16.gmra.mrb[0].mxu0 %v1333
      %v1436 = vpop.f32.mrb[0].mxu0
      %v1437 = vadd.f32 0.0, %v1436
      %v1438 = vpop.f32.mrb[0].mxu0
      %v1439 = vpop.f32.mrb[0].mxu0
      %v1440 = vadd.f32 0.0, %v1439
      %v1441 = vpop.f32.mrb[0].mxu0
      %1442 = vmatprep.mubr.bf16.mxu0 0
      %1443 = vmatmul.mubr.bf16.gmra.mrb[0].mxu0 %v1334
      %v1444 = vpop.f32.mrb[0].mxu0
      %v1445 = vadd.f32 0.0, %v1444
      %v1446 = vpop.f32.mrb[0].mxu0
      %v1447 = vpop.f32.mrb[0].mxu0
      %v1448 = vadd.f32 0.0, %v1447
      %v1449 = vpop.f32.mrb[0].mxu0
      %1450 = vmatprep.mubr.bf16.mxu0 0
      %1451 = vmatmul.mubr.bf16.gmra.mrb[0].mxu0 %v1335
      %v1452 = vpop.f32.mrb[0].mxu0
      %v1453 = vadd.f32 0.0, %v1452
      %v1454 = vpop.f32.mrb[0].mxu0
      %v1455 = vpop.f32.mrb[0].mxu0
      %v1456 = vadd.f32 0.0, %v1455
      %v1457 = vpop.f32.mrb[0].mxu0
      %1458 = vmatprep.mubr.bf16.mxu0 0
      %1459 = vmatmul.mubr.bf16.gmra.mrb[0].mxu0 %v1336
      %v1460 = vpop.f32.mrb[0].mxu0
      %v1461 = vadd.f32 0.0, %v1460
      %v1462 = vpop.f32.mrb[0].mxu0
      %v1463 = vpop.f32.mrb[0].mxu0
      %v1464 = vadd.f32 0.0, %v1463
      %v1465 = vpop.f32.mrb[0].mxu0
      %1466 = vdwg.mxu0
      %v1467 = vadd.f32 %v1227, %v1437
      %v1468 = vadd.f32 %v1228, %v1440
      %v1469 = vadd.f32 %v1229, %v1445
      %v1470 = vadd.f32 %v1230, %v1448
      %v1471 = vadd.f32 %v1231, %v1453
      %v1472 = vadd.f32 %v1232, %v1456
      %v1473 = vadd.f32 %v1233, %v1461
      %v1474 = vadd.f32 %v1234, %v1464
      %v1475 = vld [vmem:[%s1235] sm:$0xf]
      %v1476 = vld [vmem:[%s1235 + $0x4] sm:$0x1]
      %v1477 = vld [vmem:[%s1235 + $0x8] sm:$0xf]
      %v1478 = vld [vmem:[%s1235 + $0xc] sm:$0x1]
      %v1479 = vld [vmem:[%s1235 + $0x10] sm:$0xf]
      %v1480 = vld [vmem:[%s1235 + $0x14] sm:$0x1]
      %v1481 = vld [vmem:[%s1235 + $0x18] sm:$0xf]
      %v1482 = vld [vmem:[%s1235 + $0x1c] sm:$0x1]
      %v1483 = vld [vmem:[%s1235 + $0x20] sm:$0xf]
      %v1484 = vld [vmem:[%s1235 + $0x24] sm:$0x1]
      %v1485 = vld [vmem:[%s1235 + $0x28] sm:$0xf]
      %v1486 = vld [vmem:[%s1235 + $0x2c] sm:$0x1]
      %v1487 = vld [vmem:[%s1235 + $0x30] sm:$0xf]
      %v1488 = vld [vmem:[%s1235 + $0x34] sm:$0x1]
      %v1489 = vld [vmem:[%s1235 + $0x38] sm:$0xf]
      %v1490 = vld [vmem:[%s1235 + $0x3c] sm:$0x1]
      %v1491 = vunpack.c.l.bf16 %v1475
      %v1492 = vunpack.c.l.bf16 %v1476
      %v1493 = vunpack.c.l.bf16 %v1477
      %v1494 = vunpack.c.l.bf16 %v1478
      %v1495 = vunpack.c.l.bf16 %v1479
      %v1496 = vunpack.c.l.bf16 %v1480
      %v1497 = vunpack.c.l.bf16 %v1481
      %v1498 = vunpack.c.l.bf16 %v1482
      %v1499 = vunpack.c.l.bf16 %v1483
      %v1500 = vunpack.c.l.bf16 %v1484
      %v1501 = vunpack.c.l.bf16 %v1485
      %v1502 = vunpack.c.l.bf16 %v1486
      %v1503 = vunpack.c.l.bf16 %v1487
      %v1504 = vunpack.c.l.bf16 %v1488
      %v1505 = vunpack.c.l.bf16 %v1489
      %v1506 = vunpack.c.l.bf16 %v1490
      %v1507 = vld [vmem:[%s1252 + $0x1] sm:$0xff]
      %v1508 = vld [vmem:[%s1252 + $0x11] sm:$0xff]
      %v1509 = vld [vmem:[%s1252 + $0x21] sm:$0xff]
      %v1510 = vld [vmem:[%s1252 + $0x31] sm:$0xff]
      %v1511 = vld [vmem:[%s1252 + $0x41] sm:$0xff]
      %v1512 = vld [vmem:[%s1252 + $0x51] sm:$0xff]
      %v1513 = vld [vmem:[%s1252 + $0x61] sm:$0xff]
      %v1514 = vld [vmem:[%s1252 + $0x71] sm:$0xff]
      %v1515 = vmul.f32 %v1491, %v384
      %v1516 = vmul.f32 %v1492, %v384
      %v1517 = vmul.f32 %v1493, %v384
      %v1518 = vmul.f32 %v1494, %v384
      %v1519 = vmul.f32 %v1495, %v384
      %v1520 = vmul.f32 %v1496, %v384
      %v1521 = vmul.f32 %v1497, %v384
      %v1522 = vmul.f32 %v1498, %v384
      %v1523 = vmul.f32 %v1499, %v384
      %v1524 = vmul.f32 %v1500, %v384
      %v1525 = vmul.f32 %v1501, %v384
      %v1526 = vmul.f32 %v1502, %v384
      %v1527 = vmul.f32 %v1503, %v384
      %v1528 = vmul.f32 %v1504, %v384
      %v1529 = vmul.f32 %v1505, %v384
      %v1530 = vmul.f32 %v1506, %v384
      %v1531 = vadd.f32 %v1515, %v398
      %v1532 = vadd.f32 %v1516, %v398
      %v1533 = vadd.f32 %v1517, %v398
      %v1534 = vadd.f32 %v1518, %v398
      %v1535 = vadd.f32 %v1519, %v398
      %v1536 = vadd.f32 %v1520, %v398
      %v1537 = vadd.f32 %v1521, %v398
      %v1538 = vadd.f32 %v1522, %v398
      %v1539 = vadd.f32 %v1523, %v398
      %v1540 = vadd.f32 %v1524, %v398
      %v1541 = vadd.f32 %v1525, %v398
      %v1542 = vadd.f32 %v1526, %v398
      %v1543 = vadd.f32 %v1527, %v398
      %v1544 = vadd.f32 %v1528, %v398
      %v1545 = vadd.f32 %v1529, %v398
      %v1546 = vadd.f32 %v1530, %v398
      %v1547 = vmax.f32 %v1531, 0.0
      %v1548 = vmax.f32 %v1532, 0.0
      %v1549 = vmax.f32 %v1533, 0.0
      %v1550 = vmax.f32 %v1534, 0.0
      %v1551 = vmax.f32 %v1535, 0.0
      %v1552 = vmax.f32 %v1536, 0.0
      %v1553 = vmax.f32 %v1537, 0.0
      %v1554 = vmax.f32 %v1538, 0.0
      %v1555 = vmax.f32 %v1539, 0.0
      %v1556 = vmax.f32 %v1540, 0.0
      %v1557 = vmax.f32 %v1541, 0.0
      %v1558 = vmax.f32 %v1542, 0.0
      %v1559 = vmax.f32 %v1543, 0.0
      %v1560 = vmax.f32 %v1544, 0.0
      %v1561 = vmax.f32 %v1545, 0.0
      %v1562 = vmax.f32 %v1546, 0.0
      %1564 = vset.pattern.permute.xlu0 0
      %1565 = vperm.xlu0 %1564, %v1507
      %v1566 = vpop.permute.xlu0 %1565
      %1568 = vset.pattern.permute.xlu0 0
      %1569 = vperm.xlu0 %1568, %v1508
      %v1570 = vpop.permute.xlu0 %1569
      %1572 = vset.pattern.permute.xlu0 0
      %1573 = vperm.xlu0 %1572, %v1509
      %v1574 = vpop.permute.xlu0 %1573
      %1576 = vset.pattern.permute.xlu0 0
      %1577 = vperm.xlu0 %1576, %v1510
      %v1578 = vpop.permute.xlu0 %1577
      %1580 = vset.pattern.permute.xlu0 0
      %1581 = vperm.xlu0 %1580, %v1511
      %v1582 = vpop.permute.xlu0 %1581
      %1584 = vset.pattern.permute.xlu0 0
      %1585 = vperm.xlu0 %1584, %v1512
      %v1586 = vpop.permute.xlu0 %1585
      %1588 = vset.pattern.permute.xlu0 0
      %1589 = vperm.xlu0 %1588, %v1513
      %v1590 = vpop.permute.xlu0 %1589
      %1592 = vset.pattern.permute.xlu0 0
      %1593 = vperm.xlu0 %1592, %v1514
      %v1594 = vpop.permute.xlu0 %1593
      %v1595 = vrot.slane %v1566, 7
      %v1596 = vrot.slane %v1570, 7
      %v1597 = vrot.slane %v1574, 7
      %v1598 = vrot.slane %v1578, 7
      %v1599 = vrot.slane %v1582, 7
      %v1600 = vrot.slane %v1586, 7
      %v1601 = vrot.slane %v1590, 7
      %v1602 = vrot.slane %v1594, 7
      %v1611 = vmul.f32 %v1547, %v1595
      %v1612 = vmul.f32 %v1548, %v1595
      %v1613 = vmul.f32 %v1549, %v1596
      %v1614 = vmul.f32 %v1550, %v1596
      %v1615 = vmul.f32 %v1551, %v1597
      %v1616 = vmul.f32 %v1552, %v1597
      %v1617 = vmul.f32 %v1553, %v1598
      %v1618 = vmul.f32 %v1554, %v1598
      %v1619 = vmul.f32 %v1555, %v1599
      %v1620 = vmul.f32 %v1556, %v1599
      %v1621 = vmul.f32 %v1557, %v1600
      %v1622 = vmul.f32 %v1558, %v1600
      %v1623 = vmul.f32 %v1559, %v1601
      %v1624 = vmul.f32 %v1560, %v1601
      %v1625 = vmul.f32 %v1561, %v1602
      %v1626 = vmul.f32 %v1562, %v1602
      %v1643 = vrot.slane %v1611, 1
      %v1644 = vrot.slane %v1612, 1
      %v1645 = vsel %vm652, %v1643, %v1644
      %v1646 = vrot.slane %v1613, 1
      %v1647 = vrot.slane %v1614, 1
      %v1648 = vsel %vm652, %v1646, %v1647
      %v1649 = vrot.slane %v1615, 1
      %v1650 = vrot.slane %v1616, 1
      %v1651 = vsel %vm652, %v1649, %v1650
      %v1652 = vrot.slane %v1617, 1
      %v1653 = vrot.slane %v1618, 1
      %v1654 = vsel %vm652, %v1652, %v1653
      %v1655 = vrot.slane %v1619, 1
      %v1656 = vrot.slane %v1620, 1
      %v1657 = vsel %vm652, %v1655, %v1656
      %v1658 = vrot.slane %v1621, 1
      %v1659 = vrot.slane %v1622, 1
      %v1660 = vsel %vm652, %v1658, %v1659
      %v1661 = vrot.slane %v1623, 1
      %v1662 = vrot.slane %v1624, 1
      %v1663 = vsel %vm652, %v1661, %v1662
      %v1664 = vrot.slane %v1625, 1
      %v1665 = vrot.slane %v1626, 1
      %v1666 = vsel %vm652, %v1664, %v1665
      %v1675 = vpack.c.bf16 %v1648, %v1645
      %v1676 = vpack.c.bf16 %v1654, %v1651
      %v1677 = vpack.c.bf16 %v1660, %v1657
      %v1678 = vpack.c.bf16 %v1666, %v1663
      %s1679 = scalar_lea.vmem %s4, 256
      %v1680 = vld [vmem:[%s1679] sm:$0xf]
      %v1681 = vld [vmem:[%s1679 + $0x4] sm:$0xf]
      %v1682 = vld [vmem:[%s1679 + $0x8] sm:$0xf]
      %v1683 = vld [vmem:[%s1679 + $0xc] sm:$0xf]
      %v1684 = vld [vmem:[%s1679 + $0x10] sm:$0xf]
      %v1685 = vld [vmem:[%s1679 + $0x14] sm:$0xf]
      %v1686 = vld [vmem:[%s1679 + $0x18] sm:$0xf]
      %v1687 = vld [vmem:[%s1679 + $0x1c] sm:$0xf]
      %v1688 = vld [vmem:[%s1679 + $0x20] sm:$0xf]
      %v1689 = vld [vmem:[%s1679 + $0x24] sm:$0xf]
      %v1690 = vld [vmem:[%s1679 + $0x28] sm:$0xf]
      %v1691 = vld [vmem:[%s1679 + $0x2c] sm:$0xf]
      %v1692 = vld [vmem:[%s1679 + $0x30] sm:$0xf]
      %v1693 = vld [vmem:[%s1679 + $0x34] sm:$0xf]
      %v1694 = vld [vmem:[%s1679 + $0x38] sm:$0xf]
      %v1695 = vld [vmem:[%s1679 + $0x3c] sm:$0xf]
      %v1712 = vunpack.c.l.b16 %v1680
      %v1713 = vunpack.c.l.b16 %v1681
      %v1714 = vunpack.c.l.b16 %v1682
      %v1715 = vunpack.c.l.b16 %v1683
      %v1716 = vunpack.c.l.b16 %v1684
      %v1717 = vunpack.c.l.b16 %v1685
      %v1718 = vunpack.c.l.b16 %v1686
      %v1719 = vunpack.c.l.b16 %v1687
      %v1720 = vunpack.c.l.b16 %v1688
      %v1721 = vunpack.c.l.b16 %v1689
      %v1722 = vunpack.c.l.b16 %v1690
      %v1723 = vunpack.c.l.b16 %v1691
      %v1724 = vunpack.c.l.b16 %v1692
      %v1725 = vunpack.c.l.b16 %v1693
      %v1726 = vunpack.c.l.b16 %v1694
      %v1727 = vunpack.c.l.b16 %v1695
      %v1728 = vpack.c.b16 %v1713, %v1712
      %v1729 = vpack.c.b16 %v1715, %v1714
      %v1730 = vpack.c.b16 %v1717, %v1716
      %v1731 = vpack.c.b16 %v1719, %v1718
      %v1732 = vpack.c.b16 %v1721, %v1720
      %v1733 = vpack.c.b16 %v1723, %v1722
      %v1734 = vpack.c.b16 %v1725, %v1724
      %v1735 = vpack.c.b16 %v1727, %v1726
      %1744 = vmatprep.subr.bf16.mxu0 0
      %1745 = vmatpush1.bf16.msra.mxu0 %v1728
      %1746 = vmatprep.subr.bf16.mxu0 0
      %1747 = vmatpush1.bf16.msra.mxu0 %v1729
      %1748 = vmatprep.subr.bf16.mxu0 0
      %1749 = vmatpush1.bf16.msra.mxu0 %v1730
      %1750 = vmatprep.subr.bf16.mxu0 0
      %1751 = vmatpush1.bf16.msra.mxu0 %v1731
      %1752 = vmatprep.subr.bf16.mxu0 0
      %1753 = vmatpush1.bf16.msra.mxu0 %v1732
      %1754 = vmatprep.subr.bf16.mxu0 0
      %1755 = vmatpush1.bf16.msra.mxu0 %v1733
      %1756 = vmatprep.subr.bf16.mxu0 0
      %1757 = vmatpush1.bf16.msra.mxu0 %v1734
      %1758 = vmatprep.subr.bf16.mxu0 0
      %1759 = vmatpush1.bf16.msra.mxu0 %v1735
      %1760 = vmatprep.subr.bf16.mxu0 0
      %1761 = vmatpush1.bf16.msra.mxu0 0
      %1762 = vmatprep.subr.bf16.mxu0 0
      %1763 = vmatpush1.bf16.msra.mxu0 0
      %1764 = vmatprep.subr.bf16.mxu0 0
      %1765 = vmatpush1.bf16.msra.mxu0 0
      %1766 = vmatprep.subr.bf16.mxu0 0
      %1767 = vmatpush1.bf16.msra.mxu0 0
      %1768 = vmatprep.subr.bf16.mxu0 0
      %1769 = vmatpush1.bf16.msra.mxu0 0
      %1770 = vmatprep.subr.bf16.mxu0 0
      %1771 = vmatpush1.bf16.msra.mxu0 0
      %1772 = vmatprep.subr.bf16.mxu0 0
      %1773 = vmatpush1.bf16.msra.mxu0 0
      %1774 = vmatprep.subr.bf16.mxu0 0
      %1775 = vmatpush1.bf16.msra.mxu0 0
      %1776 = vmatprep.mubr.bf16.mxu0 0
      %1777 = vmatmul.mubr.bf16.gmra.mrb[0].mxu0 %v1675
      %v1778 = vpop.f32.mrb[0].mxu0
      %v1779 = vadd.f32 0.0, %v1778
      %v1780 = vpop.f32.mrb[0].mxu0
      %v1781 = vpop.f32.mrb[0].mxu0
      %v1782 = vadd.f32 0.0, %v1781
      %v1783 = vpop.f32.mrb[0].mxu0
      %1784 = vmatprep.mubr.bf16.mxu0 0
      %1785 = vmatmul.mubr.bf16.gmra.mrb[0].mxu0 %v1676
      %v1786 = vpop.f32.mrb[0].mxu0
      %v1787 = vadd.f32 0.0, %v1786
      %v1788 = vpop.f32.mrb[0].mxu0
      %v1789 = vpop.f32.mrb[0].mxu0
      %v1790 = vadd.f32 0.0, %v1789
      %v1791 = vpop.f32.mrb[0].mxu0
      %1792 = vmatprep.mubr.bf16.mxu0 0
      %1793 = vmatmul.mubr.bf16.gmra.mrb[0].mxu0 %v1677
      %v1794 = vpop.f32.mrb[0].mxu0
      %v1795 = vadd.f32 0.0, %v1794
      %v1796 = vpop.f32.mrb[0].mxu0
      %v1797 = vpop.f32.mrb[0].mxu0
      %v1798 = vadd.f32 0.0, %v1797
      %v1799 = vpop.f32.mrb[0].mxu0
      %1800 = vmatprep.mubr.bf16.mxu0 0
      %1801 = vmatmul.mubr.bf16.gmra.mrb[0].mxu0 %v1678
      %v1802 = vpop.f32.mrb[0].mxu0
      %v1803 = vadd.f32 0.0, %v1802
      %v1804 = vpop.f32.mrb[0].mxu0
      %v1805 = vpop.f32.mrb[0].mxu0
      %v1806 = vadd.f32 0.0, %v1805
      %v1807 = vpop.f32.mrb[0].mxu0
      %1808 = vdwg.mxu0
      %v1809 = vadd.f32 %v1467, %v1779
      %v1810 = vadd.f32 %v1468, %v1782
      %v1811 = vadd.f32 %v1469, %v1787
      %v1812 = vadd.f32 %v1470, %v1790
      %v1813 = vadd.f32 %v1471, %v1795
      %v1814 = vadd.f32 %v1472, %v1798
      %v1815 = vadd.f32 %v1473, %v1803
      %v1816 = vadd.f32 %v1474, %v1806
      %v1817 = vld [vmem:[%s1235] sm:$0xe]
      %v1818 = vld [vmem:[%s1235 + $0x8] sm:$0xe]
      %v1819 = vld [vmem:[%s1235 + $0x10] sm:$0xe]
      %v1820 = vld [vmem:[%s1235 + $0x18] sm:$0xe]
      %v1821 = vld [vmem:[%s1235 + $0x20] sm:$0xe]
      %v1822 = vld [vmem:[%s1235 + $0x28] sm:$0xe]
      %v1823 = vld [vmem:[%s1235 + $0x30] sm:$0xe]
      %v1824 = vld [vmem:[%s1235 + $0x38] sm:$0xe]
      %v1825 = vunpack.c.l.bf16 %v1817
      %v1826 = vunpack.c.l.bf16 %v1818
      %v1827 = vunpack.c.l.bf16 %v1819
      %v1828 = vunpack.c.l.bf16 %v1820
      %v1829 = vunpack.c.l.bf16 %v1821
      %v1830 = vunpack.c.l.bf16 %v1822
      %v1831 = vunpack.c.l.bf16 %v1823
      %v1832 = vunpack.c.l.bf16 %v1824
      %v1833 = vld [vmem:[%s1252 + $0x2] sm:$0xff]
      %v1834 = vld [vmem:[%s1252 + $0x12] sm:$0xff]
      %v1835 = vld [vmem:[%s1252 + $0x22] sm:$0xff]
      %v1836 = vld [vmem:[%s1252 + $0x32] sm:$0xff]
      %v1837 = vld [vmem:[%s1252 + $0x42] sm:$0xff]
      %v1838 = vld [vmem:[%s1252 + $0x52] sm:$0xff]
      %v1839 = vld [vmem:[%s1252 + $0x62] sm:$0xff]
      %v1840 = vld [vmem:[%s1252 + $0x72] sm:$0xff]
      %v1841 = vmul.f32 %v1825, %v384
      %v1842 = vmul.f32 %v1826, %v384
      %v1843 = vmul.f32 %v1827, %v384
      %v1844 = vmul.f32 %v1828, %v384
      %v1845 = vmul.f32 %v1829, %v384
      %v1846 = vmul.f32 %v1830, %v384
      %v1847 = vmul.f32 %v1831, %v384
      %v1848 = vmul.f32 %v1832, %v384
      %v1849 = vadd.f32 %v1841, %v398
      %v1850 = vadd.f32 %v1842, %v398
      %v1851 = vadd.f32 %v1843, %v398
      %v1852 = vadd.f32 %v1844, %v398
      %v1853 = vadd.f32 %v1845, %v398
      %v1854 = vadd.f32 %v1846, %v398
      %v1855 = vadd.f32 %v1847, %v398
      %v1856 = vadd.f32 %v1848, %v398
      %v1857 = vmax.f32 %v1849, 0.0
      %v1858 = vmax.f32 %v1850, 0.0
      %v1859 = vmax.f32 %v1851, 0.0
      %v1860 = vmax.f32 %v1852, 0.0
      %v1861 = vmax.f32 %v1853, 0.0
      %v1862 = vmax.f32 %v1854, 0.0
      %v1863 = vmax.f32 %v1855, 0.0
      %v1864 = vmax.f32 %v1856, 0.0
      %1866 = vset.pattern.permute.xlu0 0
      %1867 = vperm.xlu0 %1866, %v1833
      %v1868 = vpop.permute.xlu0 %1867
      %1870 = vset.pattern.permute.xlu0 0
      %1871 = vperm.xlu0 %1870, %v1834
      %v1872 = vpop.permute.xlu0 %1871
      %1874 = vset.pattern.permute.xlu0 0
      %1875 = vperm.xlu0 %1874, %v1835
      %v1876 = vpop.permute.xlu0 %1875
      %1878 = vset.pattern.permute.xlu0 0
      %1879 = vperm.xlu0 %1878, %v1836
      %v1880 = vpop.permute.xlu0 %1879
      %1882 = vset.pattern.permute.xlu0 0
      %1883 = vperm.xlu0 %1882, %v1837
      %v1884 = vpop.permute.xlu0 %1883
      %1886 = vset.pattern.permute.xlu0 0
      %1887 = vperm.xlu0 %1886, %v1838
      %v1888 = vpop.permute.xlu0 %1887
      %1890 = vset.pattern.permute.xlu0 0
      %1891 = vperm.xlu0 %1890, %v1839
      %v1892 = vpop.permute.xlu0 %1891
      %1894 = vset.pattern.permute.xlu0 0
      %1895 = vperm.xlu0 %1894, %v1840
      %v1896 = vpop.permute.xlu0 %1895
      %v1897 = vrot.slane %v1868, 6
      %v1898 = vrot.slane %v1872, 6
      %v1899 = vrot.slane %v1876, 6
      %v1900 = vrot.slane %v1880, 6
      %v1901 = vrot.slane %v1884, 6
      %v1902 = vrot.slane %v1888, 6
      %v1903 = vrot.slane %v1892, 6
      %v1904 = vrot.slane %v1896, 6
      %v1913 = vmul.f32 %v1857, %v1897
      %v1914 = vmul.f32 %v1548, %v1897
      %v1915 = vmul.f32 %v1858, %v1898
      %v1916 = vmul.f32 %v1550, %v1898
      %v1917 = vmul.f32 %v1859, %v1899
      %v1918 = vmul.f32 %v1552, %v1899
      %v1919 = vmul.f32 %v1860, %v1900
      %v1920 = vmul.f32 %v1554, %v1900
      %v1921 = vmul.f32 %v1861, %v1901
      %v1922 = vmul.f32 %v1556, %v1901
      %v1923 = vmul.f32 %v1862, %v1902
      %v1924 = vmul.f32 %v1558, %v1902
      %v1925 = vmul.f32 %v1863, %v1903
      %v1926 = vmul.f32 %v1560, %v1903
      %v1927 = vmul.f32 %v1864, %v1904
      %v1928 = vmul.f32 %v1562, %v1904
      %v1945 = vrot.slane %v1913, 2
      %v1946 = vrot.slane %v1914, 2
      %v1947 = vsel %vm1060, %v1945, %v1946
      %v1948 = vrot.slane %v1915, 2
      %v1949 = vrot.slane %v1916, 2
      %v1950 = vsel %vm1060, %v1948, %v1949
      %v1951 = vrot.slane %v1917, 2
      %v1952 = vrot.slane %v1918, 2
      %v1953 = vsel %vm1060, %v1951, %v1952
      %v1954 = vrot.slane %v1919, 2
      %v1955 = vrot.slane %v1920, 2
      %v1956 = vsel %vm1060, %v1954, %v1955
      %v1957 = vrot.slane %v1921, 2
      %v1958 = vrot.slane %v1922, 2
      %v1959 = vsel %vm1060, %v1957, %v1958
      %v1960 = vrot.slane %v1923, 2
      %v1961 = vrot.slane %v1924, 2
      %v1962 = vsel %vm1060, %v1960, %v1961
      %v1963 = vrot.slane %v1925, 2
      %v1964 = vrot.slane %v1926, 2
      %v1965 = vsel %vm1060, %v1963, %v1964
      %v1966 = vrot.slane %v1927, 2
      %v1967 = vrot.slane %v1928, 2
      %v1968 = vsel %vm1060, %v1966, %v1967
      %v1977 = vpack.c.bf16 %v1950, %v1947
      %v1978 = vpack.c.bf16 %v1956, %v1953
      %v1979 = vpack.c.bf16 %v1962, %v1959
      %v1980 = vpack.c.bf16 %v1968, %v1965
      %s1981 = scalar_lea.vmem %s4, 320
      %v1982 = vld [vmem:[%s1981] sm:$0xf]
      %v1983 = vld [vmem:[%s1981 + $0x4] sm:$0xf]
      %v1984 = vld [vmem:[%s1981 + $0x8] sm:$0xf]
      %v1985 = vld [vmem:[%s1981 + $0xc] sm:$0xf]
      %v1986 = vld [vmem:[%s1981 + $0x10] sm:$0xf]
      %v1987 = vld [vmem:[%s1981 + $0x14] sm:$0xf]
      %v1988 = vld [vmem:[%s1981 + $0x18] sm:$0xf]
      %v1989 = vld [vmem:[%s1981 + $0x1c] sm:$0xf]
      %v1990 = vld [vmem:[%s1981 + $0x20] sm:$0xf]
      %v1991 = vld [vmem:[%s1981 + $0x24] sm:$0xf]
      %v1992 = vld [vmem:[%s1981 + $0x28] sm:$0xf]
      %v1993 = vld [vmem:[%s1981 + $0x2c] sm:$0xf]
      %v1994 = vld [vmem:[%s1981 + $0x30] sm:$0xf]
      %v1995 = vld [vmem:[%s1981 + $0x34] sm:$0xf]
      %v1996 = vld [vmem:[%s1981 + $0x38] sm:$0xf]
      %v1997 = vld [vmem:[%s1981 + $0x3c] sm:$0xf]
      %v2014 = vunpack.c.l.b16 %v1982
      %v2015 = vunpack.c.l.b16 %v1983
      %v2016 = vunpack.c.l.b16 %v1984
      %v2017 = vunpack.c.l.b16 %v1985
      %v2018 = vunpack.c.l.b16 %v1986
      %v2019 = vunpack.c.l.b16 %v1987
      %v2020 = vunpack.c.l.b16 %v1988
      %v2021 = vunpack.c.l.b16 %v1989
      %v2022 = vunpack.c.l.b16 %v1990
      %v2023 = vunpack.c.l.b16 %v1991
      %v2024 = vunpack.c.l.b16 %v1992
      %v2025 = vunpack.c.l.b16 %v1993
      %v2026 = vunpack.c.l.b16 %v1994
      %v2027 = vunpack.c.l.b16 %v1995
      %v2028 = vunpack.c.l.b16 %v1996
      %v2029 = vunpack.c.l.b16 %v1997
      %v2030 = vpack.c.b16 %v2015, %v2014
      %v2031 = vpack.c.b16 %v2017, %v2016
      %v2032 = vpack.c.b16 %v2019, %v2018
      %v2033 = vpack.c.b16 %v2021, %v2020
      %v2034 = vpack.c.b16 %v2023, %v2022
      %v2035 = vpack.c.b16 %v2025, %v2024
      %v2036 = vpack.c.b16 %v2027, %v2026
      %v2037 = vpack.c.b16 %v2029, %v2028
      %2046 = vmatprep.subr.bf16.mxu0 0
      %2047 = vmatpush1.bf16.msra.mxu0 %v2030
      %2048 = vmatprep.subr.bf16.mxu0 0
      %2049 = vmatpush1.bf16.msra.mxu0 %v2031
      %2050 = vmatprep.subr.bf16.mxu0 0
      %2051 = vmatpush1.bf16.msra.mxu0 %v2032
      %2052 = vmatprep.subr.bf16.mxu0 0
      %2053 = vmatpush1.bf16.msra.mxu0 %v2033
      %2054 = vmatprep.subr.bf16.mxu0 0
      %2055 = vmatpush1.bf16.msra.mxu0 %v2034
      %2056 = vmatprep.subr.bf16.mxu0 0
      %2057 = vmatpush1.bf16.msra.mxu0 %v2035
      %2058 = vmatprep.subr.bf16.mxu0 0
      %2059 = vmatpush1.bf16.msra.mxu0 %v2036
      %2060 = vmatprep.subr.bf16.mxu0 0
      %2061 = vmatpush1.bf16.msra.mxu0 %v2037
      %2062 = vmatprep.subr.bf16.mxu0 0
      %2063 = vmatpush1.bf16.msra.mxu0 0
      %2064 = vmatprep.subr.bf16.mxu0 0
      %2065 = vmatpush1.bf16.msra.mxu0 0
      %2066 = vmatprep.subr.bf16.mxu0 0
      %2067 = vmatpush1.bf16.msra.mxu0 0
      %2068 = vmatprep.subr.bf16.mxu0 0
      %2069 = vmatpush1.bf16.msra.mxu0 0
      %2070 = vmatprep.subr.bf16.mxu0 0
      %2071 = vmatpush1.bf16.msra.mxu0 0
      %2072 = vmatprep.subr.bf16.mxu0 0
      %2073 = vmatpush1.bf16.msra.mxu0 0
      %2074 = vmatprep.subr.bf16.mxu0 0
      %2075 = vmatpush1.bf16.msra.mxu0 0
      %2076 = vmatprep.subr.bf16.mxu0 0
      %2077 = vmatpush1.bf16.msra.mxu0 0
      %2078 = vmatprep.mubr.bf16.mxu0 0
      %2079 = vmatmul.mubr.bf16.gmra.mrb[0].mxu0 %v1977
      %v2080 = vpop.f32.mrb[0].mxu0
      %v2081 = vadd.f32 0.0, %v2080
      %v2082 = vpop.f32.mrb[0].mxu0
      %v2083 = vpop.f32.mrb[0].mxu0
      %v2084 = vadd.f32 0.0, %v2083
      %v2085 = vpop.f32.mrb[0].mxu0
      %2086 = vmatprep.mubr.bf16.mxu0 0
      %2087 = vmatmul.mubr.bf16.gmra.mrb[0].mxu0 %v1978
      %v2088 = vpop.f32.mrb[0].mxu0
      %v2089 = vadd.f32 0.0, %v2088
      %v2090 = vpop.f32.mrb[0].mxu0
      %v2091 = vpop.f32.mrb[0].mxu0
      %v2092 = vadd.f32 0.0, %v2091
      %v2093 = vpop.f32.mrb[0].mxu0
      %2094 = vmatprep.mubr.bf16.mxu0 0
      %2095 = vmatmul.mubr.bf16.gmra.mrb[0].mxu0 %v1979
      %v2096 = vpop.f32.mrb[0].mxu0
      %v2097 = vadd.f32 0.0, %v2096
      %v2098 = vpop.f32.mrb[0].mxu0
      %v2099 = vpop.f32.mrb[0].mxu0
      %v2100 = vadd.f32 0.0, %v2099
      %v2101 = vpop.f32.mrb[0].mxu0
      %2102 = vmatprep.mubr.bf16.mxu0 0
      %2103 = vmatmul.mubr.bf16.gmra.mrb[0].mxu0 %v1980
      %v2104 = vpop.f32.mrb[0].mxu0
      %v2105 = vadd.f32 0.0, %v2104
      %v2106 = vpop.f32.mrb[0].mxu0
      %v2107 = vpop.f32.mrb[0].mxu0
      %v2108 = vadd.f32 0.0, %v2107
      %v2109 = vpop.f32.mrb[0].mxu0
      %2110 = vdwg.mxu0
      %v2111 = vadd.f32 %v1809, %v2081
      %v2112 = vadd.f32 %v1810, %v2084
      %v2113 = vadd.f32 %v1811, %v2089
      %v2114 = vadd.f32 %v1812, %v2092
      %v2115 = vadd.f32 %v1813, %v2097
      %v2116 = vadd.f32 %v1814, %v2100
      %v2117 = vadd.f32 %v1815, %v2105
      %v2118 = vadd.f32 %v1816, %v2108
      %s2119 = scalar_lea.vmem %s342, 16
      %v2120 = vld [vmem:[%s2119] sm:$0xf]
      %v2121 = vld [vmem:[%s2119 + $0x8] sm:$0xf]
      %v2122 = vld [vmem:[%s2119 + $0x10] sm:$0xf]
      %v2123 = vld [vmem:[%s2119 + $0x18] sm:$0xf]
      %v2124 = vld [vmem:[%s2119 + $0x20] sm:$0xf]
      %v2125 = vld [vmem:[%s2119 + $0x28] sm:$0xf]
      %v2126 = vld [vmem:[%s2119 + $0x30] sm:$0xf]
      %v2127 = vld [vmem:[%s2119 + $0x38] sm:$0xf]
      %v2128 = vunpack.c.l.bf16 %v2120
      %v2129 = vunpack.c.l.bf16 %v2121
      %v2130 = vunpack.c.l.bf16 %v2122
      %v2131 = vunpack.c.l.bf16 %v2123
      %v2132 = vunpack.c.l.bf16 %v2124
      %v2133 = vunpack.c.l.bf16 %v2125
      %v2134 = vunpack.c.l.bf16 %v2126
      %v2135 = vunpack.c.l.bf16 %v2127
      %s2136 = scalar_lea.vmem %s1, 32
      %v2137 = vld [vmem:[%s2136] sm:$0xff]
      %v2138 = vld [vmem:[%s2136 + $0x10] sm:$0xff]
      %v2139 = vld [vmem:[%s2136 + $0x20] sm:$0xff]
      %v2140 = vld [vmem:[%s2136 + $0x30] sm:$0xff]
      %v2141 = vld [vmem:[%s2136 + $0x40] sm:$0xff]
      %v2142 = vld [vmem:[%s2136 + $0x50] sm:$0xff]
      %v2143 = vld [vmem:[%s2136 + $0x60] sm:$0xff]
      %v2144 = vld [vmem:[%s2136 + $0x70] sm:$0xff]
      %v2145 = vmul.f32 %v2128, %v384
      %v2146 = vmul.f32 %v2129, %v384
      %v2147 = vmul.f32 %v2130, %v384
      %v2148 = vmul.f32 %v2131, %v384
      %v2149 = vmul.f32 %v2132, %v384
      %v2150 = vmul.f32 %v2133, %v384
      %v2151 = vmul.f32 %v2134, %v384
      %v2152 = vmul.f32 %v2135, %v384
      %v2153 = vadd.f32 %v2145, %v398
      %v2154 = vadd.f32 %v2146, %v398
      %v2155 = vadd.f32 %v2147, %v398
      %v2156 = vadd.f32 %v2148, %v398
      %v2157 = vadd.f32 %v2149, %v398
      %v2158 = vadd.f32 %v2150, %v398
      %v2159 = vadd.f32 %v2151, %v398
      %v2160 = vadd.f32 %v2152, %v398
      %v2161 = vmax.f32 %v2153, 0.0
      %v2162 = vmax.f32 %v2154, 0.0
      %v2163 = vmax.f32 %v2155, 0.0
      %v2164 = vmax.f32 %v2156, 0.0
      %v2165 = vmax.f32 %v2157, 0.0
      %v2166 = vmax.f32 %v2158, 0.0
      %v2167 = vmax.f32 %v2159, 0.0
      %v2168 = vmax.f32 %v2160, 0.0
      %2170 = vset.pattern.permute.xlu0 0
      %2171 = vperm.xlu0 %2170, %v2137
      %v2172 = vpop.permute.xlu0 %2171
      %2175 = vset.pattern.permute.xlu0 0
      %2176 = vperm.xlu0 %2175, %v2138
      %v2177 = vpop.permute.xlu0 %2176
      %2180 = vset.pattern.permute.xlu0 0
      %2181 = vperm.xlu0 %2180, %v2139
      %v2182 = vpop.permute.xlu0 %2181
      %2185 = vset.pattern.permute.xlu0 0
      %2186 = vperm.xlu0 %2185, %v2140
      %v2187 = vpop.permute.xlu0 %2186
      %2190 = vset.pattern.permute.xlu0 0
      %2191 = vperm.xlu0 %2190, %v2141
      %v2192 = vpop.permute.xlu0 %2191
      %2195 = vset.pattern.permute.xlu0 0
      %2196 = vperm.xlu0 %2195, %v2142
      %v2197 = vpop.permute.xlu0 %2196
      %2200 = vset.pattern.permute.xlu0 0
      %2201 = vperm.xlu0 %2200, %v2143
      %v2202 = vpop.permute.xlu0 %2201
      %2205 = vset.pattern.permute.xlu0 0
      %2206 = vperm.xlu0 %2205, %v2144
      %v2207 = vpop.permute.xlu0 %2206
      %v2209 = vmul.f32 %v2161, %v2172
      %v2210 = vmul.f32 %v2162, %v2177
      %v2211 = vmul.f32 %v2163, %v2182
      %v2212 = vmul.f32 %v2164, %v2187
      %v2213 = vmul.f32 %v2165, %v2192
      %v2214 = vmul.f32 %v2166, %v2197
      %v2215 = vmul.f32 %v2167, %v2202
      %v2216 = vmul.f32 %v2168, %v2207
      %v2217 = vpack.c.bf16 %v2210, %v2209
      %v2218 = vpack.c.bf16 %v2212, %v2211
      %v2219 = vpack.c.bf16 %v2214, %v2213
      %v2220 = vpack.c.bf16 %v2216, %v2215
      %s2221 = scalar_lea.vmem %s4, 384
      %v2222 = vld [vmem:[%s2221] sm:$0xf]
      %v2223 = vld [vmem:[%s2221 + $0x4] sm:$0xf]
      %v2224 = vld [vmem:[%s2221 + $0x8] sm:$0xf]
      %v2225 = vld [vmem:[%s2221 + $0xc] sm:$0xf]
      %v2226 = vld [vmem:[%s2221 + $0x10] sm:$0xf]
      %v2227 = vld [vmem:[%s2221 + $0x14] sm:$0xf]
      %v2228 = vld [vmem:[%s2221 + $0x18] sm:$0xf]
      %v2229 = vld [vmem:[%s2221 + $0x1c] sm:$0xf]
      %v2230 = vld [vmem:[%s2221 + $0x20] sm:$0xf]
      %v2231 = vld [vmem:[%s2221 + $0x24] sm:$0xf]
      %v2232 = vld [vmem:[%s2221 + $0x28] sm:$0xf]
      %v2233 = vld [vmem:[%s2221 + $0x2c] sm:$0xf]
      %v2234 = vld [vmem:[%s2221 + $0x30] sm:$0xf]
      %v2235 = vld [vmem:[%s2221 + $0x34] sm:$0xf]
      %v2236 = vld [vmem:[%s2221 + $0x38] sm:$0xf]
      %v2237 = vld [vmem:[%s2221 + $0x3c] sm:$0xf]
      %v2254 = vunpack.c.l.b16 %v2222
      %v2255 = vunpack.c.l.b16 %v2223
      %v2256 = vunpack.c.l.b16 %v2224
      %v2257 = vunpack.c.l.b16 %v2225
      %v2258 = vunpack.c.l.b16 %v2226
      %v2259 = vunpack.c.l.b16 %v2227
      %v2260 = vunpack.c.l.b16 %v2228
      %v2261 = vunpack.c.l.b16 %v2229
      %v2262 = vunpack.c.l.b16 %v2230
      %v2263 = vunpack.c.l.b16 %v2231
      %v2264 = vunpack.c.l.b16 %v2232
      %v2265 = vunpack.c.l.b16 %v2233
      %v2266 = vunpack.c.l.b16 %v2234
      %v2267 = vunpack.c.l.b16 %v2235
      %v2268 = vunpack.c.l.b16 %v2236
      %v2269 = vunpack.c.l.b16 %v2237
      %v2270 = vpack.c.b16 %v2255, %v2254
      %v2271 = vpack.c.b16 %v2257, %v2256
      %v2272 = vpack.c.b16 %v2259, %v2258
      %v2273 = vpack.c.b16 %v2261, %v2260
      %v2274 = vpack.c.b16 %v2263, %v2262
      %v2275 = vpack.c.b16 %v2265, %v2264
      %v2276 = vpack.c.b16 %v2267, %v2266
      %v2277 = vpack.c.b16 %v2269, %v2268
      %2286 = vmatprep.subr.bf16.mxu0 0
      %2287 = vmatpush1.bf16.msra.mxu0 %v2270
      %2288 = vmatprep.subr.bf16.mxu0 0
      %2289 = vmatpush1.bf16.msra.mxu0 %v2271
      %2290 = vmatprep.subr.bf16.mxu0 0
      %2291 = vmatpush1.bf16.msra.mxu0 %v2272
      %2292 = vmatprep.subr.bf16.mxu0 0
      %2293 = vmatpush1.bf16.msra.mxu0 %v2273
      %2294 = vmatprep.subr.bf16.mxu0 0
      %2295 = vmatpush1.bf16.msra.mxu0 %v2274
      %2296 = vmatprep.subr.bf16.mxu0 0
      %2297 = vmatpush1.bf16.msra.mxu0 %v2275
      %2298 = vmatprep.subr.bf16.mxu0 0
      %2299 = vmatpush1.bf16.msra.mxu0 %v2276
      %2300 = vmatprep.subr.bf16.mxu0 0
      %2301 = vmatpush1.bf16.msra.mxu0 %v2277
      %2302 = vmatprep.subr.bf16.mxu0 0
      %2303 = vmatpush1.bf16.msra.mxu0 0
      %2304 = vmatprep.subr.bf16.mxu0 0
      %2305 = vmatpush1.bf16.msra.mxu0 0
      %2306 = vmatprep.subr.bf16.mxu0 0
      %2307 = vmatpush1.bf16.msra.mxu0 0
      %2308 = vmatprep.subr.bf16.mxu0 0
      %2309 = vmatpush1.bf16.msra.mxu0 0
      %2310 = vmatprep.subr.bf16.mxu0 0
      %2311 = vmatpush1.bf16.msra.mxu0 0
      %2312 = vmatprep.subr.bf16.mxu0 0
      %2313 = vmatpush1.bf16.msra.mxu0 0
      %2314 = vmatprep.subr.bf16.mxu0 0
      %2315 = vmatpush1.bf16.msra.mxu0 0
      %2316 = vmatprep.subr.bf16.mxu0 0
      %2317 = vmatpush1.bf16.msra.mxu0 0
      %2318 = vmatprep.mubr.bf16.mxu0 0
      %2319 = vmatmul.mubr.bf16.gmra.mrb[0].mxu0 %v2217
      %v2320 = vpop.f32.mrb[0].mxu0
      %v2321 = vadd.f32 0.0, %v2320
      %v2322 = vpop.f32.mrb[0].mxu0
      %v2323 = vpop.f32.mrb[0].mxu0
      %v2324 = vadd.f32 0.0, %v2323
      %v2325 = vpop.f32.mrb[0].mxu0
      %2326 = vmatprep.mubr.bf16.mxu0 0
      %2327 = vmatmul.mubr.bf16.gmra.mrb[0].mxu0 %v2218
      %v2328 = vpop.f32.mrb[0].mxu0
      %v2329 = vadd.f32 0.0, %v2328
      %v2330 = vpop.f32.mrb[0].mxu0
      %v2331 = vpop.f32.mrb[0].mxu0
      %v2332 = vadd.f32 0.0, %v2331
      %v2333 = vpop.f32.mrb[0].mxu0
      %2334 = vmatprep.mubr.bf16.mxu0 0
      %2335 = vmatmul.mubr.bf16.gmra.mrb[0].mxu0 %v2219
      %v2336 = vpop.f32.mrb[0].mxu0
      %v2337 = vadd.f32 0.0, %v2336
      %v2338 = vpop.f32.mrb[0].mxu0
      %v2339 = vpop.f32.mrb[0].mxu0
      %v2340 = vadd.f32 0.0, %v2339
      %v2341 = vpop.f32.mrb[0].mxu0
      %2342 = vmatprep.mubr.bf16.mxu0 0
      %2343 = vmatmul.mubr.bf16.gmra.mrb[0].mxu0 %v2220
      %v2344 = vpop.f32.mrb[0].mxu0
      %v2345 = vadd.f32 0.0, %v2344
      %v2346 = vpop.f32.mrb[0].mxu0
      %v2347 = vpop.f32.mrb[0].mxu0
      %v2348 = vadd.f32 0.0, %v2347
      %v2349 = vpop.f32.mrb[0].mxu0
      %2350 = vdwg.mxu0
      %v2351 = vadd.f32 %v2111, %v2321
      %v2352 = vadd.f32 %v2112, %v2324
      %v2353 = vadd.f32 %v2113, %v2329
      %v2354 = vadd.f32 %v2114, %v2332
      %v2355 = vadd.f32 %v2115, %v2337
      %v2356 = vadd.f32 %v2116, %v2340
      %v2357 = vadd.f32 %v2117, %v2345
      %v2358 = vadd.f32 %v2118, %v2348
      %v2359 = vld [vmem:[%s2119] sm:$0xf]
      %v2360 = vld [vmem:[%s2119 + $0x4] sm:$0x1]
      %v2361 = vld [vmem:[%s2119 + $0x8] sm:$0xf]
      %v2362 = vld [vmem:[%s2119 + $0xc] sm:$0x1]
      %v2363 = vld [vmem:[%s2119 + $0x10] sm:$0xf]
      %v2364 = vld [vmem:[%s2119 + $0x14] sm:$0x1]
      %v2365 = vld [vmem:[%s2119 + $0x18] sm:$0xf]
      %v2366 = vld [vmem:[%s2119 + $0x1c] sm:$0x1]
      %v2367 = vld [vmem:[%s2119 + $0x20] sm:$0xf]
      %v2368 = vld [vmem:[%s2119 + $0x24] sm:$0x1]
      %v2369 = vld [vmem:[%s2119 + $0x28] sm:$0xf]
      %v2370 = vld [vmem:[%s2119 + $0x2c] sm:$0x1]
      %v2371 = vld [vmem:[%s2119 + $0x30] sm:$0xf]
      %v2372 = vld [vmem:[%s2119 + $0x34] sm:$0x1]
      %v2373 = vld [vmem:[%s2119 + $0x38] sm:$0xf]
      %v2374 = vld [vmem:[%s2119 + $0x3c] sm:$0x1]
      %v2375 = vunpack.c.l.bf16 %v2359
      %v2376 = vunpack.c.l.bf16 %v2360
      %v2377 = vunpack.c.l.bf16 %v2361
      %v2378 = vunpack.c.l.bf16 %v2362
      %v2379 = vunpack.c.l.bf16 %v2363
      %v2380 = vunpack.c.l.bf16 %v2364
      %v2381 = vunpack.c.l.bf16 %v2365
      %v2382 = vunpack.c.l.bf16 %v2366
      %v2383 = vunpack.c.l.bf16 %v2367
      %v2384 = vunpack.c.l.bf16 %v2368
      %v2385 = vunpack.c.l.bf16 %v2369
      %v2386 = vunpack.c.l.bf16 %v2370
      %v2387 = vunpack.c.l.bf16 %v2371
      %v2388 = vunpack.c.l.bf16 %v2372
      %v2389 = vunpack.c.l.bf16 %v2373
      %v2390 = vunpack.c.l.bf16 %v2374
      %v2391 = vld [vmem:[%s2136 + $0x1] sm:$0xff]
      %v2392 = vld [vmem:[%s2136 + $0x11] sm:$0xff]
      %v2393 = vld [vmem:[%s2136 + $0x21] sm:$0xff]
      %v2394 = vld [vmem:[%s2136 + $0x31] sm:$0xff]
      %v2395 = vld [vmem:[%s2136 + $0x41] sm:$0xff]
      %v2396 = vld [vmem:[%s2136 + $0x51] sm:$0xff]
      %v2397 = vld [vmem:[%s2136 + $0x61] sm:$0xff]
      %v2398 = vld [vmem:[%s2136 + $0x71] sm:$0xff]
      %v2399 = vmul.f32 %v2375, %v384
      %v2400 = vmul.f32 %v2376, %v384
      %v2401 = vmul.f32 %v2377, %v384
      %v2402 = vmul.f32 %v2378, %v384
      %v2403 = vmul.f32 %v2379, %v384
      %v2404 = vmul.f32 %v2380, %v384
      %v2405 = vmul.f32 %v2381, %v384
      %v2406 = vmul.f32 %v2382, %v384
      %v2407 = vmul.f32 %v2383, %v384
      %v2408 = vmul.f32 %v2384, %v384
      %v2409 = vmul.f32 %v2385, %v384
      %v2410 = vmul.f32 %v2386, %v384
      %v2411 = vmul.f32 %v2387, %v384
      %v2412 = vmul.f32 %v2388, %v384
      %v2413 = vmul.f32 %v2389, %v384
      %v2414 = vmul.f32 %v2390, %v384
      %v2415 = vadd.f32 %v2399, %v398
      %v2416 = vadd.f32 %v2400, %v398
      %v2417 = vadd.f32 %v2401, %v398
      %v2418 = vadd.f32 %v2402, %v398
      %v2419 = vadd.f32 %v2403, %v398
      %v2420 = vadd.f32 %v2404, %v398
      %v2421 = vadd.f32 %v2405, %v398
      %v2422 = vadd.f32 %v2406, %v398
      %v2423 = vadd.f32 %v2407, %v398
      %v2424 = vadd.f32 %v2408, %v398
      %v2425 = vadd.f32 %v2409, %v398
      %v2426 = vadd.f32 %v2410, %v398
      %v2427 = vadd.f32 %v2411, %v398
      %v2428 = vadd.f32 %v2412, %v398
      %v2429 = vadd.f32 %v2413, %v398
      %v2430 = vadd.f32 %v2414, %v398
      %v2431 = vmax.f32 %v2415, 0.0
      %v2432 = vmax.f32 %v2416, 0.0
      %v2433 = vmax.f32 %v2417, 0.0
      %v2434 = vmax.f32 %v2418, 0.0
      %v2435 = vmax.f32 %v2419, 0.0
      %v2436 = vmax.f32 %v2420, 0.0
      %v2437 = vmax.f32 %v2421, 0.0
      %v2438 = vmax.f32 %v2422, 0.0
      %v2439 = vmax.f32 %v2423, 0.0
      %v2440 = vmax.f32 %v2424, 0.0
      %v2441 = vmax.f32 %v2425, 0.0
      %v2442 = vmax.f32 %v2426, 0.0
      %v2443 = vmax.f32 %v2427, 0.0
      %v2444 = vmax.f32 %v2428, 0.0
      %v2445 = vmax.f32 %v2429, 0.0
      %v2446 = vmax.f32 %v2430, 0.0
      %2448 = vset.pattern.permute.xlu0 0
      %2449 = vperm.xlu0 %2448, %v2391
      %v2450 = vpop.permute.xlu0 %2449
      %2452 = vset.pattern.permute.xlu0 0
      %2453 = vperm.xlu0 %2452, %v2392
      %v2454 = vpop.permute.xlu0 %2453
      %2456 = vset.pattern.permute.xlu0 0
      %2457 = vperm.xlu0 %2456, %v2393
      %v2458 = vpop.permute.xlu0 %2457
      %2460 = vset.pattern.permute.xlu0 0
      %2461 = vperm.xlu0 %2460, %v2394
      %v2462 = vpop.permute.xlu0 %2461
      %2464 = vset.pattern.permute.xlu0 0
      %2465 = vperm.xlu0 %2464, %v2395
      %v2466 = vpop.permute.xlu0 %2465
      %2468 = vset.pattern.permute.xlu0 0
      %2469 = vperm.xlu0 %2468, %v2396
      %v2470 = vpop.permute.xlu0 %2469
      %2472 = vset.pattern.permute.xlu0 0
      %2473 = vperm.xlu0 %2472, %v2397
      %v2474 = vpop.permute.xlu0 %2473
      %2476 = vset.pattern.permute.xlu0 0
      %2477 = vperm.xlu0 %2476, %v2398
      %v2478 = vpop.permute.xlu0 %2477
      %v2479 = vrot.slane %v2450, 7
      %v2480 = vrot.slane %v2454, 7
      %v2481 = vrot.slane %v2458, 7
      %v2482 = vrot.slane %v2462, 7
      %v2483 = vrot.slane %v2466, 7
      %v2484 = vrot.slane %v2470, 7
      %v2485 = vrot.slane %v2474, 7
      %v2486 = vrot.slane %v2478, 7
      %v2495 = vmul.f32 %v2431, %v2479
      %v2496 = vmul.f32 %v2432, %v2479
      %v2497 = vmul.f32 %v2433, %v2480
      %v2498 = vmul.f32 %v2434, %v2480
      %v2499 = vmul.f32 %v2435, %v2481
      %v2500 = vmul.f32 %v2436, %v2481
      %v2501 = vmul.f32 %v2437, %v2482
      %v2502 = vmul.f32 %v2438, %v2482
      %v2503 = vmul.f32 %v2439, %v2483
      %v2504 = vmul.f32 %v2440, %v2483
      %v2505 = vmul.f32 %v2441, %v2484
      %v2506 = vmul.f32 %v2442, %v2484
      %v2507 = vmul.f32 %v2443, %v2485
      %v2508 = vmul.f32 %v2444, %v2485
      %v2509 = vmul.f32 %v2445, %v2486
      %v2510 = vmul.f32 %v2446, %v2486
      %v2527 = vrot.slane %v2495, 1
      %v2528 = vrot.slane %v2496, 1
      %v2529 = vsel %vm652, %v2527, %v2528
      %v2530 = vrot.slane %v2497, 1
      %v2531 = vrot.slane %v2498, 1
      %v2532 = vsel %vm652, %v2530, %v2531
      %v2533 = vrot.slane %v2499, 1
      %v2534 = vrot.slane %v2500, 1
      %v2535 = vsel %vm652, %v2533, %v2534
      %v2536 = vrot.slane %v2501, 1
      %v2537 = vrot.slane %v2502, 1
      %v2538 = vsel %vm652, %v2536, %v2537
      %v2539 = vrot.slane %v2503, 1
      %v2540 = vrot.slane %v2504, 1
      %v2541 = vsel %vm652, %v2539, %v2540
      %v2542 = vrot.slane %v2505, 1
      %v2543 = vrot.slane %v2506, 1
      %v2544 = vsel %vm652, %v2542, %v2543
      %v2545 = vrot.slane %v2507, 1
      %v2546 = vrot.slane %v2508, 1
      %v2547 = vsel %vm652, %v2545, %v2546
      %v2548 = vrot.slane %v2509, 1
      %v2549 = vrot.slane %v2510, 1
      %v2550 = vsel %vm652, %v2548, %v2549
      %v2559 = vpack.c.bf16 %v2532, %v2529
      %v2560 = vpack.c.bf16 %v2538, %v2535
      %v2561 = vpack.c.bf16 %v2544, %v2541
      %v2562 = vpack.c.bf16 %v2550, %v2547
      %s2563 = scalar_lea.vmem %s4, 448
      %v2564 = vld [vmem:[%s2563] sm:$0xf]
      %v2565 = vld [vmem:[%s2563 + $0x4] sm:$0xf]
      %v2566 = vld [vmem:[%s2563 + $0x8] sm:$0xf]
      %v2567 = vld [vmem:[%s2563 + $0xc] sm:$0xf]
      %v2568 = vld [vmem:[%s2563 + $0x10] sm:$0xf]
      %v2569 = vld [vmem:[%s2563 + $0x14] sm:$0xf]
      %v2570 = vld [vmem:[%s2563 + $0x18] sm:$0xf]
      %v2571 = vld [vmem:[%s2563 + $0x1c] sm:$0xf]
      %v2572 = vld [vmem:[%s2563 + $0x20] sm:$0xf]
      %v2573 = vld [vmem:[%s2563 + $0x24] sm:$0xf]
      %v2574 = vld [vmem:[%s2563 + $0x28] sm:$0xf]
      %v2575 = vld [vmem:[%s2563 + $0x2c] sm:$0xf]
      %v2576 = vld [vmem:[%s2563 + $0x30] sm:$0xf]
      %v2577 = vld [vmem:[%s2563 + $0x34] sm:$0xf]
      %v2578 = vld [vmem:[%s2563 + $0x38] sm:$0xf]
      %v2579 = vld [vmem:[%s2563 + $0x3c] sm:$0xf]
      %v2596 = vunpack.c.l.b16 %v2564
      %v2597 = vunpack.c.l.b16 %v2565
      %v2598 = vunpack.c.l.b16 %v2566
      %v2599 = vunpack.c.l.b16 %v2567
      %v2600 = vunpack.c.l.b16 %v2568
      %v2601 = vunpack.c.l.b16 %v2569
      %v2602 = vunpack.c.l.b16 %v2570
      %v2603 = vunpack.c.l.b16 %v2571
      %v2604 = vunpack.c.l.b16 %v2572
      %v2605 = vunpack.c.l.b16 %v2573
      %v2606 = vunpack.c.l.b16 %v2574
      %v2607 = vunpack.c.l.b16 %v2575
      %v2608 = vunpack.c.l.b16 %v2576
      %v2609 = vunpack.c.l.b16 %v2577
      %v2610 = vunpack.c.l.b16 %v2578
      %v2611 = vunpack.c.l.b16 %v2579
      %v2612 = vpack.c.b16 %v2597, %v2596
      %v2613 = vpack.c.b16 %v2599, %v2598
      %v2614 = vpack.c.b16 %v2601, %v2600
      %v2615 = vpack.c.b16 %v2603, %v2602
      %v2616 = vpack.c.b16 %v2605, %v2604
      %v2617 = vpack.c.b16 %v2607, %v2606
      %v2618 = vpack.c.b16 %v2609, %v2608
      %v2619 = vpack.c.b16 %v2611, %v2610
      %2628 = vmatprep.subr.bf16.mxu0 0
      %2629 = vmatpush1.bf16.msra.mxu0 %v2612
      %2630 = vmatprep.subr.bf16.mxu0 0
      %2631 = vmatpush1.bf16.msra.mxu0 %v2613
      %2632 = vmatprep.subr.bf16.mxu0 0
      %2633 = vmatpush1.bf16.msra.mxu0 %v2614
      %2634 = vmatprep.subr.bf16.mxu0 0
      %2635 = vmatpush1.bf16.msra.mxu0 %v2615
      %2636 = vmatprep.subr.bf16.mxu0 0
      %2637 = vmatpush1.bf16.msra.mxu0 %v2616
      %2638 = vmatprep.subr.bf16.mxu0 0
      %2639 = vmatpush1.bf16.msra.mxu0 %v2617
      %2640 = vmatprep.subr.bf16.mxu0 0
      %2641 = vmatpush1.bf16.msra.mxu0 %v2618
      %2642 = vmatprep.subr.bf16.mxu0 0
      %2643 = vmatpush1.bf16.msra.mxu0 %v2619
      %2644 = vmatprep.subr.bf16.mxu0 0
      %2645 = vmatpush1.bf16.msra.mxu0 0
      %2646 = vmatprep.subr.bf16.mxu0 0
      %2647 = vmatpush1.bf16.msra.mxu0 0
      %2648 = vmatprep.subr.bf16.mxu0 0
      %2649 = vmatpush1.bf16.msra.mxu0 0
      %2650 = vmatprep.subr.bf16.mxu0 0
      %2651 = vmatpush1.bf16.msra.mxu0 0
      %2652 = vmatprep.subr.bf16.mxu0 0
      %2653 = vmatpush1.bf16.msra.mxu0 0
      %2654 = vmatprep.subr.bf16.mxu0 0
      %2655 = vmatpush1.bf16.msra.mxu0 0
      %2656 = vmatprep.subr.bf16.mxu0 0
      %2657 = vmatpush1.bf16.msra.mxu0 0
      %2658 = vmatprep.subr.bf16.mxu0 0
      %2659 = vmatpush1.bf16.msra.mxu0 0
      %2660 = vmatprep.mubr.bf16.mxu0 0
      %2661 = vmatmul.mubr.bf16.gmra.mrb[0].mxu0 %v2559
      %v2662 = vpop.f32.mrb[0].mxu0
      %v2663 = vadd.f32 0.0, %v2662
      %v2664 = vpop.f32.mrb[0].mxu0
      %v2665 = vpop.f32.mrb[0].mxu0
      %v2666 = vadd.f32 0.0, %v2665
      %v2667 = vpop.f32.mrb[0].mxu0
      %2668 = vmatprep.mubr.bf16.mxu0 0
      %2669 = vmatmul.mubr.bf16.gmra.mrb[0].mxu0 %v2560
      %v2670 = vpop.f32.mrb[0].mxu0
      %v2671 = vadd.f32 0.0, %v2670
      %v2672 = vpop.f32.mrb[0].mxu0
      %v2673 = vpop.f32.mrb[0].mxu0
      %v2674 = vadd.f32 0.0, %v2673
      %v2675 = vpop.f32.mrb[0].mxu0
      %2676 = vmatprep.mubr.bf16.mxu0 0
      %2677 = vmatmul.mubr.bf16.gmra.mrb[0].mxu0 %v2561
      %v2678 = vpop.f32.mrb[0].mxu0
      %v2679 = vadd.f32 0.0, %v2678
      %v2680 = vpop.f32.mrb[0].mxu0
      %v2681 = vpop.f32.mrb[0].mxu0
      %v2682 = vadd.f32 0.0, %v2681
      %v2683 = vpop.f32.mrb[0].mxu0
      %2684 = vmatprep.mubr.bf16.mxu0 0
      %2685 = vmatmul.mubr.bf16.gmra.mrb[0].mxu0 %v2562
      %v2686 = vpop.f32.mrb[0].mxu0
      %v2687 = vadd.f32 0.0, %v2686
      %v2688 = vpop.f32.mrb[0].mxu0
      %v2689 = vpop.f32.mrb[0].mxu0
      %v2690 = vadd.f32 0.0, %v2689
      %v2691 = vpop.f32.mrb[0].mxu0
      %2692 = vdwg.mxu0
      %v2693 = vadd.f32 %v2351, %v2663
      %v2694 = vadd.f32 %v2352, %v2666
      %v2695 = vadd.f32 %v2353, %v2671
      %v2696 = vadd.f32 %v2354, %v2674
      %v2697 = vadd.f32 %v2355, %v2679
      %v2698 = vadd.f32 %v2356, %v2682
      %v2699 = vadd.f32 %v2357, %v2687
      %v2700 = vadd.f32 %v2358, %v2690
      %v2701 = vld [vmem:[%s2119] sm:$0xe]
      %v2702 = vld [vmem:[%s2119 + $0x8] sm:$0xe]
      %v2703 = vld [vmem:[%s2119 + $0x10] sm:$0xe]
      %v2704 = vld [vmem:[%s2119 + $0x18] sm:$0xe]
      %v2705 = vld [vmem:[%s2119 + $0x20] sm:$0xe]
      %v2706 = vld [vmem:[%s2119 + $0x28] sm:$0xe]
      %v2707 = vld [vmem:[%s2119 + $0x30] sm:$0xe]
      %v2708 = vld [vmem:[%s2119 + $0x38] sm:$0xe]
      %v2709 = vunpack.c.l.bf16 %v2701
      %v2710 = vunpack.c.l.bf16 %v2702
      %v2711 = vunpack.c.l.bf16 %v2703
      %v2712 = vunpack.c.l.bf16 %v2704
      %v2713 = vunpack.c.l.bf16 %v2705
      %v2714 = vunpack.c.l.bf16 %v2706
      %v2715 = vunpack.c.l.bf16 %v2707
      %v2716 = vunpack.c.l.bf16 %v2708
      %v2717 = vld [vmem:[%s2136 + $0x2] sm:$0xff]
      %v2718 = vld [vmem:[%s2136 + $0x12] sm:$0xff]
      %v2719 = vld [vmem:[%s2136 + $0x22] sm:$0xff]
      %v2720 = vld [vmem:[%s2136 + $0x32] sm:$0xff]
      %v2721 = vld [vmem:[%s2136 + $0x42] sm:$0xff]
      %v2722 = vld [vmem:[%s2136 + $0x52] sm:$0xff]
      %v2723 = vld [vmem:[%s2136 + $0x62] sm:$0xff]
      %v2724 = vld [vmem:[%s2136 + $0x72] sm:$0xff]
      %v2725 = vmul.f32 %v2709, %v384
      %v2726 = vmul.f32 %v2710, %v384
      %v2727 = vmul.f32 %v2711, %v384
      %v2728 = vmul.f32 %v2712, %v384
      %v2729 = vmul.f32 %v2713, %v384
      %v2730 = vmul.f32 %v2714, %v384
      %v2731 = vmul.f32 %v2715, %v384
      %v2732 = vmul.f32 %v2716, %v384
      %v2733 = vadd.f32 %v2725, %v398
      %v2734 = vadd.f32 %v2726, %v398
      %v2735 = vadd.f32 %v2727, %v398
      %v2736 = vadd.f32 %v2728, %v398
      %v2737 = vadd.f32 %v2729, %v398
      %v2738 = vadd.f32 %v2730, %v398
      %v2739 = vadd.f32 %v2731, %v398
      %v2740 = vadd.f32 %v2732, %v398
      %v2741 = vmax.f32 %v2733, 0.0
      %v2742 = vmax.f32 %v2734, 0.0
      %v2743 = vmax.f32 %v2735, 0.0
      %v2744 = vmax.f32 %v2736, 0.0
      %v2745 = vmax.f32 %v2737, 0.0
      %v2746 = vmax.f32 %v2738, 0.0
      %v2747 = vmax.f32 %v2739, 0.0
      %v2748 = vmax.f32 %v2740, 0.0
      %2750 = vset.pattern.permute.xlu0 0
      %2751 = vperm.xlu0 %2750, %v2717
      %v2752 = vpop.permute.xlu0 %2751
      %2754 = vset.pattern.permute.xlu0 0
      %2755 = vperm.xlu0 %2754, %v2718
      %v2756 = vpop.permute.xlu0 %2755
      %2758 = vset.pattern.permute.xlu0 0
      %2759 = vperm.xlu0 %2758, %v2719
      %v2760 = vpop.permute.xlu0 %2759
      %2762 = vset.pattern.permute.xlu0 0
      %2763 = vperm.xlu0 %2762, %v2720
      %v2764 = vpop.permute.xlu0 %2763
      %2766 = vset.pattern.permute.xlu0 0
      %2767 = vperm.xlu0 %2766, %v2721
      %v2768 = vpop.permute.xlu0 %2767
      %2770 = vset.pattern.permute.xlu0 0
      %2771 = vperm.xlu0 %2770, %v2722
      %v2772 = vpop.permute.xlu0 %2771
      %2774 = vset.pattern.permute.xlu0 0
      %2775 = vperm.xlu0 %2774, %v2723
      %v2776 = vpop.permute.xlu0 %2775
      %2778 = vset.pattern.permute.xlu0 0
      %2779 = vperm.xlu0 %2778, %v2724
      %v2780 = vpop.permute.xlu0 %2779
      %v2781 = vrot.slane %v2752, 6
      %v2782 = vrot.slane %v2756, 6
      %v2783 = vrot.slane %v2760, 6
      %v2784 = vrot.slane %v2764, 6
      %v2785 = vrot.slane %v2768, 6
      %v2786 = vrot.slane %v2772, 6
      %v2787 = vrot.slane %v2776, 6
      %v2788 = vrot.slane %v2780, 6
      %v2797 = vmul.f32 %v2741, %v2781
      %v2798 = vmul.f32 %v2432, %v2781
      %v2799 = vmul.f32 %v2742, %v2782
      %v2800 = vmul.f32 %v2434, %v2782
      %v2801 = vmul.f32 %v2743, %v2783
      %v2802 = vmul.f32 %v2436, %v2783
      %v2803 = vmul.f32 %v2744, %v2784
      %v2804 = vmul.f32 %v2438, %v2784
      %v2805 = vmul.f32 %v2745, %v2785
      %v2806 = vmul.f32 %v2440, %v2785
      %v2807 = vmul.f32 %v2746, %v2786
      %v2808 = vmul.f32 %v2442, %v2786
      %v2809 = vmul.f32 %v2747, %v2787
      %v2810 = vmul.f32 %v2444, %v2787
      %v2811 = vmul.f32 %v2748, %v2788
      %v2812 = vmul.f32 %v2446, %v2788
      %v2829 = vrot.slane %v2797, 2
      %v2830 = vrot.slane %v2798, 2
      %v2831 = vsel %vm1060, %v2829, %v2830
      %v2832 = vrot.slane %v2799, 2
      %v2833 = vrot.slane %v2800, 2
      %v2834 = vsel %vm1060, %v2832, %v2833
      %v2835 = vrot.slane %v2801, 2
      %v2836 = vrot.slane %v2802, 2
      %v2837 = vsel %vm1060, %v2835, %v2836
      %v2838 = vrot.slane %v2803, 2
      %v2839 = vrot.slane %v2804, 2
      %v2840 = vsel %vm1060, %v2838, %v2839
      %v2841 = vrot.slane %v2805, 2
      %v2842 = vrot.slane %v2806, 2
      %v2843 = vsel %vm1060, %v2841, %v2842
      %v2844 = vrot.slane %v2807, 2
      %v2845 = vrot.slane %v2808, 2
      %v2846 = vsel %vm1060, %v2844, %v2845
      %v2847 = vrot.slane %v2809, 2
      %v2848 = vrot.slane %v2810, 2
      %v2849 = vsel %vm1060, %v2847, %v2848
      %v2850 = vrot.slane %v2811, 2
      %v2851 = vrot.slane %v2812, 2
      %v2852 = vsel %vm1060, %v2850, %v2851
      %v2861 = vpack.c.bf16 %v2834, %v2831
      %v2862 = vpack.c.bf16 %v2840, %v2837
      %v2863 = vpack.c.bf16 %v2846, %v2843
      %v2864 = vpack.c.bf16 %v2852, %v2849
      %s2865 = scalar_lea.vmem %s4, 512
      %v2866 = vld [vmem:[%s2865] sm:$0xf]
      %v2867 = vld [vmem:[%s2865 + $0x4] sm:$0xf]
      %v2868 = vld [vmem:[%s2865 + $0x8] sm:$0xf]
      %v2869 = vld [vmem:[%s2865 + $0xc] sm:$0xf]
      %v2870 = vld [vmem:[%s2865 + $0x10] sm:$0xf]
      %v2871 = vld [vmem:[%s2865 + $0x14] sm:$0xf]
      %v2872 = vld [vmem:[%s2865 + $0x18] sm:$0xf]
      %v2873 = vld [vmem:[%s2865 + $0x1c] sm:$0xf]
      %v2874 = vld [vmem:[%s2865 + $0x20] sm:$0xf]
      %v2875 = vld [vmem:[%s2865 + $0x24] sm:$0xf]
      %v2876 = vld [vmem:[%s2865 + $0x28] sm:$0xf]
      %v2877 = vld [vmem:[%s2865 + $0x2c] sm:$0xf]
      %v2878 = vld [vmem:[%s2865 + $0x30] sm:$0xf]
      %v2879 = vld [vmem:[%s2865 + $0x34] sm:$0xf]
      %v2880 = vld [vmem:[%s2865 + $0x38] sm:$0xf]
      %v2881 = vld [vmem:[%s2865 + $0x3c] sm:$0xf]
      %v2898 = vunpack.c.l.b16 %v2866
      %v2899 = vunpack.c.l.b16 %v2867
      %v2900 = vunpack.c.l.b16 %v2868
      %v2901 = vunpack.c.l.b16 %v2869
      %v2902 = vunpack.c.l.b16 %v2870
      %v2903 = vunpack.c.l.b16 %v2871
      %v2904 = vunpack.c.l.b16 %v2872
      %v2905 = vunpack.c.l.b16 %v2873
      %v2906 = vunpack.c.l.b16 %v2874
      %v2907 = vunpack.c.l.b16 %v2875
      %v2908 = vunpack.c.l.b16 %v2876
      %v2909 = vunpack.c.l.b16 %v2877
      %v2910 = vunpack.c.l.b16 %v2878
      %v2911 = vunpack.c.l.b16 %v2879
      %v2912 = vunpack.c.l.b16 %v2880
      %v2913 = vunpack.c.l.b16 %v2881
      %v2914 = vpack.c.b16 %v2899, %v2898
      %v2915 = vpack.c.b16 %v2901, %v2900
      %v2916 = vpack.c.b16 %v2903, %v2902
      %v2917 = vpack.c.b16 %v2905, %v2904
      %v2918 = vpack.c.b16 %v2907, %v2906
      %v2919 = vpack.c.b16 %v2909, %v2908
      %v2920 = vpack.c.b16 %v2911, %v2910
      %v2921 = vpack.c.b16 %v2913, %v2912
      %2930 = vmatprep.subr.bf16.mxu0 0
      %2931 = vmatpush1.bf16.msra.mxu0 %v2914
      %2932 = vmatprep.subr.bf16.mxu0 0
      %2933 = vmatpush1.bf16.msra.mxu0 %v2915
      %2934 = vmatprep.subr.bf16.mxu0 0
      %2935 = vmatpush1.bf16.msra.mxu0 %v2916
      %2936 = vmatprep.subr.bf16.mxu0 0
      %2937 = vmatpush1.bf16.msra.mxu0 %v2917
      %2938 = vmatprep.subr.bf16.mxu0 0
      %2939 = vmatpush1.bf16.msra.mxu0 %v2918
      %2940 = vmatprep.subr.bf16.mxu0 0
      %2941 = vmatpush1.bf16.msra.mxu0 %v2919
      %2942 = vmatprep.subr.bf16.mxu0 0
      %2943 = vmatpush1.bf16.msra.mxu0 %v2920
      %2944 = vmatprep.subr.bf16.mxu0 0
      %2945 = vmatpush1.bf16.msra.mxu0 %v2921
      %2946 = vmatprep.subr.bf16.mxu0 0
      %2947 = vmatpush1.bf16.msra.mxu0 0
      %2948 = vmatprep.subr.bf16.mxu0 0
      %2949 = vmatpush1.bf16.msra.mxu0 0
      %2950 = vmatprep.subr.bf16.mxu0 0
      %2951 = vmatpush1.bf16.msra.mxu0 0
      %2952 = vmatprep.subr.bf16.mxu0 0
      %2953 = vmatpush1.bf16.msra.mxu0 0
      %2954 = vmatprep.subr.bf16.mxu0 0
      %2955 = vmatpush1.bf16.msra.mxu0 0
      %2956 = vmatprep.subr.bf16.mxu0 0
      %2957 = vmatpush1.bf16.msra.mxu0 0
      %2958 = vmatprep.subr.bf16.mxu0 0
      %2959 = vmatpush1.bf16.msra.mxu0 0
      %2960 = vmatprep.subr.bf16.mxu0 0
      %2961 = vmatpush1.bf16.msra.mxu0 0
      %2962 = vmatprep.mubr.bf16.mxu0 0
      %2963 = vmatmul.mubr.bf16.gmra.mrb[0].mxu0 %v2861
      %v2964 = vpop.f32.mrb[0].mxu0
      %v2965 = vadd.f32 0.0, %v2964
      %v2966 = vpop.f32.mrb[0].mxu0
      %v2967 = vpop.f32.mrb[0].mxu0
      %v2968 = vadd.f32 0.0, %v2967
      %v2969 = vpop.f32.mrb[0].mxu0
      %2970 = vmatprep.mubr.bf16.mxu0 0
      %2971 = vmatmul.mubr.bf16.gmra.mrb[0].mxu0 %v2862
      %v2972 = vpop.f32.mrb[0].mxu0
      %v2973 = vadd.f32 0.0, %v2972
      %v2974 = vpop.f32.mrb[0].mxu0
      %v2975 = vpop.f32.mrb[0].mxu0
      %v2976 = vadd.f32 0.0, %v2975
      %v2977 = vpop.f32.mrb[0].mxu0
      %2978 = vmatprep.mubr.bf16.mxu0 0
      %2979 = vmatmul.mubr.bf16.gmra.mrb[0].mxu0 %v2863
      %v2980 = vpop.f32.mrb[0].mxu0
      %v2981 = vadd.f32 0.0, %v2980
      %v2982 = vpop.f32.mrb[0].mxu0
      %v2983 = vpop.f32.mrb[0].mxu0
      %v2984 = vadd.f32 0.0, %v2983
      %v2985 = vpop.f32.mrb[0].mxu0
      %2986 = vmatprep.mubr.bf16.mxu0 0
      %2987 = vmatmul.mubr.bf16.gmra.mrb[0].mxu0 %v2864
      %v2988 = vpop.f32.mrb[0].mxu0
      %v2989 = vadd.f32 0.0, %v2988
      %v2990 = vpop.f32.mrb[0].mxu0
      %v2991 = vpop.f32.mrb[0].mxu0
      %v2992 = vadd.f32 0.0, %v2991
      %v2993 = vpop.f32.mrb[0].mxu0
      %2994 = vdwg.mxu0
      %v2995 = vadd.f32 %v2693, %v2965
      %v2996 = vadd.f32 %v2694, %v2968
      %v2997 = vadd.f32 %v2695, %v2973
      %v2998 = vadd.f32 %v2696, %v2976
      %v2999 = vadd.f32 %v2697, %v2981
      %v3000 = vadd.f32 %v2698, %v2984
      %v3001 = vadd.f32 %v2699, %v2989
      %v3002 = vadd.f32 %v2700, %v2992
      %v3003 = vld [vmem:[%s347] sm:$0xff]
      %v3004 = vld [vmem:[%s347 + $0x8] sm:$0xff]
      %v3005 = vld [vmem:[%s347 + $0x10] sm:$0xff]
      %v3006 = vld [vmem:[%s347 + $0x18] sm:$0xff]
      %v3007 = vld [vmem:[%s347 + $0x20] sm:$0xff]
      %v3008 = vld [vmem:[%s347 + $0x28] sm:$0xff]
      %v3009 = vld [vmem:[%s347 + $0x30] sm:$0xff]
      %v3010 = vld [vmem:[%s347 + $0x38] sm:$0xff]
      %v3011 = vld [vmem:[%s6] sm:$0x1]
      %v3013 = vlaneseq
      %v3014 = vshrl.u32 %v3013, 7
      %v3015 = vsub.s32 0, %v3014
      %v3016 = vrot.slane %v3011, %v3015
      %v3018 = vmul.f32 %v3003, %v3016
      %v3019 = vmul.f32 %v3004, %v3016
      %v3020 = vmul.f32 %v3005, %v3016
      %v3021 = vmul.f32 %v3006, %v3016
      %v3022 = vmul.f32 %v3007, %v3016
      %v3023 = vmul.f32 %v3008, %v3016
      %v3024 = vmul.f32 %v3009, %v3016
      %v3025 = vmul.f32 %v3010, %v3016
      %v3026 = vld [vmem:[%s7] sm:$0x1]
      %v3028 = vlaneseq
      %v3029 = vshrl.u32 %v3028, 7
      %v3030 = vsub.s32 0, %v3029
      %v3031 = vrot.slane %v3026, %v3030
      %v3033 = vadd.f32 %v3018, %v3031
      %v3034 = vadd.f32 %v3019, %v3031
      %v3035 = vadd.f32 %v3020, %v3031
      %v3036 = vadd.f32 %v3021, %v3031
      %v3037 = vadd.f32 %v3022, %v3031
      %v3038 = vadd.f32 %v3023, %v3031
      %v3039 = vadd.f32 %v3024, %v3031
      %v3040 = vadd.f32 %v3025, %v3031
      %v3041 = vmax.f32 %v3033, 0.0
      %v3042 = vmax.f32 %v3034, 0.0
      %v3043 = vmax.f32 %v3035, 0.0
      %v3044 = vmax.f32 %v3036, 0.0
      %v3045 = vmax.f32 %v3037, 0.0
      %v3046 = vmax.f32 %v3038, 0.0
      %v3047 = vmax.f32 %v3039, 0.0
      %v3048 = vmax.f32 %v3040, 0.0
      %v3049 = vpack.c.bf16 %v3042, %v3041
      %v3050 = vpack.c.bf16 %v3044, %v3043
      %v3051 = vpack.c.bf16 %v3046, %v3045
      %v3052 = vpack.c.bf16 %v3048, %v3047
      %v3053 = vld [vmem:[%s8] sm:$0x3]
      %vm3054 = vcmask 31744
      %v3056 = vsel %vm3054, %v3049, 0
      %v3059 = vsel %vm3054, %v3050, 0
      %v3062 = vsel %vm3054, %v3051, 0
      %v3065 = vsel %vm3054, %v3052, 0
      %vm3067 = vcmask 1041408
      %v3069 = vsel %vm3067, %v3053, 0
      %3071 = vmatprep.subr.bf16.mxu0 0
      %3072 = vmatpush1.bf16.msra.mxu0 %v3069
      %3073 = vmatprep.subr.bf16.mxu0 0
      %3074 = vmatpush1.bf16.msra.mxu0 0
      %3075 = vmatprep.subr.bf16.mxu0 0
      %3076 = vmatpush1.bf16.msra.mxu0 0
      %3077 = vmatprep.subr.bf16.mxu0 0
      %3078 = vmatpush1.bf16.msra.mxu0 0
      %3079 = vmatprep.subr.bf16.mxu0 0
      %3080 = vmatpush1.bf16.msra.mxu0 0
      %3081 = vmatprep.subr.bf16.mxu0 0
      %3082 = vmatpush1.bf16.msra.mxu0 0
      %3083 = vmatprep.subr.bf16.mxu0 0
      %3084 = vmatpush1.bf16.msra.mxu0 0
      %3085 = vmatprep.subr.bf16.mxu0 0
      %3086 = vmatpush1.bf16.msra.mxu0 0
      %3087 = vmatprep.subr.bf16.mxu0 0
      %3088 = vmatpush1.bf16.msra.mxu0 0
      %3089 = vmatprep.subr.bf16.mxu0 0
      %3090 = vmatpush1.bf16.msra.mxu0 0
      %3091 = vmatprep.subr.bf16.mxu0 0
      %3092 = vmatpush1.bf16.msra.mxu0 0
      %3093 = vmatprep.subr.bf16.mxu0 0
      %3094 = vmatpush1.bf16.msra.mxu0 0
      %3095 = vmatprep.subr.bf16.mxu0 0
      %3096 = vmatpush1.bf16.msra.mxu0 0
      %3097 = vmatprep.subr.bf16.mxu0 0
      %3098 = vmatpush1.bf16.msra.mxu0 0
      %3099 = vmatprep.subr.bf16.mxu0 0
      %3100 = vmatpush1.bf16.msra.mxu0 0
      %3101 = vmatprep.subr.bf16.mxu0 0
      %3102 = vmatpush1.bf16.msra.mxu0 0
      %3103 = vmatprep.mubr.bf16.mxu0 0
      %3104 = vmatmul.mubr.bf16.gmra.mrb[0].mxu0 %v3056
      %v3105 = vpop.f32.mrb[0].mxu0
      %v3106 = vadd.f32 0.0, %v3105
      %v3107 = vpop.f32.mrb[0].mxu0
      %v3108 = vpop.f32.mrb[0].mxu0
      %v3109 = vadd.f32 0.0, %v3108
      %v3110 = vpop.f32.mrb[0].mxu0
      %3111 = vmatprep.mubr.bf16.mxu0 0
      %3112 = vmatmul.mubr.bf16.gmra.mrb[0].mxu0 %v3059
      %v3113 = vpop.f32.mrb[0].mxu0
      %v3114 = vadd.f32 0.0, %v3113
      %v3115 = vpop.f32.mrb[0].mxu0
      %v3116 = vpop.f32.mrb[0].mxu0
      %v3117 = vadd.f32 0.0, %v3116
      %v3118 = vpop.f32.mrb[0].mxu0
      %3119 = vmatprep.mubr.bf16.mxu0 0
      %3120 = vmatmul.mubr.bf16.gmra.mrb[0].mxu0 %v3062
      %v3121 = vpop.f32.mrb[0].mxu0
      %v3122 = vadd.f32 0.0, %v3121
      %v3123 = vpop.f32.mrb[0].mxu0
      %v3124 = vpop.f32.mrb[0].mxu0
      %v3125 = vadd.f32 0.0, %v3124
      %v3126 = vpop.f32.mrb[0].mxu0
      %3127 = vmatprep.mubr.bf16.mxu0 0
      %3128 = vmatmul.mubr.bf16.gmra.mrb[0].mxu0 %v3065
      %v3129 = vpop.f32.mrb[0].mxu0
      %v3130 = vadd.f32 0.0, %v3129
      %v3131 = vpop.f32.mrb[0].mxu0
      %v3132 = vpop.f32.mrb[0].mxu0
      %v3133 = vadd.f32 0.0, %v3132
      %v3134 = vpop.f32.mrb[0].mxu0
      %3135 = vdwg.mxu0
      %v3136 = vadd.f32 %v2995, %v3106
      %v3137 = vadd.f32 %v2996, %v3109
      %v3138 = vadd.f32 %v2997, %v3114
      %v3139 = vadd.f32 %v2998, %v3117
      %v3140 = vadd.f32 %v2999, %v3122
      %v3141 = vadd.f32 %v3000, %v3125
      %v3142 = vadd.f32 %v3001, %v3130
      %v3143 = vadd.f32 %v3002, %v3133
      %3144 = vst [vmem:[%s352] sm:$0xff] %v3136
      %3145 = vst [vmem:[%s352 + $0x8] sm:$0xff] %v3137
      %3146 = vst [vmem:[%s352 + $0x10] sm:$0xff] %v3138
      %3147 = vst [vmem:[%s352 + $0x18] sm:$0xff] %v3139
      %3148 = vst [vmem:[%s352 + $0x20] sm:$0xff] %v3140
      %3149 = vst [vmem:[%s352 + $0x28] sm:$0xff] %v3141
      %3150 = vst [vmem:[%s352 + $0x30] sm:$0xff] %v3142
      %3151 = vst [vmem:[%s352 + $0x38] sm:$0xff] %v3143
      %p3152 = scmp.lt.s32.totalorder %s20, 1
      %s3153 = scalar_select %p3152, %s20, 1
      %s3154 = smul.addr %s3153, 8
      %s3155 = smul.addr %s3154, 8
      %s3156 = scalar_lea.vmem %s9, %s3155
      // Predicated region
      $region57: #{_block_forward.5} parent=55 // pred_check
        %p3157 = pneg %p237
      $region58: #{_block_forward.5} parent=55 // pred_check_branch
        %3159 = sbr.rel (%p3157) target = $region60
      $region59: #{_block_forward.5} parent=55 // pred_region
        _
      $region60: #{_block_forward.5} parent=55 // pred_fallthru
        _
    $region56: #{_block_forward.5} parent=5 // pred_fallthru
      _
    %p3160 = scmp.le.s32.totalorder 2, %s15
    // Predicated region
    $region61: #{_block_forward.5} parent=5 // pred_check
      %p3161 = pneg %p3160
    $region62: #{_block_forward.5} parent=5 // pred_check_branch
      %3163 = sbr.rel (%p3161) target = $region64
    $region63: #{_block_forward.5} parent=5 // pred_region
      %s3164 = ssub.s32 %s15, 2
      // Predicated region
      $region65: #{_block_forward.5} parent=63 // pred_check
        %p3165 = pneg %p243
      $region66: #{_block_forward.5} parent=63 // pred_check_branch
        %3167 = sbr.rel (%p3165) target = $region68
      $region67: #{_block_forward.5} parent=63 // pred_region
        %p3168 = scmp.lt.s32.totalorder %s21, 1
        %s3169 = scalar_select %p3168, %s21, 1
        %s3170 = smul.addr %s3169, 8
        %s3171 = smul.addr %s3170, 8
        %s3172 = scalar_lea.vmem %s9, %s3171
      $region68: #{_block_forward.5} parent=63 // pred_fallthru
        _
    $region64: #{_block_forward.5} parent=5 // pred_fallthru
      _
  $region6: #{_block_forward.5} parent=0 // loop_footer
    %s19 = sadd.s32 1, %s15
  $region7: #{_block_forward.5} parent=0 // loop_footer_branch
    %14 = sbr.rel target = $region3
  $region8: #{_block_forward.5} parent=0 // loop_exit
    _

</llo_original>
